<compile_context>
chip_gen: v6e
topology: v6e:2x2x1
jax: 0.10.0
libtpu: 0.0.40
codegen_flags: <defaults>
</compile_context>

<pallas_src>
import functools
import math

import jax
import jax.numpy as jnp
import numpy as np
from jax.experimental import pallas as pl
from jax.experimental.pallas import tpu as pltpu

_EPS = 1e-5


def _res3d_kernel(x_ref, w1_ref, w2_ref, g1_ref, b1_ref, g2_ref, b2_ref,
                  o_ref, pad_ref, patch_ref, *, n_w, n_c):
    # x_ref:     (N, D, H, W*C) f32     lane-folded NDHWC activation
    # w*_ref:    (9*W*C, W*C)   bf16    im2col conv weights; row block
    #                                   j = kh*3 + kd is the (kd, kh) tap with
    #                                   the kw taps + W rep-pad folded in.
    # g*/b*_ref: (1, W*C)       f32     BN gamma / beta tiled over W.
    # pad_ref:   (N, D+2, H+2, W*C) f32 scratch: D/H replication-padded input
    #                                   of the current conv (W padding lives
    #                                   inside the weights).
    # patch_ref: (N*D*H, 9*W*C) bf16    scratch: im2col patch of current conv.
    N, D, H, WC = x_ref.shape
    M = N * D * H
    inv_count = 1.0 / float(M * n_w)          # 1 / (N*D*H*W)

    def fill_replication_pad(v):
        # v: (N, D, H, WC) f32.  Every write comes straight from `v` (no
        # pad_ref read-back), so the fill and the first taps can interleave.
        pad_ref[:, 1:D + 1, 1:H + 1, :] = v
        pad_ref[:, 1:D + 1, 0:1, :] = v[:, :, 0:1, :]
        pad_ref[:, 1:D + 1, H + 1:H + 2, :] = v[:, :, H - 1:H, :]
        for dst_d, src_d in ((0, 0), (D + 1, D - 1)):
            vs = v[:, src_d:src_d + 1, :, :]
            pad_ref[:, dst_d:dst_d + 1, 1:H + 1, :] = vs
            pad_ref[:, dst_d:dst_d + 1, 0:1, :] = vs[:, :, 0:1, :]
            pad_ref[:, dst_d:dst_d + 1, H + 1:H + 2, :] = vs[:, :, H - 1:H, :]

    def conv3x3x3(w_ref):
        # im2col: build the (M, 9*WC) bf16 patch in VMEM scratch, then issue a
        # single K = 9*WC bf16 MXU matmul with f32 accumulation.  The
        # sublane-offset kh slice is hoisted to the outer loop (3 slab reads
        # per conv, only kh=1,2 unaligned); kd slices are major-axis selects.
        for kh in range(3):
            slab = pad_ref[:, :, kh:kh + H, :].astype(jnp.bfloat16)
            for kd in range(3):
                j = kh * 3 + kd
                patch_ref[:, j * WC:(j + 1) * WC] = (
                    slab[:, kd:kd + D, :, :].reshape(M, WC))
        return jnp.dot(patch_ref[...], w_ref[...],
                       preferred_element_type=jnp.float32)

    def lane_allreduce(s):
        # (1, WC) per-(w, c) partials -> per-channel totals replicated over
        # the W blocks via cyclic lane rolls (XLU slot).  log2(W) doubling
        # tree when W is a power of two, linear chain otherwise.
        t = s
        if n_w & (n_w - 1) == 0:
            shift = n_c
            while shift < n_w * n_c:
                t = t + pltpu.roll(t, shift=shift, axis=1)
                shift *= 2
        else:
            for i in range(1, n_w):
                t = t + pltpu.roll(s, shift=i * n_c, axis=1)
        return t

    def batchnorm(y, gamma, beta):
        # Training-mode BN (batch statistics, biased variance).  Two-pass
        # centered variance for numerical robustness.
        mean = lane_allreduce(jnp.sum(y, axis=0, keepdims=True)) * inv_count
        d = y - mean
        var = lane_allreduce(jnp.sum(d * d, axis=0, keepdims=True)) * inv_count
        scale = gamma * jax.lax.rsqrt(var + _EPS)
        return d * scale + beta

    x = x_ref[...].astype(jnp.float32)

    # branch: rep-pad -> conv1 -> bn1 -> relu
    fill_replication_pad(x)
    h = conv3x3x3(w1_ref)
    h = batchnorm(h, g1_ref[...], b1_ref[...])
    h = jnp.maximum(h, 0.0)

    # branch: rep-pad -> conv2 -> bn2
    fill_replication_pad(h.reshape(N, D, H, WC))
    h = conv3x3x3(w2_ref)
    h = batchnorm(h, g2_ref[...], b2_ref[...])

    # residual add (lane-dense, unmasked store)
    o_ref[...] = (x + h.reshape(N, D, H, WC)).astype(o_ref.dtype)


def _w_shift_matrices(w_size):
    """(W, W) selection matrices implementing the kw = 0/1/2 taps together
    with replication padding along W (host-side numpy)."""
    mats = []
    for kw in range(3):
        s = np.zeros((w_size, w_size), np.float32)
        for wo in range(w_size):
            wi = min(max(wo + kw - 1, 0), w_size - 1)
            s[wi, wo] += 1.0
        mats.append(s)
    return mats


def fold_conv_weight(w27, w_size, dtype=jnp.bfloat16):
    """(27, C, C) [kd*9+kh*3+kw, c_in, c_out] -> (9*W*C, W*C) im2col weight.

    Row block j = kh*3 + kd is the block-tridiagonal (W*C, W*C) matrix that
    applies the (kd, kh) tap with the three kw taps + W replication padding
    folded in.  Pure host-side numpy; run once per module instance."""
    w = np.asarray(w27, np.float32)
    s = _w_shift_matrices(w_size)
    blocks = []
    for kh in range(3):
        for kd in range(3):
            base = kd * 9 + kh * 3
            blocks.append(np.kron(s[0], w[base + 0]) +
                          np.kron(s[1], w[base + 1]) +
                          np.kron(s[2], w[base + 2]))
    return jnp.asarray(np.concatenate(blocks, axis=0), dtype=dtype)


def prepare_res3d_params(w1, w2, g1, b1, g2, b2, *, w_size, channels):
    """One-time parameter prep (weight fold + gamma/beta tiling).

    Cache the returned dict across forwards: re-folding every call both
    recomputes the kron fold and re-uploads ~21x inflated weights to HBM."""
    # TODO(synk): for other shapes fold only ~128//C W blocks (and skip the
    # fold when C >= 128): the block-tridiagonal fold wastes a (1 - 3/W)
    # fraction of MXU flops on structural zeros as W grows.
    def tile_cw(p):
        return jnp.tile(jnp.reshape(jnp.asarray(p, jnp.float32),
                                    (1, channels)), (1, w_size))
    return dict(w1=fold_conv_weight(w1, w_size),
                w2=fold_conv_weight(w2, w_size),
                g1=tile_cw(g1), b1=tile_cw(b1),
                g2=tile_cw(g2), b2=tile_cw(b2))


@functools.partial(jax.jit, static_argnames=("n_w", "n_c"))
def res3d_block_folded(x_folded, params, *, n_w, n_c):
    """Res3DBlock forward on the lane-folded (N, D, H, W*C) layout."""
    N, D, H, WC = x_folded.shape
    M = N * D * H

    itemsize = jnp.dtype(x_folded.dtype).itemsize
    x_bytes = N * D * H * WC * itemsize
    w_bytes = 2 * 9 * WC * WC * 2                    # bf16 folded weights
    pad_bytes = 4 * N * (D + 2) * (H + 2) * WC
    patch_bytes = 2 * M * 9 * WC
    need_bytes = 2 * x_bytes + w_bytes + pad_bytes + patch_bytes
    # TODO(synk): production shapes need a D-tiled grid (kd halo) with the
    # BatchNorm split into a stats sweep + normalize sweep so BlockSpec
    # pipelining can overlap HBM DMA with compute, plus
    # dimension_semantics=("parallel",) to use both v7x TensorCores; re-derive
    # the VMEM budget against v7x's 64 MiB.  At this working set (~1.5 MiB) a
    # single VMEM-resident call is used because the batch statistics couple
    # every spatial position.
    vmem_limit = max(2 * need_bytes, 8 * 1024 * 1024)

    flops = 2 * 2 * M * (9 * WC) * WC                # two im2col MXU matmuls
    io_bytes = 2 * x_bytes + w_bytes + 4 * 4 * WC

    kernel = functools.partial(_res3d_kernel, n_w=n_w, n_c=n_c)
    return pl.pallas_call(
        kernel,
        out_shape=jax.ShapeDtypeStruct((N, D, H, WC), x_folded.dtype),
        in_specs=[pl.BlockSpec(memory_space=pltpu.MemorySpace.VMEM)] * 7,
        out_specs=pl.BlockSpec(memory_space=pltpu.MemorySpace.VMEM),
        scratch_shapes=[
            pltpu.VMEM((N, D + 2, H + 2, WC), jnp.float32),   # rep-padded act
            pltpu.VMEM((M, 9 * WC), jnp.bfloat16),            # im2col patch
        ],
        compiler_params=pltpu.CompilerParams(vmem_limit_bytes=vmem_limit),
        cost_estimate=pl.CostEstimate(flops=flops, transcendentals=2 * WC,
                                      bytes_accessed=io_bytes),
    )(x_folded, params["w1"], params["w2"],
      params["g1"], params["b1"], params["g2"], params["b2"])


@jax.jit
def res3d_block(x_ncdhw, params):
    """NCDHW-interface wrapper matching the torch module.

    TODO(synk): if neighbouring blocks keep activations in the lane-folded
    (N, D, H, W*C) layout (call res3d_block_folded directly), these two HBM
    transpose passes disappear entirely."""
    N, C, D, H, W = x_ncdhw.shape
    x = jnp.transpose(x_ncdhw, (0, 2, 3, 4, 1)).reshape(N, D, H, W * C)
    out = res3d_block_folded(x, params, n_w=W, n_c=C)
    return jnp.transpose(out.reshape(N, D, H, W, C), (0, 4, 1, 2, 3))


def res3d_block_ref(x_ncdhw, w1, w2, g1, b1, g2, b2):
    """Pure-JAX f32 reference (same math, no Pallas) for correctness."""
    x = jnp.transpose(x_ncdhw, (0, 2, 3, 4, 1)).astype(jnp.float32)
    N, D, H, W, C = x.shape

    def pad(v):
        return jnp.pad(v, ((0, 0), (1, 1), (1, 1), (1, 1), (0, 0)), mode="edge")

    def conv(vp, w):
        acc = jnp.zeros((N, D, H, W, C), jnp.float32)
        k = 0
        for kd in range(3):
            for kh in range(3):
                for kw in range(3):
                    acc = acc + jnp.einsum(
                        "ndhwc,co->ndhwo",
                        vp[:, kd:kd + D, kh:kh + H, kw:kw + W, :], w[k])
                    k += 1
        return acc

    def bn(y, g, b):
        mean = jnp.mean(y, axis=(0, 1, 2, 3), keepdims=True)
        var = jnp.mean((y - mean) ** 2, axis=(0, 1, 2, 3), keepdims=True)
        return ((y - mean) * jax.lax.rsqrt(var + _EPS)
                * g.reshape(1, 1, 1, 1, C) + b.reshape(1, 1, 1, 1, C))

    h = jnp.maximum(bn(conv(pad(x), w1), g1, b1), 0.0)
    h = bn(conv(pad(h), w2), g2, b2)
    return jnp.transpose(x + h, (0, 4, 1, 2, 3))


if __name__ == "__main__":
    # Small shapes consistent with Res3DBlock(planes=16): NCDHW = (2, 16, 8, 8, 8)
    N, C, D, H, W = 2, 16, 8, 8, 8

    key = jax.random.PRNGKey(0)
    k_x, k_w1, k_w2 = jax.random.split(key, 3)

    x = jax.random.normal(k_x, (N, C, D, H, W), dtype=jnp.float32)

    # Conv3d(planes, planes, 3, bias=False) default init: U(-1/sqrt(fan_in), +)
    fan_in = C * 27
    bound = 1.0 / math.sqrt(fan_in)
    w1 = jax.random.uniform(k_w1, (27, C, C), jnp.float32, -bound, bound)
    w2 = jax.random.uniform(k_w2, (27, C, C), jnp.float32, -bound, bound)

    # BatchNorm3d default init: gamma = 1, beta = 0
    g1 = jnp.ones((C,), jnp.float32)
    b1 = jnp.zeros((C,), jnp.float32)
    g2 = jnp.ones((C,), jnp.float32)
    b2 = jnp.zeros((C,), jnp.float32)

    # One-time host-side fold; reused across forwards.
    params = prepare_res3d_params(w1, w2, g1, b1, g2, b2, w_size=W, channels=C)

    out = jax.block_until_ready(res3d_block(x, params))
    assert out.shape == x.shape

    ref = jax.block_until_ready(res3d_block_ref(x, w1, w2, g1, b1, g2, b2))
    max_err = float(jnp.max(jnp.abs(out - ref)))
    # Tolerance sized for bf16 MXU operands (f32 accumulation) vs f32 reference.
    assert max_err < 8e-2, f"Pallas vs f32 reference max abs err {max_err}"

    print("KERNEL_OK")
</pallas_src>

<mosaic_0001>
module attributes {stable_mosaic.version = 11 : i64} {
  func.func @_res3d_kernel(%arg0: memref<2x8x8x128xf32, #tpu.memory_space<vmem>>, %arg1: memref<1152x128xbf16, #tpu.memory_space<vmem>>, %arg2: memref<1152x128xbf16, #tpu.memory_space<vmem>>, %arg3: memref<1x128xf32, #tpu.memory_space<vmem>>, %arg4: memref<1x128xf32, #tpu.memory_space<vmem>>, %arg5: memref<1x128xf32, #tpu.memory_space<vmem>>, %arg6: memref<1x128xf32, #tpu.memory_space<vmem>>, %arg7: memref<2x8x8x128xf32, #tpu.memory_space<vmem>>, %arg8: memref<2x10x10x128xf32, #tpu.memory_space<vmem>>, %arg9: memref<128x1152xbf16, #tpu.memory_space<vmem>>) attributes {dimension_semantics = [], scalar_prefetch = 0 : i64, scratch_operands = 2 : i64, tpu.core_type = #tpu.core_type<tc>} {
    %c0 = arith.constant 0 : index
    %c0_0 = arith.constant 0 : index
    %c0_1 = arith.constant 0 : index
    %c0_2 = arith.constant 0 : index
    %0 = vector.load %arg0[%c0, %c0_0, %c0_1, %c0_2] : memref<2x8x8x128xf32, #tpu.memory_space<vmem>>, vector<2x8x8x128xf32>
    %c0_3 = arith.constant 0 : index
    %c1 = arith.constant 1 : index
    %c1_4 = arith.constant 1 : index
    %c0_5 = arith.constant 0 : index
    %1 = vector.load %arg8[%c0_3, %c1, %c1_4, %c0_5] : memref<2x10x10x128xf32, #tpu.memory_space<vmem>>, vector<2x8x8x128xf32>
    tpu.vector_store %arg8[%c0_3, %c1, %c1_4, %c0_5], %0 {strides = array<i32>} : memref<2x10x10x128xf32, #tpu.memory_space<vmem>>, vector<2x8x8x128xf32>,
    %2 = vector.extract_strided_slice %0 {offsets = [0, 0, 0, 0], sizes = [2, 8, 1, 128], strides = [1, 1, 1, 1]} : vector<2x8x8x128xf32> to vector<2x8x1x128xf32>
    %c0_6 = arith.constant 0 : index
    %c1_7 = arith.constant 1 : index
    %c0_8 = arith.constant 0 : index
    %c0_9 = arith.constant 0 : index
    %3 = vector.load %arg8[%c0_6, %c1_7, %c0_8, %c0_9] : memref<2x10x10x128xf32, #tpu.memory_space<vmem>>, vector<2x8x1x128xf32>
    tpu.vector_store %arg8[%c0_6, %c1_7, %c0_8, %c0_9], %2 {strides = array<i32>} : memref<2x10x10x128xf32, #tpu.memory_space<vmem>>, vector<2x8x1x128xf32>,
    %4 = vector.extract_strided_slice %0 {offsets = [0, 0, 7, 0], sizes = [2, 8, 1, 128], strides = [1, 1, 1, 1]} : vector<2x8x8x128xf32> to vector<2x8x1x128xf32>
    %c0_10 = arith.constant 0 : index
    %c1_11 = arith.constant 1 : index
    %c9 = arith.constant 9 : index
    %c0_12 = arith.constant 0 : index
    %5 = vector.load %arg8[%c0_10, %c1_11, %c9, %c0_12] : memref<2x10x10x128xf32, #tpu.memory_space<vmem>>, vector<2x8x1x128xf32>
    tpu.vector_store %arg8[%c0_10, %c1_11, %c9, %c0_12], %4 {strides = array<i32>} : memref<2x10x10x128xf32, #tpu.memory_space<vmem>>, vector<2x8x1x128xf32>,
    %6 = vector.extract_strided_slice %0 {offsets = [0, 0, 0, 0], sizes = [2, 1, 8, 128], strides = [1, 1, 1, 1]} : vector<2x8x8x128xf32> to vector<2x1x8x128xf32>
    %c0_13 = arith.constant 0 : index
    %c0_14 = arith.constant 0 : index
    %c1_15 = arith.constant 1 : index
    %c0_16 = arith.constant 0 : index
    %7 = vector.load %arg8[%c0_13, %c0_14, %c1_15, %c0_16] : memref<2x10x10x128xf32, #tpu.memory_space<vmem>>, vector<2x1x8x128xf32>
    tpu.vector_store %arg8[%c0_13, %c0_14, %c1_15, %c0_16], %6 {strides = array<i32>} : memref<2x10x10x128xf32, #tpu.memory_space<vmem>>, vector<2x1x8x128xf32>,
    %8 = vector.extract_strided_slice %6 {offsets = [0, 0, 0, 0], sizes = [2, 1, 1, 128], strides = [1, 1, 1, 1]} : vector<2x1x8x128xf32> to vector<2x1x1x128xf32>
    %c0_17 = arith.constant 0 : index
    %c0_18 = arith.constant 0 : index
    %c0_19 = arith.constant 0 : index
    %c0_20 = arith.constant 0 : index
    %9 = vector.load %arg8[%c0_17, %c0_18, %c0_19, %c0_20] : memref<2x10x10x128xf32, #tpu.memory_space<vmem>>, vector<2x1x1x128xf32>
    tpu.vector_store %arg8[%c0_17, %c0_18, %c0_19, %c0_20], %8 {strides = array<i32>} : memref<2x10x10x128xf32, #tpu.memory_space<vmem>>, vector<2x1x1x128xf32>,
    %10 = vector.extract_strided_slice %6 {offsets = [0, 0, 7, 0], sizes = [2, 1, 1, 128], strides = [1, 1, 1, 1]} : vector<2x1x8x128xf32> to vector<2x1x1x128xf32>
    %c0_21 = arith.constant 0 : index
    %c0_22 = arith.constant 0 : index
    %c9_23 = arith.constant 9 : index
    %c0_24 = arith.constant 0 : index
    %11 = vector.load %arg8[%c0_21, %c0_22, %c9_23, %c0_24] : memref<2x10x10x128xf32, #tpu.memory_space<vmem>>, vector<2x1x1x128xf32>
    tpu.vector_store %arg8[%c0_21, %c0_22, %c9_23, %c0_24], %10 {strides = array<i32>} : memref<2x10x10x128xf32, #tpu.memory_space<vmem>>, vector<2x1x1x128xf32>,
    %12 = vector.extract_strided_slice %0 {offsets = [0, 7, 0, 0], sizes = [2, 1, 8, 128], strides = [1, 1, 1, 1]} : vector<2x8x8x128xf32> to vector<2x1x8x128xf32>
    %c0_25 = arith.constant 0 : index
    %c9_26 = arith.constant 9 : index
    %c1_27 = arith.constant 1 : index
    %c0_28 = arith.constant 0 : index
    %13 = vector.load %arg8[%c0_25, %c9_26, %c1_27, %c0_28] : memref<2x10x10x128xf32, #tpu.memory_space<vmem>>, vector<2x1x8x128xf32>
    tpu.vector_store %arg8[%c0_25, %c9_26, %c1_27, %c0_28], %12 {strides = array<i32>} : memref<2x10x10x128xf32, #tpu.memory_space<vmem>>, vector<2x1x8x128xf32>,
    %14 = vector.extract_strided_slice %12 {offsets = [0, 0, 0, 0], sizes = [2, 1, 1, 128], strides = [1, 1, 1, 1]} : vector<2x1x8x128xf32> to vector<2x1x1x128xf32>
    %c0_29 = arith.constant 0 : index
    %c9_30 = arith.constant 9 : index
    %c0_31 = arith.constant 0 : index
    %c0_32 = arith.constant 0 : index
    %15 = vector.load %arg8[%c0_29, %c9_30, %c0_31, %c0_32] : memref<2x10x10x128xf32, #tpu.memory_space<vmem>>, vector<2x1x1x128xf32>
    tpu.vector_store %arg8[%c0_29, %c9_30, %c0_31, %c0_32], %14 {strides = array<i32>} : memref<2x10x10x128xf32, #tpu.memory_space<vmem>>, vector<2x1x1x128xf32>,
    %16 = vector.extract_strided_slice %12 {offsets = [0, 0, 7, 0], sizes = [2, 1, 1, 128], strides = [1, 1, 1, 1]} : vector<2x1x8x128xf32> to vector<2x1x1x128xf32>
    %c0_33 = arith.constant 0 : index
    %c9_34 = arith.constant 9 : index
    %c9_35 = arith.constant 9 : index
    %c0_36 = arith.constant 0 : index
    %17 = vector.load %arg8[%c0_33, %c9_34, %c9_35, %c0_36] : memref<2x10x10x128xf32, #tpu.memory_space<vmem>>, vector<2x1x1x128xf32>
    tpu.vector_store %arg8[%c0_33, %c9_34, %c9_35, %c0_36], %16 {strides = array<i32>} : memref<2x10x10x128xf32, #tpu.memory_space<vmem>>, vector<2x1x1x128xf32>,
    %c0_37 = arith.constant 0 : index
    %c0_38 = arith.constant 0 : index
    %c0_39 = arith.constant 0 : index
    %c0_40 = arith.constant 0 : index
    %18 = vector.load %arg8[%c0_37, %c0_38, %c0_39, %c0_40] : memref<2x10x10x128xf32, #tpu.memory_space<vmem>>, vector<2x10x8x128xf32>
    %19 = arith.truncf %18 : vector<2x10x8x128xf32> to vector<2x10x8x128xbf16>
    %20 = vector.extract_strided_slice %19 {offsets = [0, 0, 0, 0], sizes = [2, 8, 8, 128], strides = [1, 1, 1, 1]} : vector<2x10x8x128xbf16> to vector<2x8x8x128xbf16>
    %21 = vector.shape_cast %20 : vector<2x8x8x128xbf16> to vector<128x128xbf16>
    %c0_41 = arith.constant 0 : index
    %c0_42 = arith.constant 0 : index
    %22 = vector.load %arg9[%c0_41, %c0_42] : memref<128x1152xbf16, #tpu.memory_space<vmem>>, vector<128x128xbf16>
    tpu.vector_store %arg9[%c0_41, %c0_42], %21 {strides = array<i32>} : memref<128x1152xbf16, #tpu.memory_space<vmem>>, vector<128x128xbf16>,
    %23 = vector.extract_strided_slice %19 {offsets = [0, 1, 0, 0], sizes = [2, 8, 8, 128], strides = [1, 1, 1, 1]} : vector<2x10x8x128xbf16> to vector<2x8x8x128xbf16>
    %24 = vector.shape_cast %23 : vector<2x8x8x128xbf16> to vector<128x128xbf16>
    %c0_43 = arith.constant 0 : index
    %c128 = arith.constant 128 : index
    %25 = vector.load %arg9[%c0_43, %c128] : memref<128x1152xbf16, #tpu.memory_space<vmem>>, vector<128x128xbf16>
    tpu.vector_store %arg9[%c0_43, %c128], %24 {strides = array<i32>} : memref<128x1152xbf16, #tpu.memory_space<vmem>>, vector<128x128xbf16>,
    %26 = vector.extract_strided_slice %19 {offsets = [0, 2, 0, 0], sizes = [2, 8, 8, 128], strides = [1, 1, 1, 1]} : vector<2x10x8x128xbf16> to vector<2x8x8x128xbf16>
    %27 = vector.shape_cast %26 : vector<2x8x8x128xbf16> to vector<128x128xbf16>
    %c0_44 = arith.constant 0 : index
    %c256 = arith.constant 256 : index
    %28 = vector.load %arg9[%c0_44, %c256] : memref<128x1152xbf16, #tpu.memory_space<vmem>>, vector<128x128xbf16>
    tpu.vector_store %arg9[%c0_44, %c256], %27 {strides = array<i32>} : memref<128x1152xbf16, #tpu.memory_space<vmem>>, vector<128x128xbf16>,
    %c0_45 = arith.constant 0 : index
    %c0_46 = arith.constant 0 : index
    %c1_47 = arith.constant 1 : index
    %c0_48 = arith.constant 0 : index
    %29 = vector.load %arg8[%c0_45, %c0_46, %c1_47, %c0_48] : memref<2x10x10x128xf32, #tpu.memory_space<vmem>>, vector<2x10x8x128xf32>
    %30 = arith.truncf %29 : vector<2x10x8x128xf32> to vector<2x10x8x128xbf16>
    %31 = vector.extract_strided_slice %30 {offsets = [0, 0, 0, 0], sizes = [2, 8, 8, 128], strides = [1, 1, 1, 1]} : vector<2x10x8x128xbf16> to vector<2x8x8x128xbf16>
    %32 = vector.shape_cast %31 : vector<2x8x8x128xbf16> to vector<128x128xbf16>
    %c0_49 = arith.constant 0 : index
    %c384 = arith.constant 384 : index
    %33 = vector.load %arg9[%c0_49, %c384] : memref<128x1152xbf16, #tpu.memory_space<vmem>>, vector<128x128xbf16>
    tpu.vector_store %arg9[%c0_49, %c384], %32 {strides = array<i32>} : memref<128x1152xbf16, #tpu.memory_space<vmem>>, vector<128x128xbf16>,
    %34 = vector.extract_strided_slice %30 {offsets = [0, 1, 0, 0], sizes = [2, 8, 8, 128], strides = [1, 1, 1, 1]} : vector<2x10x8x128xbf16> to vector<2x8x8x128xbf16>
    %35 = vector.shape_cast %34 : vector<2x8x8x128xbf16> to vector<128x128xbf16>
    %c0_50 = arith.constant 0 : index
    %c512 = arith.constant 512 : index
    %36 = vector.load %arg9[%c0_50, %c512] : memref<128x1152xbf16, #tpu.memory_space<vmem>>, vector<128x128xbf16>
    tpu.vector_store %arg9[%c0_50, %c512], %35 {strides = array<i32>} : memref<128x1152xbf16, #tpu.memory_space<vmem>>, vector<128x128xbf16>,
    %37 = vector.extract_strided_slice %30 {offsets = [0, 2, 0, 0], sizes = [2, 8, 8, 128], strides = [1, 1, 1, 1]} : vector<2x10x8x128xbf16> to vector<2x8x8x128xbf16>
    %38 = vector.shape_cast %37 : vector<2x8x8x128xbf16> to vector<128x128xbf16>
    %c0_51 = arith.constant 0 : index
    %c640 = arith.constant 640 : index
    %39 = vector.load %arg9[%c0_51, %c640] : memref<128x1152xbf16, #tpu.memory_space<vmem>>, vector<128x128xbf16>
    tpu.vector_store %arg9[%c0_51, %c640], %38 {strides = array<i32>} : memref<128x1152xbf16, #tpu.memory_space<vmem>>, vector<128x128xbf16>,
    %c0_52 = arith.constant 0 : index
    %c0_53 = arith.constant 0 : index
    %c2 = arith.constant 2 : index
    %c0_54 = arith.constant 0 : index
    %40 = vector.load %arg8[%c0_52, %c0_53, %c2, %c0_54] : memref<2x10x10x128xf32, #tpu.memory_space<vmem>>, vector<2x10x8x128xf32>
    %41 = arith.truncf %40 : vector<2x10x8x128xf32> to vector<2x10x8x128xbf16>
    %42 = vector.extract_strided_slice %41 {offsets = [0, 0, 0, 0], sizes = [2, 8, 8, 128], strides = [1, 1, 1, 1]} : vector<2x10x8x128xbf16> to vector<2x8x8x128xbf16>
    %43 = vector.shape_cast %42 : vector<2x8x8x128xbf16> to vector<128x128xbf16>
    %c0_55 = arith.constant 0 : index
    %c768 = arith.constant 768 : index
    %44 = vector.load %arg9[%c0_55, %c768] : memref<128x1152xbf16, #tpu.memory_space<vmem>>, vector<128x128xbf16>
    tpu.vector_store %arg9[%c0_55, %c768], %43 {strides = array<i32>} : memref<128x1152xbf16, #tpu.memory_space<vmem>>, vector<128x128xbf16>,
    %45 = vector.extract_strided_slice %41 {offsets = [0, 1, 0, 0], sizes = [2, 8, 8, 128], strides = [1, 1, 1, 1]} : vector<2x10x8x128xbf16> to vector<2x8x8x128xbf16>
    %46 = vector.shape_cast %45 : vector<2x8x8x128xbf16> to vector<128x128xbf16>
    %c0_56 = arith.constant 0 : index
    %c896 = arith.constant 896 : index
    %47 = vector.load %arg9[%c0_56, %c896] : memref<128x1152xbf16, #tpu.memory_space<vmem>>, vector<128x128xbf16>
    tpu.vector_store %arg9[%c0_56, %c896], %46 {strides = array<i32>} : memref<128x1152xbf16, #tpu.memory_space<vmem>>, vector<128x128xbf16>,
    %48 = vector.extract_strided_slice %41 {offsets = [0, 2, 0, 0], sizes = [2, 8, 8, 128], strides = [1, 1, 1, 1]} : vector<2x10x8x128xbf16> to vector<2x8x8x128xbf16>
    %49 = vector.shape_cast %48 : vector<2x8x8x128xbf16> to vector<128x128xbf16>
    %c0_57 = arith.constant 0 : index
    %c1024 = arith.constant 1024 : index
    %50 = vector.load %arg9[%c0_57, %c1024] : memref<128x1152xbf16, #tpu.memory_space<vmem>>, vector<128x128xbf16>
    tpu.vector_store %arg9[%c0_57, %c1024], %49 {strides = array<i32>} : memref<128x1152xbf16, #tpu.memory_space<vmem>>, vector<128x128xbf16>,
    %c0_58 = arith.constant 0 : index
    %c0_59 = arith.constant 0 : index
    %51 = vector.load %arg9[%c0_58, %c0_59] : memref<128x1152xbf16, #tpu.memory_space<vmem>>, vector<128x1152xbf16>
    %c0_60 = arith.constant 0 : index
    %c0_61 = arith.constant 0 : index
    %52 = vector.load %arg1[%c0_60, %c0_61] : memref<1152x128xbf16, #tpu.memory_space<vmem>>, vector<1152x128xbf16>
    %cst = arith.constant dense<0.000000e+00> : vector<128x128xf32>
    %53 = tpu.matmul %51, %52, %cst {dimension_numbers = #tpu.dot_dimension_numbers<[1], [0], [0], [1], [0, 0, 1, 1], [], []>} : vector<128x1152xbf16>, vector<1152x128xbf16>, vector<128x128xf32> -> vector<128x128xf32>
    %c0_62 = arith.constant 0 : index
    %c0_63 = arith.constant 0 : index
    %54 = vector.load %arg3[%c0_62, %c0_63] : memref<1x128xf32, #tpu.memory_space<vmem>>, vector<1x128xf32>
    %c0_64 = arith.constant 0 : index
    %c0_65 = arith.constant 0 : index
    %55 = vector.load %arg4[%c0_64, %c0_65] : memref<1x128xf32, #tpu.memory_space<vmem>>, vector<1x128xf32>
    %cst_66 = arith.constant dense<0.000000e+00> : vector<128xf32>
    %56 = vector.multi_reduction <add>, %53, %cst_66 [0] : vector<128x128xf32> to vector<128xf32>
    %57 = vector.shape_cast %56 : vector<128xf32> to vector<1x128xf32>
    %c16_i32 = arith.constant 16 : i32
    %58 = tpu.dynamic_rotate %57 by %c16_i32 dim 1 : vector<1x128xf32>, i32 -> vector<1x128xf32>
    %59 = arith.addf %57, %58 : vector<1x128xf32>
    %c32_i32 = arith.constant 32 : i32
    %60 = tpu.dynamic_rotate %59 by %c32_i32 dim 1 : vector<1x128xf32>, i32 -> vector<1x128xf32>
    %61 = arith.addf %59, %60 : vector<1x128xf32>
    %c64_i32 = arith.constant 64 : i32
    %62 = tpu.dynamic_rotate %61 by %c64_i32 dim 1 : vector<1x128xf32>, i32 -> vector<1x128xf32>
    %63 = arith.addf %61, %62 : vector<1x128xf32>
    %cst_67 = arith.constant 9.765625E-4 : f32
    %64 = vector.broadcast %cst_67 : f32 to vector<1x128xf32>
    %65 = arith.mulf %63, %64 : vector<1x128xf32>
    %66 = vector.broadcast %65 : vector<1x128xf32> to vector<128x128xf32>
    %67 = arith.subf %53, %66 : vector<128x128xf32>
    %68 = arith.mulf %67, %67 : vector<128x128xf32>
    %cst_68 = arith.constant dense<0.000000e+00> : vector<128xf32>
    %69 = vector.multi_reduction <add>, %68, %cst_68 [0] : vector<128x128xf32> to vector<128xf32>
    %70 = vector.shape_cast %69 : vector<128xf32> to vector<1x128xf32>
    %c16_i32_69 = arith.constant 16 : i32
    %71 = tpu.dynamic_rotate %70 by %c16_i32_69 dim 1 : vector<1x128xf32>, i32 -> vector<1x128xf32>
    %72 = arith.addf %70, %71 : vector<1x128xf32>
    %c32_i32_70 = arith.constant 32 : i32
    %73 = tpu.dynamic_rotate %72 by %c32_i32_70 dim 1 : vector<1x128xf32>, i32 -> vector<1x128xf32>
    %74 = arith.addf %72, %73 : vector<1x128xf32>
    %c64_i32_71 = arith.constant 64 : i32
    %75 = tpu.dynamic_rotate %74 by %c64_i32_71 dim 1 : vector<1x128xf32>, i32 -> vector<1x128xf32>
    %76 = arith.addf %74, %75 : vector<1x128xf32>
    %cst_72 = arith.constant 9.765625E-4 : f32
    %77 = vector.broadcast %cst_72 : f32 to vector<1x128xf32>
    %78 = arith.mulf %76, %77 : vector<1x128xf32>
    %cst_73 = arith.constant 9.99999974E-6 : f32
    %79 = vector.broadcast %cst_73 : f32 to vector<1x128xf32>
    %80 = arith.addf %78, %79 : vector<1x128xf32>
    %81 = math.rsqrt %80 : vector<1x128xf32>
    %82 = arith.mulf %54, %81 : vector<1x128xf32>
    %83 = vector.broadcast %82 : vector<1x128xf32> to vector<128x128xf32>
    %84 = arith.mulf %67, %83 : vector<128x128xf32>
    %85 = vector.broadcast %55 : vector<1x128xf32> to vector<128x128xf32>
    %86 = arith.addf %84, %85 : vector<128x128xf32>
    %cst_74 = arith.constant 0.000000e+00 : f32
    %87 = vector.broadcast %cst_74 : f32 to vector<128x128xf32>
    %88 = arith.maximumf %86, %87 : vector<128x128xf32>
    %89 = vector.shape_cast %88 : vector<128x128xf32> to vector<2x8x8x128xf32>
    %c0_75 = arith.constant 0 : index
    %c1_76 = arith.constant 1 : index
    %c1_77 = arith.constant 1 : index
    %c0_78 = arith.constant 0 : index
    %90 = vector.load %arg8[%c0_75, %c1_76, %c1_77, %c0_78] : memref<2x10x10x128xf32, #tpu.memory_space<vmem>>, vector<2x8x8x128xf32>
    tpu.vector_store %arg8[%c0_75, %c1_76, %c1_77, %c0_78], %89 {strides = array<i32>} : memref<2x10x10x128xf32, #tpu.memory_space<vmem>>, vector<2x8x8x128xf32>,
    %91 = vector.extract_strided_slice %89 {offsets = [0, 0, 0, 0], sizes = [2, 8, 1, 128], strides = [1, 1, 1, 1]} : vector<2x8x8x128xf32> to vector<2x8x1x128xf32>
    %c0_79 = arith.constant 0 : index
    %c1_80 = arith.constant 1 : index
    %c0_81 = arith.constant 0 : index
    %c0_82 = arith.constant 0 : index
    %92 = vector.load %arg8[%c0_79, %c1_80, %c0_81, %c0_82] : memref<2x10x10x128xf32, #tpu.memory_space<vmem>>, vector<2x8x1x128xf32>
    tpu.vector_store %arg8[%c0_79, %c1_80, %c0_81, %c0_82], %91 {strides = array<i32>} : memref<2x10x10x128xf32, #tpu.memory_space<vmem>>, vector<2x8x1x128xf32>,
    %93 = vector.extract_strided_slice %89 {offsets = [0, 0, 7, 0], sizes = [2, 8, 1, 128], strides = [1, 1, 1, 1]} : vector<2x8x8x128xf32> to vector<2x8x1x128xf32>
    %c0_83 = arith.constant 0 : index
    %c1_84 = arith.constant 1 : index
    %c9_85 = arith.constant 9 : index
    %c0_86 = arith.constant 0 : index
    %94 = vector.load %arg8[%c0_83, %c1_84, %c9_85, %c0_86] : memref<2x10x10x128xf32, #tpu.memory_space<vmem>>, vector<2x8x1x128xf32>
    tpu.vector_store %arg8[%c0_83, %c1_84, %c9_85, %c0_86], %93 {strides = array<i32>} : memref<2x10x10x128xf32, #tpu.memory_space<vmem>>, vector<2x8x1x128xf32>,
    %95 = vector.extract_strided_slice %89 {offsets = [0, 0, 0, 0], sizes = [2, 1, 8, 128], strides = [1, 1, 1, 1]} : vector<2x8x8x128xf32> to vector<2x1x8x128xf32>
    %c0_87 = arith.constant 0 : index
    %c0_88 = arith.constant 0 : index
    %c1_89 = arith.constant 1 : index
    %c0_90 = arith.constant 0 : index
    %96 = vector.load %arg8[%c0_87, %c0_88, %c1_89, %c0_90] : memref<2x10x10x128xf32, #tpu.memory_space<vmem>>, vector<2x1x8x128xf32>
    tpu.vector_store %arg8[%c0_87, %c0_88, %c1_89, %c0_90], %95 {strides = array<i32>} : memref<2x10x10x128xf32, #tpu.memory_space<vmem>>, vector<2x1x8x128xf32>,
    %97 = vector.extract_strided_slice %95 {offsets = [0, 0, 0, 0], sizes = [2, 1, 1, 128], strides = [1, 1, 1, 1]} : vector<2x1x8x128xf32> to vector<2x1x1x128xf32>
    %c0_91 = arith.constant 0 : index
    %c0_92 = arith.constant 0 : index
    %c0_93 = arith.constant 0 : index
    %c0_94 = arith.constant 0 : index
    %98 = vector.load %arg8[%c0_91, %c0_92, %c0_93, %c0_94] : memref<2x10x10x128xf32, #tpu.memory_space<vmem>>, vector<2x1x1x128xf32>
    tpu.vector_store %arg8[%c0_91, %c0_92, %c0_93, %c0_94], %97 {strides = array<i32>} : memref<2x10x10x128xf32, #tpu.memory_space<vmem>>, vector<2x1x1x128xf32>,
    %99 = vector.extract_strided_slice %95 {offsets = [0, 0, 7, 0], sizes = [2, 1, 1, 128], strides = [1, 1, 1, 1]} : vector<2x1x8x128xf32> to vector<2x1x1x128xf32>
    %c0_95 = arith.constant 0 : index
    %c0_96 = arith.constant 0 : index
    %c9_97 = arith.constant 9 : index
    %c0_98 = arith.constant 0 : index
    %100 = vector.load %arg8[%c0_95, %c0_96, %c9_97, %c0_98] : memref<2x10x10x128xf32, #tpu.memory_space<vmem>>, vector<2x1x1x128xf32>
    tpu.vector_store %arg8[%c0_95, %c0_96, %c9_97, %c0_98], %99 {strides = array<i32>} : memref<2x10x10x128xf32, #tpu.memory_space<vmem>>, vector<2x1x1x128xf32>,
    %101 = vector.extract_strided_slice %89 {offsets = [0, 7, 0, 0], sizes = [2, 1, 8, 128], strides = [1, 1, 1, 1]} : vector<2x8x8x128xf32> to vector<2x1x8x128xf32>
    %c0_99 = arith.constant 0 : index
    %c9_100 = arith.constant 9 : index
    %c1_101 = arith.constant 1 : index
    %c0_102 = arith.constant 0 : index
    %102 = vector.load %arg8[%c0_99, %c9_100, %c1_101, %c0_102] : memref<2x10x10x128xf32, #tpu.memory_space<vmem>>, vector<2x1x8x128xf32>
    tpu.vector_store %arg8[%c0_99, %c9_100, %c1_101, %c0_102], %101 {strides = array<i32>} : memref<2x10x10x128xf32, #tpu.memory_space<vmem>>, vector<2x1x8x128xf32>,
    %103 = vector.extract_strided_slice %101 {offsets = [0, 0, 0, 0], sizes = [2, 1, 1, 128], strides = [1, 1, 1, 1]} : vector<2x1x8x128xf32> to vector<2x1x1x128xf32>
    %c0_103 = arith.constant 0 : index
    %c9_104 = arith.constant 9 : index
    %c0_105 = arith.constant 0 : index
    %c0_106 = arith.constant 0 : index
    %104 = vector.load %arg8[%c0_103, %c9_104, %c0_105, %c0_106] : memref<2x10x10x128xf32, #tpu.memory_space<vmem>>, vector<2x1x1x128xf32>
    tpu.vector_store %arg8[%c0_103, %c9_104, %c0_105, %c0_106], %103 {strides = array<i32>} : memref<2x10x10x128xf32, #tpu.memory_space<vmem>>, vector<2x1x1x128xf32>,
    %105 = vector.extract_strided_slice %101 {offsets = [0, 0, 7, 0], sizes = [2, 1, 1, 128], strides = [1, 1, 1, 1]} : vector<2x1x8x128xf32> to vector<2x1x1x128xf32>
    %c0_107 = arith.constant 0 : index
    %c9_108 = arith.constant 9 : index
    %c9_109 = arith.constant 9 : index
    %c0_110 = arith.constant 0 : index
    %106 = vector.load %arg8[%c0_107, %c9_108, %c9_109, %c0_110] : memref<2x10x10x128xf32, #tpu.memory_space<vmem>>, vector<2x1x1x128xf32>
    tpu.vector_store %arg8[%c0_107, %c9_108, %c9_109, %c0_110], %105 {strides = array<i32>} : memref<2x10x10x128xf32, #tpu.memory_space<vmem>>, vector<2x1x1x128xf32>,
    %c0_111 = arith.constant 0 : index
    %c0_112 = arith.constant 0 : index
    %c0_113 = arith.constant 0 : index
    %c0_114 = arith.constant 0 : index
    %107 = vector.load %arg8[%c0_111, %c0_112, %c0_113, %c0_114] : memref<2x10x10x128xf32, #tpu.memory_space<vmem>>, vector<2x10x8x128xf32>
    %108 = arith.truncf %107 : vector<2x10x8x128xf32> to vector<2x10x8x128xbf16>
    %109 = vector.extract_strided_slice %108 {offsets = [0, 0, 0, 0], sizes = [2, 8, 8, 128], strides = [1, 1, 1, 1]} : vector<2x10x8x128xbf16> to vector<2x8x8x128xbf16>
    %110 = vector.shape_cast %109 : vector<2x8x8x128xbf16> to vector<128x128xbf16>
    %c0_115 = arith.constant 0 : index
    %c0_116 = arith.constant 0 : index
    %111 = vector.load %arg9[%c0_115, %c0_116] : memref<128x1152xbf16, #tpu.memory_space<vmem>>, vector<128x128xbf16>
    tpu.vector_store %arg9[%c0_115, %c0_116], %110 {strides = array<i32>} : memref<128x1152xbf16, #tpu.memory_space<vmem>>, vector<128x128xbf16>,
    %112 = vector.extract_strided_slice %108 {offsets = [0, 1, 0, 0], sizes = [2, 8, 8, 128], strides = [1, 1, 1, 1]} : vector<2x10x8x128xbf16> to vector<2x8x8x128xbf16>
    %113 = vector.shape_cast %112 : vector<2x8x8x128xbf16> to vector<128x128xbf16>
    %c0_117 = arith.constant 0 : index
    %c128_118 = arith.constant 128 : index
    %114 = vector.load %arg9[%c0_117, %c128_118] : memref<128x1152xbf16, #tpu.memory_space<vmem>>, vector<128x128xbf16>
    tpu.vector_store %arg9[%c0_117, %c128_118], %113 {strides = array<i32>} : memref<128x1152xbf16, #tpu.memory_space<vmem>>, vector<128x128xbf16>,
    %115 = vector.extract_strided_slice %108 {offsets = [0, 2, 0, 0], sizes = [2, 8, 8, 128], strides = [1, 1, 1, 1]} : vector<2x10x8x128xbf16> to vector<2x8x8x128xbf16>
    %116 = vector.shape_cast %115 : vector<2x8x8x128xbf16> to vector<128x128xbf16>
    %c0_119 = arith.constant 0 : index
    %c256_120 = arith.constant 256 : index
    %117 = vector.load %arg9[%c0_119, %c256_120] : memref<128x1152xbf16, #tpu.memory_space<vmem>>, vector<128x128xbf16>
    tpu.vector_store %arg9[%c0_119, %c256_120], %116 {strides = array<i32>} : memref<128x1152xbf16, #tpu.memory_space<vmem>>, vector<128x128xbf16>,
    %c0_121 = arith.constant 0 : index
    %c0_122 = arith.constant 0 : index
    %c1_123 = arith.constant 1 : index
    %c0_124 = arith.constant 0 : index
    %118 = vector.load %arg8[%c0_121, %c0_122, %c1_123, %c0_124] : memref<2x10x10x128xf32, #tpu.memory_space<vmem>>, vector<2x10x8x128xf32>
    %119 = arith.truncf %118 : vector<2x10x8x128xf32> to vector<2x10x8x128xbf16>
    %120 = vector.extract_strided_slice %119 {offsets = [0, 0, 0, 0], sizes = [2, 8, 8, 128], strides = [1, 1, 1, 1]} : vector<2x10x8x128xbf16> to vector<2x8x8x128xbf16>
    %121 = vector.shape_cast %120 : vector<2x8x8x128xbf16> to vector<128x128xbf16>
    %c0_125 = arith.constant 0 : index
    %c384_126 = arith.constant 384 : index
    %122 = vector.load %arg9[%c0_125, %c384_126] : memref<128x1152xbf16, #tpu.memory_space<vmem>>, vector<128x128xbf16>
    tpu.vector_store %arg9[%c0_125, %c384_126], %121 {strides = array<i32>} : memref<128x1152xbf16, #tpu.memory_space<vmem>>, vector<128x128xbf16>,
    %123 = vector.extract_strided_slice %119 {offsets = [0, 1, 0, 0], sizes = [2, 8, 8, 128], strides = [1, 1, 1, 1]} : vector<2x10x8x128xbf16> to vector<2x8x8x128xbf16>
    %124 = vector.shape_cast %123 : vector<2x8x8x128xbf16> to vector<128x128xbf16>
    %c0_127 = arith.constant 0 : index
    %c512_128 = arith.constant 512 : index
    %125 = vector.load %arg9[%c0_127, %c512_128] : memref<128x1152xbf16, #tpu.memory_space<vmem>>, vector<128x128xbf16>
    tpu.vector_store %arg9[%c0_127, %c512_128], %124 {strides = array<i32>} : memref<128x1152xbf16, #tpu.memory_space<vmem>>, vector<128x128xbf16>,
    %126 = vector.extract_strided_slice %119 {offsets = [0, 2, 0, 0], sizes = [2, 8, 8, 128], strides = [1, 1, 1, 1]} : vector<2x10x8x128xbf16> to vector<2x8x8x128xbf16>
    %127 = vector.shape_cast %126 : vector<2x8x8x128xbf16> to vector<128x128xbf16>
    %c0_129 = arith.constant 0 : index
    %c640_130 = arith.constant 640 : index
    %128 = vector.load %arg9[%c0_129, %c640_130] : memref<128x1152xbf16, #tpu.memory_space<vmem>>, vector<128x128xbf16>
    tpu.vector_store %arg9[%c0_129, %c640_130], %127 {strides = array<i32>} : memref<128x1152xbf16, #tpu.memory_space<vmem>>, vector<128x128xbf16>,
    %c0_131 = arith.constant 0 : index
    %c0_132 = arith.constant 0 : index
    %c2_133 = arith.constant 2 : index
    %c0_134 = arith.constant 0 : index
    %129 = vector.load %arg8[%c0_131, %c0_132, %c2_133, %c0_134] : memref<2x10x10x128xf32, #tpu.memory_space<vmem>>, vector<2x10x8x128xf32>
    %130 = arith.truncf %129 : vector<2x10x8x128xf32> to vector<2x10x8x128xbf16>
    %131 = vector.extract_strided_slice %130 {offsets = [0, 0, 0, 0], sizes = [2, 8, 8, 128], strides = [1, 1, 1, 1]} : vector<2x10x8x128xbf16> to vector<2x8x8x128xbf16>
    %132 = vector.shape_cast %131 : vector<2x8x8x128xbf16> to vector<128x128xbf16>
    %c0_135 = arith.constant 0 : index
    %c768_136 = arith.constant 768 : index
    %133 = vector.load %arg9[%c0_135, %c768_136] : memref<128x1152xbf16, #tpu.memory_space<vmem>>, vector<128x128xbf16>
    tpu.vector_store %arg9[%c0_135, %c768_136], %132 {strides = array<i32>} : memref<128x1152xbf16, #tpu.memory_space<vmem>>, vector<128x128xbf16>,
    %134 = vector.extract_strided_slice %130 {offsets = [0, 1, 0, 0], sizes = [2, 8, 8, 128], strides = [1, 1, 1, 1]} : vector<2x10x8x128xbf16> to vector<2x8x8x128xbf16>
    %135 = vector.shape_cast %134 : vector<2x8x8x128xbf16> to vector<128x128xbf16>
    %c0_137 = arith.constant 0 : index
    %c896_138 = arith.constant 896 : index
    %136 = vector.load %arg9[%c0_137, %c896_138] : memref<128x1152xbf16, #tpu.memory_space<vmem>>, vector<128x128xbf16>
    tpu.vector_store %arg9[%c0_137, %c896_138], %135 {strides = array<i32>} : memref<128x1152xbf16, #tpu.memory_space<vmem>>, vector<128x128xbf16>,
    %137 = vector.extract_strided_slice %130 {offsets = [0, 2, 0, 0], sizes = [2, 8, 8, 128], strides = [1, 1, 1, 1]} : vector<2x10x8x128xbf16> to vector<2x8x8x128xbf16>
    %138 = vector.shape_cast %137 : vector<2x8x8x128xbf16> to vector<128x128xbf16>
    %c0_139 = arith.constant 0 : index
    %c1024_140 = arith.constant 1024 : index
    %139 = vector.load %arg9[%c0_139, %c1024_140] : memref<128x1152xbf16, #tpu.memory_space<vmem>>, vector<128x128xbf16>
    tpu.vector_store %arg9[%c0_139, %c1024_140], %138 {strides = array<i32>} : memref<128x1152xbf16, #tpu.memory_space<vmem>>, vector<128x128xbf16>,
    %c0_141 = arith.constant 0 : index
    %c0_142 = arith.constant 0 : index
    %140 = vector.load %arg9[%c0_141, %c0_142] : memref<128x1152xbf16, #tpu.memory_space<vmem>>, vector<128x1152xbf16>
    %c0_143 = arith.constant 0 : index
    %c0_144 = arith.constant 0 : index
    %141 = vector.load %arg2[%c0_143, %c0_144] : memref<1152x128xbf16, #tpu.memory_space<vmem>>, vector<1152x128xbf16>
    %cst_145 = arith.constant dense<0.000000e+00> : vector<128x128xf32>
    %142 = tpu.matmul %140, %141, %cst_145 {dimension_numbers = #tpu.dot_dimension_numbers<[1], [0], [0], [1], [0, 0, 1, 1], [], []>} : vector<128x1152xbf16>, vector<1152x128xbf16>, vector<128x128xf32> -> vector<128x128xf32>
    %c0_146 = arith.constant 0 : index
    %c0_147 = arith.constant 0 : index
    %143 = vector.load %arg5[%c0_146, %c0_147] : memref<1x128xf32, #tpu.memory_space<vmem>>, vector<1x128xf32>
    %c0_148 = arith.constant 0 : index
    %c0_149 = arith.constant 0 : index
    %144 = vector.load %arg6[%c0_148, %c0_149] : memref<1x128xf32, #tpu.memory_space<vmem>>, vector<1x128xf32>
    %cst_150 = arith.constant dense<0.000000e+00> : vector<128xf32>
    %145 = vector.multi_reduction <add>, %142, %cst_150 [0] : vector<128x128xf32> to vector<128xf32>
    %146 = vector.shape_cast %145 : vector<128xf32> to vector<1x128xf32>
    %c16_i32_151 = arith.constant 16 : i32
    %147 = tpu.dynamic_rotate %146 by %c16_i32_151 dim 1 : vector<1x128xf32>, i32 -> vector<1x128xf32>
    %148 = arith.addf %146, %147 : vector<1x128xf32>
    %c32_i32_152 = arith.constant 32 : i32
    %149 = tpu.dynamic_rotate %148 by %c32_i32_152 dim 1 : vector<1x128xf32>, i32 -> vector<1x128xf32>
    %150 = arith.addf %148, %149 : vector<1x128xf32>
    %c64_i32_153 = arith.constant 64 : i32
    %151 = tpu.dynamic_rotate %150 by %c64_i32_153 dim 1 : vector<1x128xf32>, i32 -> vector<1x128xf32>
    %152 = arith.addf %150, %151 : vector<1x128xf32>
    %cst_154 = arith.constant 9.765625E-4 : f32
    %153 = vector.broadcast %cst_154 : f32 to vector<1x128xf32>
    %154 = arith.mulf %152, %153 : vector<1x128xf32>
    %155 = vector.broadcast %154 : vector<1x128xf32> to vector<128x128xf32>
    %156 = arith.subf %142, %155 : vector<128x128xf32>
    %157 = arith.mulf %156, %156 : vector<128x128xf32>
    %cst_155 = arith.constant dense<0.000000e+00> : vector<128xf32>
    %158 = vector.multi_reduction <add>, %157, %cst_155 [0] : vector<128x128xf32> to vector<128xf32>
    %159 = vector.shape_cast %158 : vector<128xf32> to vector<1x128xf32>
    %c16_i32_156 = arith.constant 16 : i32
    %160 = tpu.dynamic_rotate %159 by %c16_i32_156 dim 1 : vector<1x128xf32>, i32 -> vector<1x128xf32>
    %161 = arith.addf %159, %160 : vector<1x128xf32>
    %c32_i32_157 = arith.constant 32 : i32
    %162 = tpu.dynamic_rotate %161 by %c32_i32_157 dim 1 : vector<1x128xf32>, i32 -> vector<1x128xf32>
    %163 = arith.addf %161, %162 : vector<1x128xf32>
    %c64_i32_158 = arith.constant 64 : i32
    %164 = tpu.dynamic_rotate %163 by %c64_i32_158 dim 1 : vector<1x128xf32>, i32 -> vector<1x128xf32>
    %165 = arith.addf %163, %164 : vector<1x128xf32>
    %cst_159 = arith.constant 9.765625E-4 : f32
    %166 = vector.broadcast %cst_159 : f32 to vector<1x128xf32>
    %167 = arith.mulf %165, %166 : vector<1x128xf32>
    %cst_160 = arith.constant 9.99999974E-6 : f32
    %168 = vector.broadcast %cst_160 : f32 to vector<1x128xf32>
    %169 = arith.addf %167, %168 : vector<1x128xf32>
    %170 = math.rsqrt %169 : vector<1x128xf32>
    %171 = arith.mulf %143, %170 : vector<1x128xf32>
    %172 = vector.broadcast %171 : vector<1x128xf32> to vector<128x128xf32>
    %173 = arith.mulf %156, %172 : vector<128x128xf32>
    %174 = vector.broadcast %144 : vector<1x128xf32> to vector<128x128xf32>
    %175 = arith.addf %173, %174 : vector<128x128xf32>
    %176 = vector.shape_cast %175 : vector<128x128xf32> to vector<2x8x8x128xf32>
    %177 = arith.addf %0, %176 : vector<2x8x8x128xf32>
    %c0_161 = arith.constant 0 : index
    %c0_162 = arith.constant 0 : index
    %c0_163 = arith.constant 0 : index
    %c0_164 = arith.constant 0 : index
    %178 = vector.load %arg7[%c0_161, %c0_162, %c0_163, %c0_164] : memref<2x8x8x128xf32, #tpu.memory_space<vmem>>, vector<2x8x8x128xf32>
    tpu.vector_store %arg7[%c0_161, %c0_162, %c0_163, %c0_164], %177 {strides = array<i32>} : memref<2x8x8x128xf32, #tpu.memory_space<vmem>>, vector<2x8x8x128xf32>,
    return
  }
}

</mosaic_0001>

<llo_original>
// kernel: res3d_block_folded.1
$region0: #{res3d_block_folded.1}
  #allocation0 [shape = 'u32[]', space=smem, size = 0x4, offset = 0x4, fixed_abs, tag = 'smem constant byte address 0x4 - core index']
  #allocation1 [shape = 'u32[144,128]{1,0:T(1,128)}', space=vmem, size = 0x12000, scoped, tag = 'internal scratch']
  #allocation2 [shape = 'f32[2,10,10,128]{3,2,1,0:T(8,128)}', space=vmem, size = 0x28000, scoped, tag = 'scratch operand']
  #allocation3 [shape = 'bf16[128,1152]{1,0:T(8,128)(2,1)}', space=vmem, size = 0x48000, scoped, tag = 'scratch operand']
  %s0 = inlined_call_operand.hbm [shape: f32[2,8,8,128], index: 0, kind: input, shape index: {}]
  %s1 = inlined_call_operand.hbm [shape: bf16[1152,128], index: 1, kind: input, shape index: {}]
  %s2 = inlined_call_operand.hbm [shape: bf16[1152,128], index: 2, kind: input, shape index: {}]
  %s3 = inlined_call_operand.vmem [shape: f32[1,128], index: 3, kind: input, shape index: {}]
  %s4 = inlined_call_operand.hbm [shape: f32[1,128], index: 4, kind: input, shape index: {}]
  %s5 = inlined_call_operand.vmem [shape: f32[1,128], index: 5, kind: input, shape index: {}]
  %s6 = inlined_call_operand.vmem [shape: f32[1,128], index: 6, kind: input, shape index: {}]
  %s7 = inlined_call_operand.hbm [shape: f32[2,8,8,128], index: 7, kind: output, shape index: {}]
  %s8 = sld [smem:[#allocation0]]
  $region54: #{res3d_block_folded.1} parent=0
    _
  %s10 = ssub.s32 1, %s8
  %s11 = scalar_select 0, %s10, %s8
  $region1: #{res3d_block_folded.1} parent=0
    #allocation4 [shape = 'u8[65536]{0}', space=vmem, size = 0x10000, scoped, tag = 'input window, operand 0, single buffered']
    #allocation5 [shape = 's32[1]{0}', space=sflag, size = 0x4, scoped, tag = 'scoped memory for res3d_block_folded.1']
    #allocation6 [shape = 's32[1]{0}', space=sflag, size = 0x4, scoped, tag = 'scoped memory for res3d_block_folded.1']
    #allocation7 [shape = 'u8[294912]{0}', space=vmem, size = 0x48000, scoped, tag = 'input window, operand 1, single buffered']
    #allocation8 [shape = 's32[1]{0}', space=sflag, size = 0x4, scoped, tag = 'scoped memory for res3d_block_folded.1']
    #allocation9 [shape = 'u8[294912]{0}', space=vmem, size = 0x48000, scoped, tag = 'input window, operand 2, single buffered']
    #allocation10 [shape = 'u8[512]{0}', space=vmem, size = 0x400, scoped, tag = 'input window, operand 4, single buffered']
    #allocation11 [shape = 's32[1]{0}', space=sflag, size = 0x4, scoped, tag = 'scoped memory for res3d_block_folded.1']
    #allocation12 [shape = 'u8[65536]{0}', space=vmem, size = 0x10000, scoped, tag = 'output window, operand 0, single buffered']
    %12 = vsyncpa [#allocation5], 0
    %13 = vsyncpa [#allocation8], 0
    %14 = vsyncpa [#allocation11], 0
    %15 = vsyncpa [#allocation6], 0
    // Predicated region
    $region2: #{res3d_block_folded.1} parent=1 // pred_check
      _
    $region3: #{res3d_block_folded.1} parent=1 // pred_check_branch
      %17 = sbr.rel (0) target = $region5
    $region4: #{res3d_block_folded.1} parent=1 // pred_region
      %s19 = ssub.s32 2048, 2048
      %20 = vsyncadd [#allocation5], %s19
      %s21 = sshll.u32 [#allocation4], 4
      %s22 = int_to_ptr.vmem [resolvable:$true] %s21
      %27 = dma.hbm_to_vmem [thread:$0]  %s0, 2048, %s22, [#allocation5], 128, 128, 8
    $region5: #{res3d_block_folded.1} parent=1 // pred_fallthru
      _
    // Predicated region
    $region6: #{res3d_block_folded.1} parent=1 // pred_check
      _
    $region7: #{res3d_block_folded.1} parent=1 // pred_check_branch
      %29 = sbr.rel (0) target = $region9
    $region8: #{res3d_block_folded.1} parent=1 // pred_region
      %s31 = ssub.s32 9216, 9216
      %32 = vsyncadd [#allocation8], %s31
      %s33 = sshll.u32 [#allocation7], 4
      %s34 = int_to_ptr.vmem [resolvable:$true] %s33
      %39 = dma.hbm_to_vmem [thread:$0]  %s1, 9216, %s34, [#allocation8], 64, 64, 4
    $region9: #{res3d_block_folded.1} parent=1 // pred_fallthru
      _
    // Predicated region
    $region10: #{res3d_block_folded.1} parent=1 // pred_check
      _
    $region11: #{res3d_block_folded.1} parent=1 // pred_check_branch
      %41 = sbr.rel (0) target = $region13
    $region12: #{res3d_block_folded.1} parent=1 // pred_region
      %s43 = ssub.s32 9216, 9216
      %44 = vsyncadd [#allocation8], %s43
      %s45 = sshll.u32 [#allocation9], 4
      %s46 = int_to_ptr.vmem [resolvable:$true] %s45
      %51 = dma.hbm_to_vmem [thread:$0]  %s2, 9216, %s46, [#allocation8], 64, 64, 4
    $region13: #{res3d_block_folded.1} parent=1 // pred_fallthru
      _
    // Predicated region
    $region14: #{res3d_block_folded.1} parent=1 // pred_check
      _
    $region15: #{res3d_block_folded.1} parent=1 // pred_check_branch
      %53 = sbr.rel (0) target = $region17
    $region16: #{res3d_block_folded.1} parent=1 // pred_region
      _
    $region17: #{res3d_block_folded.1} parent=1 // pred_fallthru
      _
    // Predicated region
    $region18: #{res3d_block_folded.1} parent=1 // pred_check
      _
    $region19: #{res3d_block_folded.1} parent=1 // pred_check_branch
      %55 = sbr.rel (0) target = $region21
    $region20: #{res3d_block_folded.1} parent=1 // pred_region
      %s57 = ssub.s32 16, 16
      %58 = vsyncadd [#allocation11], %s57
      %s60 = sshll.u32 [#allocation10], 4
      %s61 = int_to_ptr.vmem [resolvable:$true] %s60
      %63 = dma.hbm_to_vmem [thread:$0]  %s4, 16, %s61, [#allocation11]
    $region21: #{res3d_block_folded.1} parent=1 // pred_fallthru
      _
    // Predicated region
    $region22: #{res3d_block_folded.1} parent=1 // pred_check
      _
    $region23: #{res3d_block_folded.1} parent=1 // pred_check_branch
      %65 = sbr.rel (0) target = $region25
    $region24: #{res3d_block_folded.1} parent=1 // pred_region
      _
    $region25: #{res3d_block_folded.1} parent=1 // pred_fallthru
      _
    // Predicated region
    $region26: #{res3d_block_folded.1} parent=1 // pred_check
      _
    $region27: #{res3d_block_folded.1} parent=1 // pred_check_branch
      %67 = sbr.rel (0) target = $region29
    $region28: #{res3d_block_folded.1} parent=1 // pred_region
      _
    $region29: #{res3d_block_folded.1} parent=1 // pred_fallthru
      _
    // Predicated region
    $region30: #{res3d_block_folded.1} parent=1 // pred_check
      _
    $region31: #{res3d_block_folded.1} parent=1 // pred_check_branch
      %69 = sbr.rel (0) target = $region33
    $region32: #{res3d_block_folded.1} parent=1 // pred_region
      %70 = dma.done [#allocation5], 2048
    $region33: #{res3d_block_folded.1} parent=1 // pred_fallthru
      _
    // Predicated region
    $region34: #{res3d_block_folded.1} parent=1 // pred_check
      _
    $region35: #{res3d_block_folded.1} parent=1 // pred_check_branch
      %72 = sbr.rel (0) target = $region37
    $region36: #{res3d_block_folded.1} parent=1 // pred_region
      %73 = dma.done [#allocation8], 9216
    $region37: #{res3d_block_folded.1} parent=1 // pred_fallthru
      _
    // Predicated region
    $region38: #{res3d_block_folded.1} parent=1 // pred_check
      _
    $region39: #{res3d_block_folded.1} parent=1 // pred_check_branch
      %75 = sbr.rel (0) target = $region41
    $region40: #{res3d_block_folded.1} parent=1 // pred_region
      %76 = dma.done [#allocation8], 9216
    $region41: #{res3d_block_folded.1} parent=1 // pred_fallthru
      _
    // Predicated region
    $region42: #{res3d_block_folded.1} parent=1 // pred_check
      _
    $region43: #{res3d_block_folded.1} parent=1 // pred_check_branch
      %78 = sbr.rel (0) target = $region45
    $region44: #{res3d_block_folded.1} parent=1 // pred_region
      %79 = dma.done [#allocation11], 16
    $region45: #{res3d_block_folded.1} parent=1 // pred_fallthru
      _
    %v81 = vld [vmem:[#allocation4] sm:$0xff]
    %v82 = vld [vmem:[#allocation4 + $0x8] sm:$0xff]
    %v83 = vld [vmem:[#allocation4 + $0x10] sm:$0xff]
    %v84 = vld [vmem:[#allocation4 + $0x18] sm:$0xff]
    %v85 = vld [vmem:[#allocation4 + $0x20] sm:$0xff]
    %v86 = vld [vmem:[#allocation4 + $0x28] sm:$0xff]
    %v87 = vld [vmem:[#allocation4 + $0x30] sm:$0xff]
    %v88 = vld [vmem:[#allocation4 + $0x38] sm:$0xff]
    %v89 = vld [vmem:[#allocation4 + $0x40] sm:$0xff]
    %v90 = vld [vmem:[#allocation4 + $0x48] sm:$0xff]
    %v91 = vld [vmem:[#allocation4 + $0x50] sm:$0xff]
    %v92 = vld [vmem:[#allocation4 + $0x58] sm:$0xff]
    %v93 = vld [vmem:[#allocation4 + $0x60] sm:$0xff]
    %v94 = vld [vmem:[#allocation4 + $0x68] sm:$0xff]
    %v95 = vld [vmem:[#allocation4 + $0x70] sm:$0xff]
    %v96 = vld [vmem:[#allocation4 + $0x78] sm:$0xff]
    %s97 = scalar_lea.vmem [#allocation2], 16
    %98 = vst [vmem:[%s97 + $0x1] sm:$0xff] %v81
    %99 = vst [vmem:[%s97 + $0x11] sm:$0xff] %v82
    %100 = vst [vmem:[%s97 + $0x21] sm:$0xff] %v83
    %101 = vst [vmem:[%s97 + $0x31] sm:$0xff] %v84
    %102 = vst [vmem:[%s97 + $0x41] sm:$0xff] %v85
    %103 = vst [vmem:[%s97 + $0x51] sm:$0xff] %v86
    %104 = vst [vmem:[%s97 + $0x61] sm:$0xff] %v87
    %105 = vst [vmem:[%s97 + $0x71] sm:$0xff] %v88
    %106 = vst [vmem:[%s97 + $0xa1] sm:$0xff] %v89
    %107 = vst [vmem:[%s97 + $0xb1] sm:$0xff] %v90
    %108 = vst [vmem:[%s97 + $0xc1] sm:$0xff] %v91
    %109 = vst [vmem:[%s97 + $0xd1] sm:$0xff] %v92
    %110 = vst [vmem:[%s97 + $0xe1] sm:$0xff] %v93
    %111 = vst [vmem:[%s97 + $0xf1] sm:$0xff] %v94
    %112 = vst [vmem:[%s97 + $0x101] sm:$0xff] %v95
    %113 = vst [vmem:[%s97 + $0x111] sm:$0xff] %v96
    %114 = vst [vmem:[%s97] sm:$0x1] %v81
    %115 = vst [vmem:[%s97 + $0x10] sm:$0x1] %v82
    %116 = vst [vmem:[%s97 + $0x20] sm:$0x1] %v83
    %117 = vst [vmem:[%s97 + $0x30] sm:$0x1] %v84
    %118 = vst [vmem:[%s97 + $0x40] sm:$0x1] %v85
    %119 = vst [vmem:[%s97 + $0x50] sm:$0x1] %v86
    %120 = vst [vmem:[%s97 + $0x60] sm:$0x1] %v87
    %121 = vst [vmem:[%s97 + $0x70] sm:$0x1] %v88
    %122 = vst [vmem:[%s97 + $0xa0] sm:$0x1] %v89
    %123 = vst [vmem:[%s97 + $0xb0] sm:$0x1] %v90
    %124 = vst [vmem:[%s97 + $0xc0] sm:$0x1] %v91
    %125 = vst [vmem:[%s97 + $0xd0] sm:$0x1] %v92
    %126 = vst [vmem:[%s97 + $0xe0] sm:$0x1] %v93
    %127 = vst [vmem:[%s97 + $0xf0] sm:$0x1] %v94
    %128 = vst [vmem:[%s97 + $0x100] sm:$0x1] %v95
    %129 = vst [vmem:[%s97 + $0x110] sm:$0x1] %v96
    %130 = vst [vmem:[%s97 + $0x2] sm:$0x80] %v81
    %131 = vst [vmem:[%s97 + $0x12] sm:$0x80] %v82
    %132 = vst [vmem:[%s97 + $0x22] sm:$0x80] %v83
    %133 = vst [vmem:[%s97 + $0x32] sm:$0x80] %v84
    %134 = vst [vmem:[%s97 + $0x42] sm:$0x80] %v85
    %135 = vst [vmem:[%s97 + $0x52] sm:$0x80] %v86
    %136 = vst [vmem:[%s97 + $0x62] sm:$0x80] %v87
    %137 = vst [vmem:[%s97 + $0x72] sm:$0x80] %v88
    %138 = vst [vmem:[%s97 + $0xa2] sm:$0x80] %v89
    %139 = vst [vmem:[%s97 + $0xb2] sm:$0x80] %v90
    %140 = vst [vmem:[%s97 + $0xc2] sm:$0x80] %v91
    %141 = vst [vmem:[%s97 + $0xd2] sm:$0x80] %v92
    %142 = vst [vmem:[%s97 + $0xe2] sm:$0x80] %v93
    %143 = vst [vmem:[%s97 + $0xf2] sm:$0x80] %v94
    %144 = vst [vmem:[%s97 + $0x102] sm:$0x80] %v95
    %145 = vst [vmem:[%s97 + $0x112] sm:$0x80] %v96
    %146 = vst [vmem:[#allocation2 + $0x1] sm:$0xff] %v81
    %147 = vst [vmem:[#allocation2 + $0xa1] sm:$0xff] %v89
    %148 = vst [vmem:[#allocation2] sm:$0x1] %v81
    %149 = vst [vmem:[#allocation2 + $0xa0] sm:$0x1] %v89
    %150 = vst [vmem:[#allocation2 + $0x2] sm:$0x80] %v81
    %151 = vst [vmem:[#allocation2 + $0xa2] sm:$0x80] %v89
    %s152 = scalar_lea.vmem [#allocation2], 144
    %153 = vst [vmem:[%s152 + $0x1] sm:$0xff] %v88
    %154 = vst [vmem:[%s152 + $0xa1] sm:$0xff] %v96
    %155 = vst [vmem:[%s152] sm:$0x1] %v88
    %156 = vst [vmem:[%s152 + $0xa0] sm:$0x1] %v96
    %157 = vst [vmem:[%s152 + $0x2] sm:$0x80] %v88
    %158 = vst [vmem:[%s152 + $0xa2] sm:$0x80] %v96
    %v159 = vld [vmem:[#allocation2] sm:$0xff]
    %v160 = vld [vmem:[#allocation2 + $0x10] sm:$0xff]
    %v161 = vld [vmem:[#allocation2 + $0x20] sm:$0xff]
    %v162 = vld [vmem:[#allocation2 + $0x30] sm:$0xff]
    %v163 = vld [vmem:[#allocation2 + $0x40] sm:$0xff]
    %v164 = vld [vmem:[#allocation2 + $0x50] sm:$0xff]
    %v165 = vld [vmem:[#allocation2 + $0x60] sm:$0xff]
    %v166 = vld [vmem:[#allocation2 + $0x70] sm:$0xff]
    %v167 = vld [vmem:[#allocation2 + $0x80] sm:$0xff]
    %v168 = vld [vmem:[#allocation2 + $0x90] sm:$0xff]
    %v169 = vld [vmem:[#allocation2 + $0xa0] sm:$0xff]
    %v170 = vld [vmem:[#allocation2 + $0xb0] sm:$0xff]
    %v171 = vld [vmem:[#allocation2 + $0xc0] sm:$0xff]
    %v172 = vld [vmem:[#allocation2 + $0xd0] sm:$0xff]
    %v173 = vld [vmem:[#allocation2 + $0xe0] sm:$0xff]
    %v174 = vld [vmem:[#allocation2 + $0xf0] sm:$0xff]
    %v175 = vld [vmem:[#allocation2 + $0x100] sm:$0xff]
    %v176 = vld [vmem:[#allocation2 + $0x110] sm:$0xff]
    %v177 = vld [vmem:[#allocation2 + $0x120] sm:$0xff]
    %v178 = vld [vmem:[#allocation2 + $0x130] sm:$0xff]
    %v179 = vpack.c.bf16 %v159, %v159
    %v180 = vpack.c.bf16 %v160, %v160
    %v181 = vpack.c.bf16 %v161, %v161
    %v182 = vpack.c.bf16 %v162, %v162
    %v183 = vpack.c.bf16 %v163, %v163
    %v184 = vpack.c.bf16 %v164, %v164
    %v185 = vpack.c.bf16 %v165, %v165
    %v186 = vpack.c.bf16 %v166, %v166
    %v187 = vpack.c.bf16 %v167, %v167
    %v188 = vpack.c.bf16 %v168, %v168
    %v189 = vpack.c.bf16 %v169, %v169
    %v190 = vpack.c.bf16 %v170, %v170
    %v191 = vpack.c.bf16 %v171, %v171
    %v192 = vpack.c.bf16 %v172, %v172
    %v193 = vpack.c.bf16 %v173, %v173
    %v194 = vpack.c.bf16 %v174, %v174
    %v195 = vpack.c.bf16 %v175, %v175
    %v196 = vpack.c.bf16 %v176, %v176
    %v197 = vpack.c.bf16 %v177, %v177
    %v198 = vpack.c.bf16 %v178, %v178
    %199 = vst [vmem:[#allocation3] sm:$0xf] %v179
    %200 = vst [vmem:[#allocation3 + $0x24] sm:$0xf] %v180
    %201 = vst [vmem:[#allocation3 + $0x48] sm:$0xf] %v181
    %202 = vst [vmem:[#allocation3 + $0x6c] sm:$0xf] %v182
    %203 = vst [vmem:[#allocation3 + $0x90] sm:$0xf] %v183
    %204 = vst [vmem:[#allocation3 + $0xb4] sm:$0xf] %v184
    %205 = vst [vmem:[#allocation3 + $0xd8] sm:$0xf] %v185
    %206 = vst [vmem:[#allocation3 + $0xfc] sm:$0xf] %v186
    %207 = vst [vmem:[#allocation3 + $0x120] sm:$0xf] %v189
    %208 = vst [vmem:[#allocation3 + $0x144] sm:$0xf] %v190
    %209 = vst [vmem:[#allocation3 + $0x168] sm:$0xf] %v191
    %210 = vst [vmem:[#allocation3 + $0x18c] sm:$0xf] %v192
    %211 = vst [vmem:[#allocation3 + $0x1b0] sm:$0xf] %v193
    %212 = vst [vmem:[#allocation3 + $0x1d4] sm:$0xf] %v194
    %213 = vst [vmem:[#allocation3 + $0x1f8] sm:$0xf] %v195
    %214 = vst [vmem:[#allocation3 + $0x21c] sm:$0xf] %v196
    %215 = vst [vmem:[#allocation3 + $0x4] sm:$0xf] %v180
    %216 = vst [vmem:[#allocation3 + $0x28] sm:$0xf] %v181
    %217 = vst [vmem:[#allocation3 + $0x4c] sm:$0xf] %v182
    %218 = vst [vmem:[#allocation3 + $0x70] sm:$0xf] %v183
    %219 = vst [vmem:[#allocation3 + $0x94] sm:$0xf] %v184
    %220 = vst [vmem:[#allocation3 + $0xb8] sm:$0xf] %v185
    %221 = vst [vmem:[#allocation3 + $0xdc] sm:$0xf] %v186
    %222 = vst [vmem:[#allocation3 + $0x100] sm:$0xf] %v187
    %223 = vst [vmem:[#allocation3 + $0x124] sm:$0xf] %v190
    %224 = vst [vmem:[#allocation3 + $0x148] sm:$0xf] %v191
    %225 = vst [vmem:[#allocation3 + $0x16c] sm:$0xf] %v192
    %226 = vst [vmem:[#allocation3 + $0x190] sm:$0xf] %v193
    %227 = vst [vmem:[#allocation3 + $0x1b4] sm:$0xf] %v194
    %228 = vst [vmem:[#allocation3 + $0x1d8] sm:$0xf] %v195
    %229 = vst [vmem:[#allocation3 + $0x1fc] sm:$0xf] %v196
    %230 = vst [vmem:[#allocation3 + $0x220] sm:$0xf] %v197
    %231 = vst [vmem:[#allocation3 + $0x8] sm:$0xf] %v181
    %232 = vst [vmem:[#allocation3 + $0x2c] sm:$0xf] %v182
    %233 = vst [vmem:[#allocation3 + $0x50] sm:$0xf] %v183
    %234 = vst [vmem:[#allocation3 + $0x74] sm:$0xf] %v184
    %235 = vst [vmem:[#allocation3 + $0x98] sm:$0xf] %v185
    %236 = vst [vmem:[#allocation3 + $0xbc] sm:$0xf] %v186
    %237 = vst [vmem:[#allocation3 + $0xe0] sm:$0xf] %v187
    %238 = vst [vmem:[#allocation3 + $0x104] sm:$0xf] %v188
    %239 = vst [vmem:[#allocation3 + $0x128] sm:$0xf] %v191
    %240 = vst [vmem:[#allocation3 + $0x14c] sm:$0xf] %v192
    %241 = vst [vmem:[#allocation3 + $0x170] sm:$0xf] %v193
    %242 = vst [vmem:[#allocation3 + $0x194] sm:$0xf] %v194
    %243 = vst [vmem:[#allocation3 + $0x1b8] sm:$0xf] %v195
    %244 = vst [vmem:[#allocation3 + $0x1dc] sm:$0xf] %v196
    %245 = vst [vmem:[#allocation3 + $0x200] sm:$0xf] %v197
    %246 = vst [vmem:[#allocation3 + $0x224] sm:$0xf] %v198
    %v247 = vld [vmem:[#allocation2 + $0x1] sm:$0xff]
    %v248 = vld [vmem:[#allocation2 + $0x11] sm:$0xff]
    %v249 = vld [vmem:[#allocation2 + $0x21] sm:$0xff]
    %v250 = vld [vmem:[#allocation2 + $0x31] sm:$0xff]
    %v251 = vld [vmem:[#allocation2 + $0x41] sm:$0xff]
    %v252 = vld [vmem:[#allocation2 + $0x51] sm:$0xff]
    %v253 = vld [vmem:[#allocation2 + $0x61] sm:$0xff]
    %v254 = vld [vmem:[#allocation2 + $0x71] sm:$0xff]
    %v255 = vld [vmem:[#allocation2 + $0x81] sm:$0xff]
    %v256 = vld [vmem:[#allocation2 + $0x91] sm:$0xff]
    %v257 = vld [vmem:[#allocation2 + $0xa1] sm:$0xff]
    %v258 = vld [vmem:[#allocation2 + $0xb1] sm:$0xff]
    %v259 = vld [vmem:[#allocation2 + $0xc1] sm:$0xff]
    %v260 = vld [vmem:[#allocation2 + $0xd1] sm:$0xff]
    %v261 = vld [vmem:[#allocation2 + $0xe1] sm:$0xff]
    %v262 = vld [vmem:[#allocation2 + $0xf1] sm:$0xff]
    %v263 = vld [vmem:[#allocation2 + $0x101] sm:$0xff]
    %v264 = vld [vmem:[#allocation2 + $0x111] sm:$0xff]
    %v265 = vld [vmem:[#allocation2 + $0x121] sm:$0xff]
    %v266 = vld [vmem:[#allocation2 + $0x131] sm:$0xff]
    %v267 = vpack.c.bf16 %v247, %v247
    %v268 = vpack.c.bf16 %v248, %v248
    %v269 = vpack.c.bf16 %v249, %v249
    %v270 = vpack.c.bf16 %v250, %v250
    %v271 = vpack.c.bf16 %v251, %v251
    %v272 = vpack.c.bf16 %v252, %v252
    %v273 = vpack.c.bf16 %v253, %v253
    %v274 = vpack.c.bf16 %v254, %v254
    %v275 = vpack.c.bf16 %v255, %v255
    %v276 = vpack.c.bf16 %v256, %v256
    %v277 = vpack.c.bf16 %v257, %v257
    %v278 = vpack.c.bf16 %v258, %v258
    %v279 = vpack.c.bf16 %v259, %v259
    %v280 = vpack.c.bf16 %v260, %v260
    %v281 = vpack.c.bf16 %v261, %v261
    %v282 = vpack.c.bf16 %v262, %v262
    %v283 = vpack.c.bf16 %v263, %v263
    %v284 = vpack.c.bf16 %v264, %v264
    %v285 = vpack.c.bf16 %v265, %v265
    %v286 = vpack.c.bf16 %v266, %v266
    %287 = vst [vmem:[#allocation3 + $0xc] sm:$0xf] %v267
    %288 = vst [vmem:[#allocation3 + $0x30] sm:$0xf] %v268
    %289 = vst [vmem:[#allocation3 + $0x54] sm:$0xf] %v269
    %290 = vst [vmem:[#allocation3 + $0x78] sm:$0xf] %v270
    %291 = vst [vmem:[#allocation3 + $0x9c] sm:$0xf] %v271
    %292 = vst [vmem:[#allocation3 + $0xc0] sm:$0xf] %v272
    %293 = vst [vmem:[#allocation3 + $0xe4] sm:$0xf] %v273
    %294 = vst [vmem:[#allocation3 + $0x108] sm:$0xf] %v274
    %295 = vst [vmem:[#allocation3 + $0x12c] sm:$0xf] %v277
    %296 = vst [vmem:[#allocation3 + $0x150] sm:$0xf] %v278
    %297 = vst [vmem:[#allocation3 + $0x174] sm:$0xf] %v279
    %298 = vst [vmem:[#allocation3 + $0x198] sm:$0xf] %v280
    %299 = vst [vmem:[#allocation3 + $0x1bc] sm:$0xf] %v281
    %300 = vst [vmem:[#allocation3 + $0x1e0] sm:$0xf] %v282
    %301 = vst [vmem:[#allocation3 + $0x204] sm:$0xf] %v283
    %302 = vst [vmem:[#allocation3 + $0x228] sm:$0xf] %v284
    %303 = vst [vmem:[#allocation3 + $0x10] sm:$0xf] %v268
    %304 = vst [vmem:[#allocation3 + $0x34] sm:$0xf] %v269
    %305 = vst [vmem:[#allocation3 + $0x58] sm:$0xf] %v270
    %306 = vst [vmem:[#allocation3 + $0x7c] sm:$0xf] %v271
    %307 = vst [vmem:[#allocation3 + $0xa0] sm:$0xf] %v272
    %308 = vst [vmem:[#allocation3 + $0xc4] sm:$0xf] %v273
    %309 = vst [vmem:[#allocation3 + $0xe8] sm:$0xf] %v274
    %310 = vst [vmem:[#allocation3 + $0x10c] sm:$0xf] %v275
    %311 = vst [vmem:[#allocation3 + $0x130] sm:$0xf] %v278
    %312 = vst [vmem:[#allocation3 + $0x154] sm:$0xf] %v279
    %313 = vst [vmem:[#allocation3 + $0x178] sm:$0xf] %v280
    %314 = vst [vmem:[#allocation3 + $0x19c] sm:$0xf] %v281
    %315 = vst [vmem:[#allocation3 + $0x1c0] sm:$0xf] %v282
    %316 = vst [vmem:[#allocation3 + $0x1e4] sm:$0xf] %v283
    %317 = vst [vmem:[#allocation3 + $0x208] sm:$0xf] %v284
    %318 = vst [vmem:[#allocation3 + $0x22c] sm:$0xf] %v285
    %319 = vst [vmem:[#allocation3 + $0x14] sm:$0xf] %v269
    %320 = vst [vmem:[#allocation3 + $0x38] sm:$0xf] %v270
    %321 = vst [vmem:[#allocation3 + $0x5c] sm:$0xf] %v271
    %322 = vst [vmem:[#allocation3 + $0x80] sm:$0xf] %v272
    %323 = vst [vmem:[#allocation3 + $0xa4] sm:$0xf] %v273
    %324 = vst [vmem:[#allocation3 + $0xc8] sm:$0xf] %v274
    %325 = vst [vmem:[#allocation3 + $0xec] sm:$0xf] %v275
    %326 = vst [vmem:[#allocation3 + $0x110] sm:$0xf] %v276
    %327 = vst [vmem:[#allocation3 + $0x134] sm:$0xf] %v279
    %328 = vst [vmem:[#allocation3 + $0x158] sm:$0xf] %v280
    %329 = vst [vmem:[#allocation3 + $0x17c] sm:$0xf] %v281
    %330 = vst [vmem:[#allocation3 + $0x1a0] sm:$0xf] %v282
    %331 = vst [vmem:[#allocation3 + $0x1c4] sm:$0xf] %v283
    %332 = vst [vmem:[#allocation3 + $0x1e8] sm:$0xf] %v284
    %333 = vst [vmem:[#allocation3 + $0x20c] sm:$0xf] %v285
    %334 = vst [vmem:[#allocation3 + $0x230] sm:$0xf] %v286
    %v335 = vld [vmem:[#allocation2 + $0x2] sm:$0xff]
    %v336 = vld [vmem:[#allocation2 + $0x12] sm:$0xff]
    %v337 = vld [vmem:[#allocation2 + $0x22] sm:$0xff]
    %v338 = vld [vmem:[#allocation2 + $0x32] sm:$0xff]
    %v339 = vld [vmem:[#allocation2 + $0x42] sm:$0xff]
    %v340 = vld [vmem:[#allocation2 + $0x52] sm:$0xff]
    %v341 = vld [vmem:[#allocation2 + $0x62] sm:$0xff]
    %v342 = vld [vmem:[#allocation2 + $0x72] sm:$0xff]
    %v343 = vld [vmem:[#allocation2 + $0x82] sm:$0xff]
    %v344 = vld [vmem:[#allocation2 + $0x92] sm:$0xff]
    %v345 = vld [vmem:[#allocation2 + $0xa2] sm:$0xff]
    %v346 = vld [vmem:[#allocation2 + $0xb2] sm:$0xff]
    %v347 = vld [vmem:[#allocation2 + $0xc2] sm:$0xff]
    %v348 = vld [vmem:[#allocation2 + $0xd2] sm:$0xff]
    %v349 = vld [vmem:[#allocation2 + $0xe2] sm:$0xff]
    %v350 = vld [vmem:[#allocation2 + $0xf2] sm:$0xff]
    %v351 = vld [vmem:[#allocation2 + $0x102] sm:$0xff]
    %v352 = vld [vmem:[#allocation2 + $0x112] sm:$0xff]
    %v353 = vld [vmem:[#allocation2 + $0x122] sm:$0xff]
    %v354 = vld [vmem:[#allocation2 + $0x132] sm:$0xff]
    %v355 = vpack.c.bf16 %v335, %v335
    %v356 = vpack.c.bf16 %v336, %v336
    %v357 = vpack.c.bf16 %v337, %v337
    %v358 = vpack.c.bf16 %v338, %v338
    %v359 = vpack.c.bf16 %v339, %v339
    %v360 = vpack.c.bf16 %v340, %v340
    %v361 = vpack.c.bf16 %v341, %v341
    %v362 = vpack.c.bf16 %v342, %v342
    %v363 = vpack.c.bf16 %v343, %v343
    %v364 = vpack.c.bf16 %v344, %v344
    %v365 = vpack.c.bf16 %v345, %v345
    %v366 = vpack.c.bf16 %v346, %v346
    %v367 = vpack.c.bf16 %v347, %v347
    %v368 = vpack.c.bf16 %v348, %v348
    %v369 = vpack.c.bf16 %v349, %v349
    %v370 = vpack.c.bf16 %v350, %v350
    %v371 = vpack.c.bf16 %v351, %v351
    %v372 = vpack.c.bf16 %v352, %v352
    %v373 = vpack.c.bf16 %v353, %v353
    %v374 = vpack.c.bf16 %v354, %v354
    %375 = vst [vmem:[#allocation3 + $0x18] sm:$0xf] %v355
    %376 = vst [vmem:[#allocation3 + $0x3c] sm:$0xf] %v356
    %377 = vst [vmem:[#allocation3 + $0x60] sm:$0xf] %v357
    %378 = vst [vmem:[#allocation3 + $0x84] sm:$0xf] %v358
    %379 = vst [vmem:[#allocation3 + $0xa8] sm:$0xf] %v359
    %380 = vst [vmem:[#allocation3 + $0xcc] sm:$0xf] %v360
    %381 = vst [vmem:[#allocation3 + $0xf0] sm:$0xf] %v361
    %382 = vst [vmem:[#allocation3 + $0x114] sm:$0xf] %v362
    %383 = vst [vmem:[#allocation3 + $0x138] sm:$0xf] %v365
    %384 = vst [vmem:[#allocation3 + $0x15c] sm:$0xf] %v366
    %385 = vst [vmem:[#allocation3 + $0x180] sm:$0xf] %v367
    %386 = vst [vmem:[#allocation3 + $0x1a4] sm:$0xf] %v368
    %387 = vst [vmem:[#allocation3 + $0x1c8] sm:$0xf] %v369
    %388 = vst [vmem:[#allocation3 + $0x1ec] sm:$0xf] %v370
    %389 = vst [vmem:[#allocation3 + $0x210] sm:$0xf] %v371
    %390 = vst [vmem:[#allocation3 + $0x234] sm:$0xf] %v372
    %391 = vst [vmem:[#allocation3 + $0x1c] sm:$0xf] %v356
    %392 = vst [vmem:[#allocation3 + $0x40] sm:$0xf] %v357
    %393 = vst [vmem:[#allocation3 + $0x64] sm:$0xf] %v358
    %394 = vst [vmem:[#allocation3 + $0x88] sm:$0xf] %v359
    %395 = vst [vmem:[#allocation3 + $0xac] sm:$0xf] %v360
    %396 = vst [vmem:[#allocation3 + $0xd0] sm:$0xf] %v361
    %397 = vst [vmem:[#allocation3 + $0xf4] sm:$0xf] %v362
    %398 = vst [vmem:[#allocation3 + $0x118] sm:$0xf] %v363
    %399 = vst [vmem:[#allocation3 + $0x13c] sm:$0xf] %v366
    %400 = vst [vmem:[#allocation3 + $0x160] sm:$0xf] %v367
    %401 = vst [vmem:[#allocation3 + $0x184] sm:$0xf] %v368
    %402 = vst [vmem:[#allocation3 + $0x1a8] sm:$0xf] %v369
    %403 = vst [vmem:[#allocation3 + $0x1cc] sm:$0xf] %v370
    %404 = vst [vmem:[#allocation3 + $0x1f0] sm:$0xf] %v371
    %405 = vst [vmem:[#allocation3 + $0x214] sm:$0xf] %v372
    %406 = vst [vmem:[#allocation3 + $0x238] sm:$0xf] %v373
    %407 = vst [vmem:[#allocation3 + $0x20] sm:$0xf] %v357
    %408 = vst [vmem:[#allocation3 + $0x44] sm:$0xf] %v358
    %409 = vst [vmem:[#allocation3 + $0x68] sm:$0xf] %v359
    %410 = vst [vmem:[#allocation3 + $0x8c] sm:$0xf] %v360
    %411 = vst [vmem:[#allocation3 + $0xb0] sm:$0xf] %v361
    %412 = vst [vmem:[#allocation3 + $0xd4] sm:$0xf] %v362
    %413 = vst [vmem:[#allocation3 + $0xf8] sm:$0xf] %v363
    %414 = vst [vmem:[#allocation3 + $0x11c] sm:$0xf] %v364
    %415 = vst [vmem:[#allocation3 + $0x140] sm:$0xf] %v367
    %416 = vst [vmem:[#allocation3 + $0x164] sm:$0xf] %v368
    %417 = vst [vmem:[#allocation3 + $0x188] sm:$0xf] %v369
    %418 = vst [vmem:[#allocation3 + $0x1ac] sm:$0xf] %v370
    %419 = vst [vmem:[#allocation3 + $0x1d0] sm:$0xf] %v371
    %420 = vst [vmem:[#allocation3 + $0x1f4] sm:$0xf] %v372
    %421 = vst [vmem:[#allocation3 + $0x218] sm:$0xf] %v373
    %422 = vst [vmem:[#allocation3 + $0x23c] sm:$0xf] %v374
    %v423 = vld [vmem:[#allocation3] sm:$0xff]
    %v424 = vld [vmem:[#allocation3 + $0x8] sm:$0xff]
    %v425 = vld [vmem:[#allocation3 + $0x10] sm:$0xff]
    %v426 = vld [vmem:[#allocation3 + $0x18] sm:$0xff]
    %v427 = vld [vmem:[#allocation3 + $0x20] sm:$0xf]
    %v428 = vld [vmem:[#allocation3 + $0x24] sm:$0xff]
    %v429 = vld [vmem:[#allocation3 + $0x2c] sm:$0xff]
    %v430 = vld [vmem:[#allocation3 + $0x34] sm:$0xff]
    %v431 = vld [vmem:[#allocation3 + $0x3c] sm:$0xff]
    %v432 = vld [vmem:[#allocation3 + $0x44] sm:$0xf]
    %v433 = vld [vmem:[#allocation3 + $0x48] sm:$0xff]
    %v434 = vld [vmem:[#allocation3 + $0x50] sm:$0xff]
    %v435 = vld [vmem:[#allocation3 + $0x58] sm:$0xff]
    %v436 = vld [vmem:[#allocation3 + $0x60] sm:$0xff]
    %v437 = vld [vmem:[#allocation3 + $0x68] sm:$0xf]
    %v438 = vld [vmem:[#allocation3 + $0x6c] sm:$0xff]
    %v439 = vld [vmem:[#allocation3 + $0x74] sm:$0xff]
    %v440 = vld [vmem:[#allocation3 + $0x7c] sm:$0xff]
    %v441 = vld [vmem:[#allocation3 + $0x84] sm:$0xff]
    %v442 = vld [vmem:[#allocation3 + $0x8c] sm:$0xf]
    %v443 = vld [vmem:[#allocation3 + $0x90] sm:$0xff]
    %v444 = vld [vmem:[#allocation3 + $0x98] sm:$0xff]
    %v445 = vld [vmem:[#allocation3 + $0xa0] sm:$0xff]
    %v446 = vld [vmem:[#allocation3 + $0xa8] sm:$0xff]
    %v447 = vld [vmem:[#allocation3 + $0xb0] sm:$0xf]
    %v448 = vld [vmem:[#allocation3 + $0xb4] sm:$0xff]
    %v449 = vld [vmem:[#allocation3 + $0xbc] sm:$0xff]
    %v450 = vld [vmem:[#allocation3 + $0xc4] sm:$0xff]
    %v451 = vld [vmem:[#allocation3 + $0xcc] sm:$0xff]
    %v452 = vld [vmem:[#allocation3 + $0xd4] sm:$0xf]
    %v453 = vld [vmem:[#allocation3 + $0xd8] sm:$0xff]
    %v454 = vld [vmem:[#allocation3 + $0xe0] sm:$0xff]
    %v455 = vld [vmem:[#allocation3 + $0xe8] sm:$0xff]
    %v456 = vld [vmem:[#allocation3 + $0xf0] sm:$0xff]
    %v457 = vld [vmem:[#allocation3 + $0xf8] sm:$0xf]
    %v458 = vld [vmem:[#allocation3 + $0xfc] sm:$0xff]
    %v459 = vld [vmem:[#allocation3 + $0x104] sm:$0xff]
    %v460 = vld [vmem:[#allocation3 + $0x10c] sm:$0xff]
    %v461 = vld [vmem:[#allocation3 + $0x114] sm:$0xff]
    %v462 = vld [vmem:[#allocation3 + $0x11c] sm:$0xf]
    %v463 = vld [vmem:[#allocation3 + $0x120] sm:$0xff]
    %v464 = vld [vmem:[#allocation3 + $0x128] sm:$0xff]
    %v465 = vld [vmem:[#allocation3 + $0x130] sm:$0xff]
    %v466 = vld [vmem:[#allocation3 + $0x138] sm:$0xff]
    %v467 = vld [vmem:[#allocation3 + $0x140] sm:$0xf]
    %v468 = vld [vmem:[#allocation3 + $0x144] sm:$0xff]
    %v469 = vld [vmem:[#allocation3 + $0x14c] sm:$0xff]
    %v470 = vld [vmem:[#allocation3 + $0x154] sm:$0xff]
    %v471 = vld [vmem:[#allocation3 + $0x15c] sm:$0xff]
    %v472 = vld [vmem:[#allocation3 + $0x164] sm:$0xf]
    %v473 = vld [vmem:[#allocation3 + $0x168] sm:$0xff]
    %v474 = vld [vmem:[#allocation3 + $0x170] sm:$0xff]
    %v475 = vld [vmem:[#allocation3 + $0x178] sm:$0xff]
    %v476 = vld [vmem:[#allocation3 + $0x180] sm:$0xff]
    %v477 = vld [vmem:[#allocation3 + $0x188] sm:$0xf]
    %v478 = vld [vmem:[#allocation3 + $0x18c] sm:$0xff]
    %v479 = vld [vmem:[#allocation3 + $0x194] sm:$0xff]
    %v480 = vld [vmem:[#allocation3 + $0x19c] sm:$0xff]
    %v481 = vld [vmem:[#allocation3 + $0x1a4] sm:$0xff]
    %v482 = vld [vmem:[#allocation3 + $0x1ac] sm:$0xf]
    %v483 = vld [vmem:[#allocation3 + $0x1b0] sm:$0xff]
    %v484 = vld [vmem:[#allocation3 + $0x1b8] sm:$0xff]
    %v485 = vld [vmem:[#allocation3 + $0x1c0] sm:$0xff]
    %v486 = vld [vmem:[#allocation3 + $0x1c8] sm:$0xff]
    %v487 = vld [vmem:[#allocation3 + $0x1d0] sm:$0xf]
    %v488 = vld [vmem:[#allocation3 + $0x1d4] sm:$0xff]
    %v489 = vld [vmem:[#allocation3 + $0x1dc] sm:$0xff]
    %v490 = vld [vmem:[#allocation3 + $0x1e4] sm:$0xff]
    %v491 = vld [vmem:[#allocation3 + $0x1ec] sm:$0xff]
    %v492 = vld [vmem:[#allocation3 + $0x1f4] sm:$0xf]
    %v493 = vld [vmem:[#allocation3 + $0x1f8] sm:$0xff]
    %v494 = vld [vmem:[#allocation3 + $0x200] sm:$0xff]
    %v495 = vld [vmem:[#allocation3 + $0x208] sm:$0xff]
    %v496 = vld [vmem:[#allocation3 + $0x210] sm:$0xff]
    %v497 = vld [vmem:[#allocation3 + $0x218] sm:$0xf]
    %v498 = vld [vmem:[#allocation3 + $0x21c] sm:$0xff]
    %v499 = vld [vmem:[#allocation3 + $0x224] sm:$0xff]
    %v500 = vld [vmem:[#allocation3 + $0x22c] sm:$0xff]
    %v501 = vld [vmem:[#allocation3 + $0x234] sm:$0xff]
    %v502 = vld [vmem:[#allocation3 + $0x23c] sm:$0xf]
    %v503 = vld [vmem:[#allocation7] sm:$0xf]
    %v504 = vld [vmem:[#allocation7 + $0x4] sm:$0xf]
    %v505 = vld [vmem:[#allocation7 + $0x8] sm:$0xf]
    %v506 = vld [vmem:[#allocation7 + $0xc] sm:$0xf]
    %v507 = vld [vmem:[#allocation7 + $0x10] sm:$0xf]
    %v508 = vld [vmem:[#allocation7 + $0x14] sm:$0xf]
    %v509 = vld [vmem:[#allocation7 + $0x18] sm:$0xf]
    %v510 = vld [vmem:[#allocation7 + $0x1c] sm:$0xf]
    %v511 = vld [vmem:[#allocation7 + $0x20] sm:$0xf]
    %v512 = vld [vmem:[#allocation7 + $0x24] sm:$0xf]
    %v513 = vld [vmem:[#allocation7 + $0x28] sm:$0xf]
    %v514 = vld [vmem:[#allocation7 + $0x2c] sm:$0xf]
    %v515 = vld [vmem:[#allocation7 + $0x30] sm:$0xf]
    %v516 = vld [vmem:[#allocation7 + $0x34] sm:$0xf]
    %v517 = vld [vmem:[#allocation7 + $0x38] sm:$0xf]
    %v518 = vld [vmem:[#allocation7 + $0x3c] sm:$0xf]
    %v519 = vld [vmem:[#allocation7 + $0x40] sm:$0xf]
    %v520 = vld [vmem:[#allocation7 + $0x44] sm:$0xf]
    %v521 = vld [vmem:[#allocation7 + $0x48] sm:$0xf]
    %v522 = vld [vmem:[#allocation7 + $0x4c] sm:$0xf]
    %v523 = vld [vmem:[#allocation7 + $0x50] sm:$0xf]
    %v524 = vld [vmem:[#allocation7 + $0x54] sm:$0xf]
    %v525 = vld [vmem:[#allocation7 + $0x58] sm:$0xf]
    %v526 = vld [vmem:[#allocation7 + $0x5c] sm:$0xf]
    %v527 = vld [vmem:[#allocation7 + $0x60] sm:$0xf]
    %v528 = vld [vmem:[#allocation7 + $0x64] sm:$0xf]
    %v529 = vld [vmem:[#allocation7 + $0x68] sm:$0xf]
    %v530 = vld [vmem:[#allocation7 + $0x6c] sm:$0xf]
    %v531 = vld [vmem:[#allocation7 + $0x70] sm:$0xf]
    %v532 = vld [vmem:[#allocation7 + $0x74] sm:$0xf]
    %v533 = vld [vmem:[#allocation7 + $0x78] sm:$0xf]
    %v534 = vld [vmem:[#allocation7 + $0x7c] sm:$0xf]
    %v535 = vld [vmem:[#allocation7 + $0x80] sm:$0xf]
    %v536 = vld [vmem:[#allocation7 + $0x84] sm:$0xf]
    %v537 = vld [vmem:[#allocation7 + $0x88] sm:$0xf]
    %v538 = vld [vmem:[#allocation7 + $0x8c] sm:$0xf]
    %v539 = vld [vmem:[#allocation7 + $0x90] sm:$0xf]
    %v540 = vld [vmem:[#allocation7 + $0x94] sm:$0xf]
    %v541 = vld [vmem:[#allocation7 + $0x98] sm:$0xf]
    %v542 = vld [vmem:[#allocation7 + $0x9c] sm:$0xf]
    %v543 = vld [vmem:[#allocation7 + $0xa0] sm:$0xf]
    %v544 = vld [vmem:[#allocation7 + $0xa4] sm:$0xf]
    %v545 = vld [vmem:[#allocation7 + $0xa8] sm:$0xf]
    %v546 = vld [vmem:[#allocation7 + $0xac] sm:$0xf]
    %v547 = vld [vmem:[#allocation7 + $0xb0] sm:$0xf]
    %v548 = vld [vmem:[#allocation7 + $0xb4] sm:$0xf]
    %v549 = vld [vmem:[#allocation7 + $0xb8] sm:$0xf]
    %v550 = vld [vmem:[#allocation7 + $0xbc] sm:$0xf]
    %v551 = vld [vmem:[#allocation7 + $0xc0] sm:$0xf]
    %v552 = vld [vmem:[#allocation7 + $0xc4] sm:$0xf]
    %v553 = vld [vmem:[#allocation7 + $0xc8] sm:$0xf]
    %v554 = vld [vmem:[#allocation7 + $0xcc] sm:$0xf]
    %v555 = vld [vmem:[#allocation7 + $0xd0] sm:$0xf]
    %v556 = vld [vmem:[#allocation7 + $0xd4] sm:$0xf]
    %v557 = vld [vmem:[#allocation7 + $0xd8] sm:$0xf]
    %v558 = vld [vmem:[#allocation7 + $0xdc] sm:$0xf]
    %v559 = vld [vmem:[#allocation7 + $0xe0] sm:$0xf]
    %v560 = vld [vmem:[#allocation7 + $0xe4] sm:$0xf]
    %v561 = vld [vmem:[#allocation7 + $0xe8] sm:$0xf]
    %v562 = vld [vmem:[#allocation7 + $0xec] sm:$0xf]
    %v563 = vld [vmem:[#allocation7 + $0xf0] sm:$0xf]
    %v564 = vld [vmem:[#allocation7 + $0xf4] sm:$0xf]
    %v565 = vld [vmem:[#allocation7 + $0xf8] sm:$0xf]
    %v566 = vld [vmem:[#allocation7 + $0xfc] sm:$0xf]
    %v567 = vld [vmem:[#allocation7 + $0x100] sm:$0xf]
    %v568 = vld [vmem:[#allocation7 + $0x104] sm:$0xf]
    %v569 = vld [vmem:[#allocation7 + $0x108] sm:$0xf]
    %v570 = vld [vmem:[#allocation7 + $0x10c] sm:$0xf]
    %v571 = vld [vmem:[#allocation7 + $0x110] sm:$0xf]
    %v572 = vld [vmem:[#allocation7 + $0x114] sm:$0xf]
    %v573 = vld [vmem:[#allocation7 + $0x118] sm:$0xf]
    %v574 = vld [vmem:[#allocation7 + $0x11c] sm:$0xf]
    %v575 = vld [vmem:[#allocation7 + $0x120] sm:$0xf]
    %v576 = vld [vmem:[#allocation7 + $0x124] sm:$0xf]
    %v577 = vld [vmem:[#allocation7 + $0x128] sm:$0xf]
    %v578 = vld [vmem:[#allocation7 + $0x12c] sm:$0xf]
    %v579 = vld [vmem:[#allocation7 + $0x130] sm:$0xf]
    %v580 = vld [vmem:[#allocation7 + $0x134] sm:$0xf]
    %v581 = vld [vmem:[#allocation7 + $0x138] sm:$0xf]
    %v582 = vld [vmem:[#allocation7 + $0x13c] sm:$0xf]
    %v583 = vld [vmem:[#allocation7 + $0x140] sm:$0xf]
    %v584 = vld [vmem:[#allocation7 + $0x144] sm:$0xf]
    %v585 = vld [vmem:[#allocation7 + $0x148] sm:$0xf]
    %v586 = vld [vmem:[#allocation7 + $0x14c] sm:$0xf]
    %v587 = vld [vmem:[#allocation7 + $0x150] sm:$0xf]
    %v588 = vld [vmem:[#allocation7 + $0x154] sm:$0xf]
    %v589 = vld [vmem:[#allocation7 + $0x158] sm:$0xf]
    %v590 = vld [vmem:[#allocation7 + $0x15c] sm:$0xf]
    %v591 = vld [vmem:[#allocation7 + $0x160] sm:$0xf]
    %v592 = vld [vmem:[#allocation7 + $0x164] sm:$0xf]
    %v593 = vld [vmem:[#allocation7 + $0x168] sm:$0xf]
    %v594 = vld [vmem:[#allocation7 + $0x16c] sm:$0xf]
    %v595 = vld [vmem:[#allocation7 + $0x170] sm:$0xf]
    %v596 = vld [vmem:[#allocation7 + $0x174] sm:$0xf]
    %v597 = vld [vmem:[#allocation7 + $0x178] sm:$0xf]
    %v598 = vld [vmem:[#allocation7 + $0x17c] sm:$0xf]
    %v599 = vld [vmem:[#allocation7 + $0x180] sm:$0xf]
    %v600 = vld [vmem:[#allocation7 + $0x184] sm:$0xf]
    %v601 = vld [vmem:[#allocation7 + $0x188] sm:$0xf]
    %v602 = vld [vmem:[#allocation7 + $0x18c] sm:$0xf]
    %v603 = vld [vmem:[#allocation7 + $0x190] sm:$0xf]
    %v604 = vld [vmem:[#allocation7 + $0x194] sm:$0xf]
    %v605 = vld [vmem:[#allocation7 + $0x198] sm:$0xf]
    %v606 = vld [vmem:[#allocation7 + $0x19c] sm:$0xf]
    %v607 = vld [vmem:[#allocation7 + $0x1a0] sm:$0xf]
    %v608 = vld [vmem:[#allocation7 + $0x1a4] sm:$0xf]
    %v609 = vld [vmem:[#allocation7 + $0x1a8] sm:$0xf]
    %v610 = vld [vmem:[#allocation7 + $0x1ac] sm:$0xf]
    %v611 = vld [vmem:[#allocation7 + $0x1b0] sm:$0xf]
    %v612 = vld [vmem:[#allocation7 + $0x1b4] sm:$0xf]
    %v613 = vld [vmem:[#allocation7 + $0x1b8] sm:$0xf]
    %v614 = vld [vmem:[#allocation7 + $0x1bc] sm:$0xf]
    %v615 = vld [vmem:[#allocation7 + $0x1c0] sm:$0xf]
    %v616 = vld [vmem:[#allocation7 + $0x1c4] sm:$0xf]
    %v617 = vld [vmem:[#allocation7 + $0x1c8] sm:$0xf]
    %v618 = vld [vmem:[#allocation7 + $0x1cc] sm:$0xf]
    %v619 = vld [vmem:[#allocation7 + $0x1d0] sm:$0xf]
    %v620 = vld [vmem:[#allocation7 + $0x1d4] sm:$0xf]
    %v621 = vld [vmem:[#allocation7 + $0x1d8] sm:$0xf]
    %v622 = vld [vmem:[#allocation7 + $0x1dc] sm:$0xf]
    %v623 = vld [vmem:[#allocation7 + $0x1e0] sm:$0xf]
    %v624 = vld [vmem:[#allocation7 + $0x1e4] sm:$0xf]
    %v625 = vld [vmem:[#allocation7 + $0x1e8] sm:$0xf]
    %v626 = vld [vmem:[#allocation7 + $0x1ec] sm:$0xf]
    %v627 = vld [vmem:[#allocation7 + $0x1f0] sm:$0xf]
    %v628 = vld [vmem:[#allocation7 + $0x1f4] sm:$0xf]
    %v629 = vld [vmem:[#allocation7 + $0x1f8] sm:$0xf]
    %v630 = vld [vmem:[#allocation7 + $0x1fc] sm:$0xf]
    %v631 = vld [vmem:[#allocation7 + $0x200] sm:$0xf]
    %v632 = vld [vmem:[#allocation7 + $0x204] sm:$0xf]
    %v633 = vld [vmem:[#allocation7 + $0x208] sm:$0xf]
    %v634 = vld [vmem:[#allocation7 + $0x20c] sm:$0xf]
    %v635 = vld [vmem:[#allocation7 + $0x210] sm:$0xf]
    %v636 = vld [vmem:[#allocation7 + $0x214] sm:$0xf]
    %v637 = vld [vmem:[#allocation7 + $0x218] sm:$0xf]
    %v638 = vld [vmem:[#allocation7 + $0x21c] sm:$0xf]
    %v639 = vld [vmem:[#allocation7 + $0x220] sm:$0xf]
    %v640 = vld [vmem:[#allocation7 + $0x224] sm:$0xf]
    %v641 = vld [vmem:[#allocation7 + $0x228] sm:$0xf]
    %v642 = vld [vmem:[#allocation7 + $0x22c] sm:$0xf]
    %v643 = vld [vmem:[#allocation7 + $0x230] sm:$0xf]
    %v644 = vld [vmem:[#allocation7 + $0x234] sm:$0xf]
    %v645 = vld [vmem:[#allocation7 + $0x238] sm:$0xf]
    %v646 = vld [vmem:[#allocation7 + $0x23c] sm:$0xf]
    %v727 = vunpack.c.l.b16 %v423
    %v728 = vunpack.c.h.b16 %v423
    %v729 = vunpack.c.l.b16 %v424
    %v730 = vunpack.c.h.b16 %v424
    %v731 = vunpack.c.l.b16 %v425
    %v732 = vunpack.c.h.b16 %v425
    %v733 = vunpack.c.l.b16 %v426
    %v734 = vunpack.c.h.b16 %v426
    %v735 = vunpack.c.l.b16 %v427
    %v736 = vunpack.c.l.b16 %v428
    %v737 = vunpack.c.h.b16 %v428
    %v738 = vunpack.c.l.b16 %v429
    %v739 = vunpack.c.h.b16 %v429
    %v740 = vunpack.c.l.b16 %v430
    %v741 = vunpack.c.h.b16 %v430
    %v742 = vunpack.c.l.b16 %v431
    %v743 = vunpack.c.h.b16 %v431
    %v744 = vunpack.c.l.b16 %v432
    %v745 = vunpack.c.l.b16 %v433
    %v746 = vunpack.c.h.b16 %v433
    %v747 = vunpack.c.l.b16 %v434
    %v748 = vunpack.c.h.b16 %v434
    %v749 = vunpack.c.l.b16 %v435
    %v750 = vunpack.c.h.b16 %v435
    %v751 = vunpack.c.l.b16 %v436
    %v752 = vunpack.c.h.b16 %v436
    %v753 = vunpack.c.l.b16 %v437
    %v754 = vunpack.c.l.b16 %v438
    %v755 = vunpack.c.h.b16 %v438
    %v756 = vunpack.c.l.b16 %v439
    %v757 = vunpack.c.h.b16 %v439
    %v758 = vunpack.c.l.b16 %v440
    %v759 = vunpack.c.h.b16 %v440
    %v760 = vunpack.c.l.b16 %v441
    %v761 = vunpack.c.h.b16 %v441
    %v762 = vunpack.c.l.b16 %v442
    %v763 = vunpack.c.l.b16 %v443
    %v764 = vunpack.c.h.b16 %v443
    %v765 = vunpack.c.l.b16 %v444
    %v766 = vunpack.c.h.b16 %v444
    %v767 = vunpack.c.l.b16 %v445
    %v768 = vunpack.c.h.b16 %v445
    %v769 = vunpack.c.l.b16 %v446
    %v770 = vunpack.c.h.b16 %v446
    %v771 = vunpack.c.l.b16 %v447
    %v772 = vunpack.c.l.b16 %v448
    %v773 = vunpack.c.h.b16 %v448
    %v774 = vunpack.c.l.b16 %v449
    %v775 = vunpack.c.h.b16 %v449
    %v776 = vunpack.c.l.b16 %v450
    %v777 = vunpack.c.h.b16 %v450
    %v778 = vunpack.c.l.b16 %v451
    %v779 = vunpack.c.h.b16 %v451
    %v780 = vunpack.c.l.b16 %v452
    %v781 = vunpack.c.l.b16 %v453
    %v782 = vunpack.c.h.b16 %v453
    %v783 = vunpack.c.l.b16 %v454
    %v784 = vunpack.c.h.b16 %v454
    %v785 = vunpack.c.l.b16 %v455
    %v786 = vunpack.c.h.b16 %v455
    %v787 = vunpack.c.l.b16 %v456
    %v788 = vunpack.c.h.b16 %v456
    %v789 = vunpack.c.l.b16 %v457
    %v790 = vunpack.c.l.b16 %v458
    %v791 = vunpack.c.h.b16 %v458
    %v792 = vunpack.c.l.b16 %v459
    %v793 = vunpack.c.h.b16 %v459
    %v794 = vunpack.c.l.b16 %v460
    %v795 = vunpack.c.h.b16 %v460
    %v796 = vunpack.c.l.b16 %v461
    %v797 = vunpack.c.h.b16 %v461
    %v798 = vunpack.c.l.b16 %v462
    %v799 = vunpack.c.l.b16 %v463
    %v800 = vunpack.c.h.b16 %v463
    %v801 = vunpack.c.l.b16 %v464
    %v802 = vunpack.c.h.b16 %v464
    %v803 = vunpack.c.l.b16 %v465
    %v804 = vunpack.c.h.b16 %v465
    %v805 = vunpack.c.l.b16 %v466
    %v806 = vunpack.c.h.b16 %v466
    %v807 = vunpack.c.l.b16 %v467
    %v808 = vunpack.c.l.b16 %v468
    %v809 = vunpack.c.h.b16 %v468
    %v810 = vunpack.c.l.b16 %v469
    %v811 = vunpack.c.h.b16 %v469
    %v812 = vunpack.c.l.b16 %v470
    %v813 = vunpack.c.h.b16 %v470
    %v814 = vunpack.c.l.b16 %v471
    %v815 = vunpack.c.h.b16 %v471
    %v816 = vunpack.c.l.b16 %v472
    %v817 = vunpack.c.l.b16 %v473
    %v818 = vunpack.c.h.b16 %v473
    %v819 = vunpack.c.l.b16 %v474
    %v820 = vunpack.c.h.b16 %v474
    %v821 = vunpack.c.l.b16 %v475
    %v822 = vunpack.c.h.b16 %v475
    %v823 = vunpack.c.l.b16 %v476
    %v824 = vunpack.c.h.b16 %v476
    %v825 = vunpack.c.l.b16 %v477
    %v826 = vunpack.c.l.b16 %v478
    %v827 = vunpack.c.h.b16 %v478
    %v828 = vunpack.c.l.b16 %v479
    %v829 = vunpack.c.h.b16 %v479
    %v830 = vunpack.c.l.b16 %v480
    %v831 = vunpack.c.h.b16 %v480
    %v832 = vunpack.c.l.b16 %v481
    %v833 = vunpack.c.h.b16 %v481
    %v834 = vunpack.c.l.b16 %v482
    %v835 = vunpack.c.l.b16 %v483
    %v836 = vunpack.c.h.b16 %v483
    %v837 = vunpack.c.l.b16 %v484
    %v838 = vunpack.c.h.b16 %v484
    %v839 = vunpack.c.l.b16 %v485
    %v840 = vunpack.c.h.b16 %v485
    %v841 = vunpack.c.l.b16 %v486
    %v842 = vunpack.c.h.b16 %v486
    %v843 = vunpack.c.l.b16 %v487
    %v844 = vunpack.c.l.b16 %v488
    %v845 = vunpack.c.h.b16 %v488
    %v846 = vunpack.c.l.b16 %v489
    %v847 = vunpack.c.h.b16 %v489
    %v848 = vunpack.c.l.b16 %v490
    %v849 = vunpack.c.h.b16 %v490
    %v850 = vunpack.c.l.b16 %v491
    %v851 = vunpack.c.h.b16 %v491
    %v852 = vunpack.c.l.b16 %v492
    %v853 = vunpack.c.l.b16 %v493
    %v854 = vunpack.c.h.b16 %v493
    %v855 = vunpack.c.l.b16 %v494
    %v856 = vunpack.c.h.b16 %v494
    %v857 = vunpack.c.l.b16 %v495
    %v858 = vunpack.c.h.b16 %v495
    %v859 = vunpack.c.l.b16 %v496
    %v860 = vunpack.c.h.b16 %v496
    %v861 = vunpack.c.l.b16 %v497
    %v862 = vunpack.c.l.b16 %v498
    %v863 = vunpack.c.h.b16 %v498
    %v864 = vunpack.c.l.b16 %v499
    %v865 = vunpack.c.h.b16 %v499
    %v866 = vunpack.c.l.b16 %v500
    %v867 = vunpack.c.h.b16 %v500
    %v868 = vunpack.c.l.b16 %v501
    %v869 = vunpack.c.h.b16 %v501
    %v870 = vunpack.c.l.b16 %v502
    %v871 = vpack.c.b16 %v736, %v727
    %v872 = vpack.c.b16 %v737, %v728
    %v873 = vpack.c.b16 %v738, %v729
    %v874 = vpack.c.b16 %v739, %v730
    %v875 = vpack.c.b16 %v740, %v731
    %v876 = vpack.c.b16 %v741, %v732
    %v877 = vpack.c.b16 %v742, %v733
    %v878 = vpack.c.b16 %v743, %v734
    %v879 = vpack.c.b16 %v744, %v735
    %v880 = vpack.c.b16 %v754, %v745
    %v881 = vpack.c.b16 %v755, %v746
    %v882 = vpack.c.b16 %v756, %v747
    %v883 = vpack.c.b16 %v757, %v748
    %v884 = vpack.c.b16 %v758, %v749
    %v885 = vpack.c.b16 %v759, %v750
    %v886 = vpack.c.b16 %v760, %v751
    %v887 = vpack.c.b16 %v761, %v752
    %v888 = vpack.c.b16 %v762, %v753
    %v889 = vpack.c.b16 %v772, %v763
    %v890 = vpack.c.b16 %v773, %v764
    %v891 = vpack.c.b16 %v774, %v765
    %v892 = vpack.c.b16 %v775, %v766
    %v893 = vpack.c.b16 %v776, %v767
    %v894 = vpack.c.b16 %v777, %v768
    %v895 = vpack.c.b16 %v778, %v769
    %v896 = vpack.c.b16 %v779, %v770
    %v897 = vpack.c.b16 %v780, %v771
    %v898 = vpack.c.b16 %v790, %v781
    %v899 = vpack.c.b16 %v791, %v782
    %v900 = vpack.c.b16 %v792, %v783
    %v901 = vpack.c.b16 %v793, %v784
    %v902 = vpack.c.b16 %v794, %v785
    %v903 = vpack.c.b16 %v795, %v786
    %v904 = vpack.c.b16 %v796, %v787
    %v905 = vpack.c.b16 %v797, %v788
    %v906 = vpack.c.b16 %v798, %v789
    %v907 = vpack.c.b16 %v808, %v799
    %v908 = vpack.c.b16 %v809, %v800
    %v909 = vpack.c.b16 %v810, %v801
    %v910 = vpack.c.b16 %v811, %v802
    %v911 = vpack.c.b16 %v812, %v803
    %v912 = vpack.c.b16 %v813, %v804
    %v913 = vpack.c.b16 %v814, %v805
    %v914 = vpack.c.b16 %v815, %v806
    %v915 = vpack.c.b16 %v816, %v807
    %v916 = vpack.c.b16 %v826, %v817
    %v917 = vpack.c.b16 %v827, %v818
    %v918 = vpack.c.b16 %v828, %v819
    %v919 = vpack.c.b16 %v829, %v820
    %v920 = vpack.c.b16 %v830, %v821
    %v921 = vpack.c.b16 %v831, %v822
    %v922 = vpack.c.b16 %v832, %v823
    %v923 = vpack.c.b16 %v833, %v824
    %v924 = vpack.c.b16 %v834, %v825
    %v925 = vpack.c.b16 %v844, %v835
    %v926 = vpack.c.b16 %v845, %v836
    %v927 = vpack.c.b16 %v846, %v837
    %v928 = vpack.c.b16 %v847, %v838
    %v929 = vpack.c.b16 %v848, %v839
    %v930 = vpack.c.b16 %v849, %v840
    %v931 = vpack.c.b16 %v850, %v841
    %v932 = vpack.c.b16 %v851, %v842
    %v933 = vpack.c.b16 %v852, %v843
    %v934 = vpack.c.b16 %v862, %v853
    %v935 = vpack.c.b16 %v863, %v854
    %v936 = vpack.c.b16 %v864, %v855
    %v937 = vpack.c.b16 %v865, %v856
    %v938 = vpack.c.b16 %v866, %v857
    %v939 = vpack.c.b16 %v867, %v858
    %v940 = vpack.c.b16 %v868, %v859
    %v941 = vpack.c.b16 %v869, %v860
    %v942 = vpack.c.b16 %v870, %v861
    %v1159 = vunpack.c.l.b16 %v503
    %v1160 = vunpack.c.l.b16 %v504
    %v1161 = vunpack.c.l.b16 %v505
    %v1162 = vunpack.c.l.b16 %v506
    %v1163 = vunpack.c.l.b16 %v507
    %v1164 = vunpack.c.l.b16 %v508
    %v1165 = vunpack.c.l.b16 %v509
    %v1166 = vunpack.c.l.b16 %v510
    %v1167 = vunpack.c.l.b16 %v511
    %v1168 = vunpack.c.l.b16 %v512
    %v1169 = vunpack.c.l.b16 %v513
    %v1170 = vunpack.c.l.b16 %v514
    %v1171 = vunpack.c.l.b16 %v515
    %v1172 = vunpack.c.l.b16 %v516
    %v1173 = vunpack.c.l.b16 %v517
    %v1174 = vunpack.c.l.b16 %v518
    %v1175 = vunpack.c.l.b16 %v519
    %v1176 = vunpack.c.l.b16 %v520
    %v1177 = vunpack.c.l.b16 %v521
    %v1178 = vunpack.c.l.b16 %v522
    %v1179 = vunpack.c.l.b16 %v523
    %v1180 = vunpack.c.l.b16 %v524
    %v1181 = vunpack.c.l.b16 %v525
    %v1182 = vunpack.c.l.b16 %v526
    %v1183 = vunpack.c.l.b16 %v527
    %v1184 = vunpack.c.l.b16 %v528
    %v1185 = vunpack.c.l.b16 %v529
    %v1186 = vunpack.c.l.b16 %v530
    %v1187 = vunpack.c.l.b16 %v531
    %v1188 = vunpack.c.l.b16 %v532
    %v1189 = vunpack.c.l.b16 %v533
    %v1190 = vunpack.c.l.b16 %v534
    %v1191 = vunpack.c.l.b16 %v535
    %v1192 = vunpack.c.l.b16 %v536
    %v1193 = vunpack.c.l.b16 %v537
    %v1194 = vunpack.c.l.b16 %v538
    %v1195 = vunpack.c.l.b16 %v539
    %v1196 = vunpack.c.l.b16 %v540
    %v1197 = vunpack.c.l.b16 %v541
    %v1198 = vunpack.c.l.b16 %v542
    %v1199 = vunpack.c.l.b16 %v543
    %v1200 = vunpack.c.l.b16 %v544
    %v1201 = vunpack.c.l.b16 %v545
    %v1202 = vunpack.c.l.b16 %v546
    %v1203 = vunpack.c.l.b16 %v547
    %v1204 = vunpack.c.l.b16 %v548
    %v1205 = vunpack.c.l.b16 %v549
    %v1206 = vunpack.c.l.b16 %v550
    %v1207 = vunpack.c.l.b16 %v551
    %v1208 = vunpack.c.l.b16 %v552
    %v1209 = vunpack.c.l.b16 %v553
    %v1210 = vunpack.c.l.b16 %v554
    %v1211 = vunpack.c.l.b16 %v555
    %v1212 = vunpack.c.l.b16 %v556
    %v1213 = vunpack.c.l.b16 %v557
    %v1214 = vunpack.c.l.b16 %v558
    %v1215 = vunpack.c.l.b16 %v559
    %v1216 = vunpack.c.l.b16 %v560
    %v1217 = vunpack.c.l.b16 %v561
    %v1218 = vunpack.c.l.b16 %v562
    %v1219 = vunpack.c.l.b16 %v563
    %v1220 = vunpack.c.l.b16 %v564
    %v1221 = vunpack.c.l.b16 %v565
    %v1222 = vunpack.c.l.b16 %v566
    %v1223 = vunpack.c.l.b16 %v567
    %v1224 = vunpack.c.l.b16 %v568
    %v1225 = vunpack.c.l.b16 %v569
    %v1226 = vunpack.c.l.b16 %v570
    %v1227 = vunpack.c.l.b16 %v571
    %v1228 = vunpack.c.l.b16 %v572
    %v1229 = vunpack.c.l.b16 %v573
    %v1230 = vunpack.c.l.b16 %v574
    %v1231 = vunpack.c.l.b16 %v575
    %v1232 = vunpack.c.l.b16 %v576
    %v1233 = vunpack.c.l.b16 %v577
    %v1234 = vunpack.c.l.b16 %v578
    %v1235 = vunpack.c.l.b16 %v579
    %v1236 = vunpack.c.l.b16 %v580
    %v1237 = vunpack.c.l.b16 %v581
    %v1238 = vunpack.c.l.b16 %v582
    %v1239 = vunpack.c.l.b16 %v583
    %v1240 = vunpack.c.l.b16 %v584
    %v1241 = vunpack.c.l.b16 %v585
    %v1242 = vunpack.c.l.b16 %v586
    %v1243 = vunpack.c.l.b16 %v587
    %v1244 = vunpack.c.l.b16 %v588
    %v1245 = vunpack.c.l.b16 %v589
    %v1246 = vunpack.c.l.b16 %v590
    %v1247 = vunpack.c.l.b16 %v591
    %v1248 = vunpack.c.l.b16 %v592
    %v1249 = vunpack.c.l.b16 %v593
    %v1250 = vunpack.c.l.b16 %v594
    %v1251 = vunpack.c.l.b16 %v595
    %v1252 = vunpack.c.l.b16 %v596
    %v1253 = vunpack.c.l.b16 %v597
    %v1254 = vunpack.c.l.b16 %v598
    %v1255 = vunpack.c.l.b16 %v599
    %v1256 = vunpack.c.l.b16 %v600
    %v1257 = vunpack.c.l.b16 %v601
    %v1258 = vunpack.c.l.b16 %v602
    %v1259 = vunpack.c.l.b16 %v603
    %v1260 = vunpack.c.l.b16 %v604
    %v1261 = vunpack.c.l.b16 %v605
    %v1262 = vunpack.c.l.b16 %v606
    %v1263 = vunpack.c.l.b16 %v607
    %v1264 = vunpack.c.l.b16 %v608
    %v1265 = vunpack.c.l.b16 %v609
    %v1266 = vunpack.c.l.b16 %v610
    %v1267 = vunpack.c.l.b16 %v611
    %v1268 = vunpack.c.l.b16 %v612
    %v1269 = vunpack.c.l.b16 %v613
    %v1270 = vunpack.c.l.b16 %v614
    %v1271 = vunpack.c.l.b16 %v615
    %v1272 = vunpack.c.l.b16 %v616
    %v1273 = vunpack.c.l.b16 %v617
    %v1274 = vunpack.c.l.b16 %v618
    %v1275 = vunpack.c.l.b16 %v619
    %v1276 = vunpack.c.l.b16 %v620
    %v1277 = vunpack.c.l.b16 %v621
    %v1278 = vunpack.c.l.b16 %v622
    %v1279 = vunpack.c.l.b16 %v623
    %v1280 = vunpack.c.l.b16 %v624
    %v1281 = vunpack.c.l.b16 %v625
    %v1282 = vunpack.c.l.b16 %v626
    %v1283 = vunpack.c.l.b16 %v627
    %v1284 = vunpack.c.l.b16 %v628
    %v1285 = vunpack.c.l.b16 %v629
    %v1286 = vunpack.c.l.b16 %v630
    %v1287 = vunpack.c.l.b16 %v631
    %v1288 = vunpack.c.l.b16 %v632
    %v1289 = vunpack.c.l.b16 %v633
    %v1290 = vunpack.c.l.b16 %v634
    %v1291 = vunpack.c.l.b16 %v635
    %v1292 = vunpack.c.l.b16 %v636
    %v1293 = vunpack.c.l.b16 %v637
    %v1294 = vunpack.c.l.b16 %v638
    %v1295 = vunpack.c.l.b16 %v639
    %v1296 = vunpack.c.l.b16 %v640
    %v1297 = vunpack.c.l.b16 %v641
    %v1298 = vunpack.c.l.b16 %v642
    %v1299 = vunpack.c.l.b16 %v643
    %v1300 = vunpack.c.l.b16 %v644
    %v1301 = vunpack.c.l.b16 %v645
    %v1302 = vunpack.c.l.b16 %v646
    %v1303 = vpack.c.b16 %v1160, %v1159
    %v1304 = vpack.c.b16 %v1162, %v1161
    %v1305 = vpack.c.b16 %v1164, %v1163
    %v1306 = vpack.c.b16 %v1166, %v1165
    %v1307 = vpack.c.b16 %v1168, %v1167
    %v1308 = vpack.c.b16 %v1170, %v1169
    %v1309 = vpack.c.b16 %v1172, %v1171
    %v1310 = vpack.c.b16 %v1174, %v1173
    %v1311 = vpack.c.b16 %v1176, %v1175
    %v1312 = vpack.c.b16 %v1178, %v1177
    %v1313 = vpack.c.b16 %v1180, %v1179
    %v1314 = vpack.c.b16 %v1182, %v1181
    %v1315 = vpack.c.b16 %v1184, %v1183
    %v1316 = vpack.c.b16 %v1186, %v1185
    %v1317 = vpack.c.b16 %v1188, %v1187
    %v1318 = vpack.c.b16 %v1190, %v1189
    %v1319 = vpack.c.b16 %v1192, %v1191
    %v1320 = vpack.c.b16 %v1194, %v1193
    %v1321 = vpack.c.b16 %v1196, %v1195
    %v1322 = vpack.c.b16 %v1198, %v1197
    %v1323 = vpack.c.b16 %v1200, %v1199
    %v1324 = vpack.c.b16 %v1202, %v1201
    %v1325 = vpack.c.b16 %v1204, %v1203
    %v1326 = vpack.c.b16 %v1206, %v1205
    %v1327 = vpack.c.b16 %v1208, %v1207
    %v1328 = vpack.c.b16 %v1210, %v1209
    %v1329 = vpack.c.b16 %v1212, %v1211
    %v1330 = vpack.c.b16 %v1214, %v1213
    %v1331 = vpack.c.b16 %v1216, %v1215
    %v1332 = vpack.c.b16 %v1218, %v1217
    %v1333 = vpack.c.b16 %v1220, %v1219
    %v1334 = vpack.c.b16 %v1222, %v1221
    %v1335 = vpack.c.b16 %v1224, %v1223
    %v1336 = vpack.c.b16 %v1226, %v1225
    %v1337 = vpack.c.b16 %v1228, %v1227
    %v1338 = vpack.c.b16 %v1230, %v1229
    %v1339 = vpack.c.b16 %v1232, %v1231
    %v1340 = vpack.c.b16 %v1234, %v1233
    %v1341 = vpack.c.b16 %v1236, %v1235
    %v1342 = vpack.c.b16 %v1238, %v1237
    %v1343 = vpack.c.b16 %v1240, %v1239
    %v1344 = vpack.c.b16 %v1242, %v1241
    %v1345 = vpack.c.b16 %v1244, %v1243
    %v1346 = vpack.c.b16 %v1246, %v1245
    %v1347 = vpack.c.b16 %v1248, %v1247
    %v1348 = vpack.c.b16 %v1250, %v1249
    %v1349 = vpack.c.b16 %v1252, %v1251
    %v1350 = vpack.c.b16 %v1254, %v1253
    %v1351 = vpack.c.b16 %v1256, %v1255
    %v1352 = vpack.c.b16 %v1258, %v1257
    %v1353 = vpack.c.b16 %v1260, %v1259
    %v1354 = vpack.c.b16 %v1262, %v1261
    %v1355 = vpack.c.b16 %v1264, %v1263
    %v1356 = vpack.c.b16 %v1266, %v1265
    %v1357 = vpack.c.b16 %v1268, %v1267
    %v1358 = vpack.c.b16 %v1270, %v1269
    %v1359 = vpack.c.b16 %v1272, %v1271
    %v1360 = vpack.c.b16 %v1274, %v1273
    %v1361 = vpack.c.b16 %v1276, %v1275
    %v1362 = vpack.c.b16 %v1278, %v1277
    %v1363 = vpack.c.b16 %v1280, %v1279
    %v1364 = vpack.c.b16 %v1282, %v1281
    %v1365 = vpack.c.b16 %v1284, %v1283
    %v1366 = vpack.c.b16 %v1286, %v1285
    %v1367 = vpack.c.b16 %v1288, %v1287
    %v1368 = vpack.c.b16 %v1290, %v1289
    %v1369 = vpack.c.b16 %v1292, %v1291
    %v1370 = vpack.c.b16 %v1294, %v1293
    %v1371 = vpack.c.b16 %v1296, %v1295
    %v1372 = vpack.c.b16 %v1298, %v1297
    %v1373 = vpack.c.b16 %v1300, %v1299
    %v1374 = vpack.c.b16 %v1302, %v1301
    %1447 = vmatprep.subr.bf16.mxu0 0
    %1448 = vmatpush1.bf16.msra.mxu0 %v1310
    %1449 = vmatprep.subr.bf16.mxu0 0
    %1450 = vmatpush1.bf16.msra.mxu0 %v1309
    %1451 = vmatprep.subr.bf16.mxu0 0
    %1452 = vmatpush1.bf16.msra.mxu0 %v1308
    %1453 = vmatprep.subr.bf16.mxu0 0
    %1454 = vmatpush1.bf16.msra.mxu0 %v1307
    %1455 = vmatprep.subr.bf16.mxu0 0
    %1456 = vmatpush1.bf16.msra.mxu0 %v1306
    %1457 = vmatprep.subr.bf16.mxu0 0
    %1458 = vmatpush1.bf16.msra.mxu0 %v1305
    %1459 = vmatprep.subr.bf16.mxu0 0
    %1460 = vmatpush1.bf16.msra.mxu0 %v1304
    %1461 = vmatprep.subr.bf16.mxu0 0
    %1462 = vmatpush1.bf16.msra.mxu0 %v1303
    %1463 = vmatprep.subr.bf16.mxu0 0
    %1464 = vmatpush2.bf16.msra.mxu0 %v1318
    %1465 = vmatprep.subr.bf16.mxu0 0
    %1466 = vmatpush2.bf16.msra.mxu0 %v1317
    %1467 = vmatprep.subr.bf16.mxu0 0
    %1468 = vmatpush2.bf16.msra.mxu0 %v1316
    %1469 = vmatprep.subr.bf16.mxu0 0
    %1470 = vmatpush2.bf16.msra.mxu0 %v1315
    %1471 = vmatprep.subr.bf16.mxu0 0
    %1472 = vmatpush2.bf16.msra.mxu0 %v1314
    %1473 = vmatprep.subr.bf16.mxu0 0
    %1474 = vmatpush2.bf16.msra.mxu0 %v1313
    %1475 = vmatprep.subr.bf16.mxu0 0
    %1476 = vmatpush2.bf16.msra.mxu0 %v1312
    %1477 = vmatprep.subr.bf16.mxu0 0
    %1478 = vmatpush2.bf16.msra.mxu0 %v1311
    %1479 = vmatprep.mubr.bf16.mxu0 %v872
    %1480 = vmatmul.mubr.bf16.gmra.mxu0 %v871
    %v1481 = vpop.f32.mrf.mxu0
    %v1482 = vadd.f32 0.0, %v1481
    %v1483 = vpop.f32.mrf.mxu0
    %v1484 = vpop.f32.mrf.mxu0
    %v1485 = vadd.f32 0.0, %v1484
    %v1486 = vpop.f32.mrf.mxu0
    %1487 = vmatprep.mubr.bf16.mxu0 %v881
    %1488 = vmatmul.mubr.bf16.gmra.mxu0 %v880
    %v1489 = vpop.f32.mrf.mxu0
    %v1490 = vadd.f32 0.0, %v1489
    %v1491 = vpop.f32.mrf.mxu0
    %v1492 = vpop.f32.mrf.mxu0
    %v1493 = vadd.f32 0.0, %v1492
    %v1494 = vpop.f32.mrf.mxu0
    %1495 = vmatprep.mubr.bf16.mxu0 %v890
    %1496 = vmatmul.mubr.bf16.gmra.mxu0 %v889
    %v1497 = vpop.f32.mrf.mxu0
    %v1498 = vadd.f32 0.0, %v1497
    %v1499 = vpop.f32.mrf.mxu0
    %v1500 = vpop.f32.mrf.mxu0
    %v1501 = vadd.f32 0.0, %v1500
    %v1502 = vpop.f32.mrf.mxu0
    %1503 = vmatprep.mubr.bf16.mxu0 %v899
    %1504 = vmatmul.mubr.bf16.gmra.mxu0 %v898
    %v1505 = vpop.f32.mrf.mxu0
    %v1506 = vadd.f32 0.0, %v1505
    %v1507 = vpop.f32.mrf.mxu0
    %v1508 = vpop.f32.mrf.mxu0
    %v1509 = vadd.f32 0.0, %v1508
    %v1510 = vpop.f32.mrf.mxu0
    %1511 = vmatprep.mubr.bf16.mxu0 %v908
    %1512 = vmatmul.mubr.bf16.gmra.mxu0 %v907
    %v1513 = vpop.f32.mrf.mxu0
    %v1514 = vadd.f32 0.0, %v1513
    %v1515 = vpop.f32.mrf.mxu0
    %v1516 = vpop.f32.mrf.mxu0
    %v1517 = vadd.f32 0.0, %v1516
    %v1518 = vpop.f32.mrf.mxu0
    %1519 = vmatprep.mubr.bf16.mxu0 %v917
    %1520 = vmatmul.mubr.bf16.gmra.mxu0 %v916
    %v1521 = vpop.f32.mrf.mxu0
    %v1522 = vadd.f32 0.0, %v1521
    %v1523 = vpop.f32.mrf.mxu0
    %v1524 = vpop.f32.mrf.mxu0
    %v1525 = vadd.f32 0.0, %v1524
    %v1526 = vpop.f32.mrf.mxu0
    %1527 = vmatprep.mubr.bf16.mxu0 %v926
    %1528 = vmatmul.mubr.bf16.gmra.mxu0 %v925
    %v1529 = vpop.f32.mrf.mxu0
    %v1530 = vadd.f32 0.0, %v1529
    %v1531 = vpop.f32.mrf.mxu0
    %v1532 = vpop.f32.mrf.mxu0
    %v1533 = vadd.f32 0.0, %v1532
    %v1534 = vpop.f32.mrf.mxu0
    %1535 = vmatprep.mubr.bf16.mxu0 %v935
    %1536 = vmatmul.mubr.bf16.gmra.mxu0 %v934
    %v1537 = vpop.f32.mrf.mxu0
    %v1538 = vadd.f32 0.0, %v1537
    %v1539 = vpop.f32.mrf.mxu0
    %v1540 = vpop.f32.mrf.mxu0
    %v1541 = vadd.f32 0.0, %v1540
    %v1542 = vpop.f32.mrf.mxu0
    %1543 = vdwg.mxu0
    %1544 = vmatprep.subr.bf16.mxu0 0
    %1545 = vmatpush1.bf16.msra.mxu0 %v1326
    %1546 = vmatprep.subr.bf16.mxu0 0
    %1547 = vmatpush1.bf16.msra.mxu0 %v1325
    %1548 = vmatprep.subr.bf16.mxu0 0
    %1549 = vmatpush1.bf16.msra.mxu0 %v1324
    %1550 = vmatprep.subr.bf16.mxu0 0
    %1551 = vmatpush1.bf16.msra.mxu0 %v1323
    %1552 = vmatprep.subr.bf16.mxu0 0
    %1553 = vmatpush1.bf16.msra.mxu0 %v1322
    %1554 = vmatprep.subr.bf16.mxu0 0
    %1555 = vmatpush1.bf16.msra.mxu0 %v1321
    %1556 = vmatprep.subr.bf16.mxu0 0
    %1557 = vmatpush1.bf16.msra.mxu0 %v1320
    %1558 = vmatprep.subr.bf16.mxu0 0
    %1559 = vmatpush1.bf16.msra.mxu0 %v1319
    %1560 = vmatprep.subr.bf16.mxu0 0
    %1561 = vmatpush2.bf16.msra.mxu0 %v1334
    %1562 = vmatprep.subr.bf16.mxu0 0
    %1563 = vmatpush2.bf16.msra.mxu0 %v1333
    %1564 = vmatprep.subr.bf16.mxu0 0
    %1565 = vmatpush2.bf16.msra.mxu0 %v1332
    %1566 = vmatprep.subr.bf16.mxu0 0
    %1567 = vmatpush2.bf16.msra.mxu0 %v1331
    %1568 = vmatprep.subr.bf16.mxu0 0
    %1569 = vmatpush2.bf16.msra.mxu0 %v1330
    %1570 = vmatprep.subr.bf16.mxu0 0
    %1571 = vmatpush2.bf16.msra.mxu0 %v1329
    %1572 = vmatprep.subr.bf16.mxu0 0
    %1573 = vmatpush2.bf16.msra.mxu0 %v1328
    %1574 = vmatprep.subr.bf16.mxu0 0
    %1575 = vmatpush2.bf16.msra.mxu0 %v1327
    %1576 = vmatprep.mubr.bf16.mxu0 %v874
    %1577 = vmatmul.mubr.bf16.gmra.mxu0 %v873
    %v1578 = vpop.f32.mrf.mxu0
    %v1579 = vadd.f32 %v1482, %v1578
    %v1580 = vpop.f32.mrf.mxu0
    %v1581 = vpop.f32.mrf.mxu0
    %v1582 = vadd.f32 %v1485, %v1581
    %v1583 = vpop.f32.mrf.mxu0
    %1584 = vmatprep.mubr.bf16.mxu0 %v883
    %1585 = vmatmul.mubr.bf16.gmra.mxu0 %v882
    %v1586 = vpop.f32.mrf.mxu0
    %v1587 = vadd.f32 %v1490, %v1586
    %v1588 = vpop.f32.mrf.mxu0
    %v1589 = vpop.f32.mrf.mxu0
    %v1590 = vadd.f32 %v1493, %v1589
    %v1591 = vpop.f32.mrf.mxu0
    %1592 = vmatprep.mubr.bf16.mxu0 %v892
    %1593 = vmatmul.mubr.bf16.gmra.mxu0 %v891
    %v1594 = vpop.f32.mrf.mxu0
    %v1595 = vadd.f32 %v1498, %v1594
    %v1596 = vpop.f32.mrf.mxu0
    %v1597 = vpop.f32.mrf.mxu0
    %v1598 = vadd.f32 %v1501, %v1597
    %v1599 = vpop.f32.mrf.mxu0
    %1600 = vmatprep.mubr.bf16.mxu0 %v901
    %1601 = vmatmul.mubr.bf16.gmra.mxu0 %v900
    %v1602 = vpop.f32.mrf.mxu0
    %v1603 = vadd.f32 %v1506, %v1602
    %v1604 = vpop.f32.mrf.mxu0
    %v1605 = vpop.f32.mrf.mxu0
    %v1606 = vadd.f32 %v1509, %v1605
    %v1607 = vpop.f32.mrf.mxu0
    %1608 = vmatprep.mubr.bf16.mxu0 %v910
    %1609 = vmatmul.mubr.bf16.gmra.mxu0 %v909
    %v1610 = vpop.f32.mrf.mxu0
    %v1611 = vadd.f32 %v1514, %v1610
    %v1612 = vpop.f32.mrf.mxu0
    %v1613 = vpop.f32.mrf.mxu0
    %v1614 = vadd.f32 %v1517, %v1613
    %v1615 = vpop.f32.mrf.mxu0
    %1616 = vmatprep.mubr.bf16.mxu0 %v919
    %1617 = vmatmul.mubr.bf16.gmra.mxu0 %v918
    %v1618 = vpop.f32.mrf.mxu0
    %v1619 = vadd.f32 %v1522, %v1618
    %v1620 = vpop.f32.mrf.mxu0
    %v1621 = vpop.f32.mrf.mxu0
    %v1622 = vadd.f32 %v1525, %v1621
    %v1623 = vpop.f32.mrf.mxu0
    %1624 = vmatprep.mubr.bf16.mxu0 %v928
    %1625 = vmatmul.mubr.bf16.gmra.mxu0 %v927
    %v1626 = vpop.f32.mrf.mxu0
    %v1627 = vadd.f32 %v1530, %v1626
    %v1628 = vpop.f32.mrf.mxu0
    %v1629 = vpop.f32.mrf.mxu0
    %v1630 = vadd.f32 %v1533, %v1629
    %v1631 = vpop.f32.mrf.mxu0
    %1632 = vmatprep.mubr.bf16.mxu0 %v937
    %1633 = vmatmul.mubr.bf16.gmra.mxu0 %v936
    %v1634 = vpop.f32.mrf.mxu0
    %v1635 = vadd.f32 %v1538, %v1634
    %v1636 = vpop.f32.mrf.mxu0
    %v1637 = vpop.f32.mrf.mxu0
    %v1638 = vadd.f32 %v1541, %v1637
    %v1639 = vpop.f32.mrf.mxu0
    %1640 = vdwg.mxu0
    %1641 = vmatprep.subr.bf16.mxu0 0
    %1642 = vmatpush1.bf16.msra.mxu0 %v1342
    %1643 = vmatprep.subr.bf16.mxu0 0
    %1644 = vmatpush1.bf16.msra.mxu0 %v1341
    %1645 = vmatprep.subr.bf16.mxu0 0
    %1646 = vmatpush1.bf16.msra.mxu0 %v1340
    %1647 = vmatprep.subr.bf16.mxu0 0
    %1648 = vmatpush1.bf16.msra.mxu0 %v1339
    %1649 = vmatprep.subr.bf16.mxu0 0
    %1650 = vmatpush1.bf16.msra.mxu0 %v1338
    %1651 = vmatprep.subr.bf16.mxu0 0
    %1652 = vmatpush1.bf16.msra.mxu0 %v1337
    %1653 = vmatprep.subr.bf16.mxu0 0
    %1654 = vmatpush1.bf16.msra.mxu0 %v1336
    %1655 = vmatprep.subr.bf16.mxu0 0
    %1656 = vmatpush1.bf16.msra.mxu0 %v1335
    %1657 = vmatprep.subr.bf16.mxu0 0
    %1658 = vmatpush2.bf16.msra.mxu0 %v1350
    %1659 = vmatprep.subr.bf16.mxu0 0
    %1660 = vmatpush2.bf16.msra.mxu0 %v1349
    %1661 = vmatprep.subr.bf16.mxu0 0
    %1662 = vmatpush2.bf16.msra.mxu0 %v1348
    %1663 = vmatprep.subr.bf16.mxu0 0
    %1664 = vmatpush2.bf16.msra.mxu0 %v1347
    %1665 = vmatprep.subr.bf16.mxu0 0
    %1666 = vmatpush2.bf16.msra.mxu0 %v1346
    %1667 = vmatprep.subr.bf16.mxu0 0
    %1668 = vmatpush2.bf16.msra.mxu0 %v1345
    %1669 = vmatprep.subr.bf16.mxu0 0
    %1670 = vmatpush2.bf16.msra.mxu0 %v1344
    %1671 = vmatprep.subr.bf16.mxu0 0
    %1672 = vmatpush2.bf16.msra.mxu0 %v1343
    %1673 = vmatprep.mubr.bf16.mxu0 %v876
    %1674 = vmatmul.mubr.bf16.gmra.mxu0 %v875
    %v1675 = vpop.f32.mrf.mxu0
    %v1676 = vadd.f32 %v1579, %v1675
    %v1677 = vpop.f32.mrf.mxu0
    %v1678 = vpop.f32.mrf.mxu0
    %v1679 = vadd.f32 %v1582, %v1678
    %v1680 = vpop.f32.mrf.mxu0
    %1681 = vmatprep.mubr.bf16.mxu0 %v885
    %1682 = vmatmul.mubr.bf16.gmra.mxu0 %v884
    %v1683 = vpop.f32.mrf.mxu0
    %v1684 = vadd.f32 %v1587, %v1683
    %v1685 = vpop.f32.mrf.mxu0
    %v1686 = vpop.f32.mrf.mxu0
    %v1687 = vadd.f32 %v1590, %v1686
    %v1688 = vpop.f32.mrf.mxu0
    %1689 = vmatprep.mubr.bf16.mxu0 %v894
    %1690 = vmatmul.mubr.bf16.gmra.mxu0 %v893
    %v1691 = vpop.f32.mrf.mxu0
    %v1692 = vadd.f32 %v1595, %v1691
    %v1693 = vpop.f32.mrf.mxu0
    %v1694 = vpop.f32.mrf.mxu0
    %v1695 = vadd.f32 %v1598, %v1694
    %v1696 = vpop.f32.mrf.mxu0
    %1697 = vmatprep.mubr.bf16.mxu0 %v903
    %1698 = vmatmul.mubr.bf16.gmra.mxu0 %v902
    %v1699 = vpop.f32.mrf.mxu0
    %v1700 = vadd.f32 %v1603, %v1699
    %v1701 = vpop.f32.mrf.mxu0
    %v1702 = vpop.f32.mrf.mxu0
    %v1703 = vadd.f32 %v1606, %v1702
    %v1704 = vpop.f32.mrf.mxu0
    %1705 = vmatprep.mubr.bf16.mxu0 %v912
    %1706 = vmatmul.mubr.bf16.gmra.mxu0 %v911
    %v1707 = vpop.f32.mrf.mxu0
    %v1708 = vadd.f32 %v1611, %v1707
    %v1709 = vpop.f32.mrf.mxu0
    %v1710 = vpop.f32.mrf.mxu0
    %v1711 = vadd.f32 %v1614, %v1710
    %v1712 = vpop.f32.mrf.mxu0
    %1713 = vmatprep.mubr.bf16.mxu0 %v921
    %1714 = vmatmul.mubr.bf16.gmra.mxu0 %v920
    %v1715 = vpop.f32.mrf.mxu0
    %v1716 = vadd.f32 %v1619, %v1715
    %v1717 = vpop.f32.mrf.mxu0
    %v1718 = vpop.f32.mrf.mxu0
    %v1719 = vadd.f32 %v1622, %v1718
    %v1720 = vpop.f32.mrf.mxu0
    %1721 = vmatprep.mubr.bf16.mxu0 %v930
    %1722 = vmatmul.mubr.bf16.gmra.mxu0 %v929
    %v1723 = vpop.f32.mrf.mxu0
    %v1724 = vadd.f32 %v1627, %v1723
    %v1725 = vpop.f32.mrf.mxu0
    %v1726 = vpop.f32.mrf.mxu0
    %v1727 = vadd.f32 %v1630, %v1726
    %v1728 = vpop.f32.mrf.mxu0
    %1729 = vmatprep.mubr.bf16.mxu0 %v939
    %1730 = vmatmul.mubr.bf16.gmra.mxu0 %v938
    %v1731 = vpop.f32.mrf.mxu0
    %v1732 = vadd.f32 %v1635, %v1731
    %v1733 = vpop.f32.mrf.mxu0
    %v1734 = vpop.f32.mrf.mxu0
    %v1735 = vadd.f32 %v1638, %v1734
    %v1736 = vpop.f32.mrf.mxu0
    %1737 = vdwg.mxu0
    %1738 = vmatprep.subr.bf16.mxu0 0
    %1739 = vmatpush1.bf16.msra.mxu0 %v1358
    %1740 = vmatprep.subr.bf16.mxu0 0
    %1741 = vmatpush1.bf16.msra.mxu0 %v1357
    %1742 = vmatprep.subr.bf16.mxu0 0
    %1743 = vmatpush1.bf16.msra.mxu0 %v1356
    %1744 = vmatprep.subr.bf16.mxu0 0
    %1745 = vmatpush1.bf16.msra.mxu0 %v1355
    %1746 = vmatprep.subr.bf16.mxu0 0
    %1747 = vmatpush1.bf16.msra.mxu0 %v1354
    %1748 = vmatprep.subr.bf16.mxu0 0
    %1749 = vmatpush1.bf16.msra.mxu0 %v1353
    %1750 = vmatprep.subr.bf16.mxu0 0
    %1751 = vmatpush1.bf16.msra.mxu0 %v1352
    %1752 = vmatprep.subr.bf16.mxu0 0
    %1753 = vmatpush1.bf16.msra.mxu0 %v1351
    %1754 = vmatprep.subr.bf16.mxu0 0
    %1755 = vmatpush2.bf16.msra.mxu0 %v1366
    %1756 = vmatprep.subr.bf16.mxu0 0
    %1757 = vmatpush2.bf16.msra.mxu0 %v1365
    %1758 = vmatprep.subr.bf16.mxu0 0
    %1759 = vmatpush2.bf16.msra.mxu0 %v1364
    %1760 = vmatprep.subr.bf16.mxu0 0
    %1761 = vmatpush2.bf16.msra.mxu0 %v1363
    %1762 = vmatprep.subr.bf16.mxu0 0
    %1763 = vmatpush2.bf16.msra.mxu0 %v1362
    %1764 = vmatprep.subr.bf16.mxu0 0
    %1765 = vmatpush2.bf16.msra.mxu0 %v1361
    %1766 = vmatprep.subr.bf16.mxu0 0
    %1767 = vmatpush2.bf16.msra.mxu0 %v1360
    %1768 = vmatprep.subr.bf16.mxu0 0
    %1769 = vmatpush2.bf16.msra.mxu0 %v1359
    %1770 = vmatprep.mubr.bf16.mxu0 %v878
    %1771 = vmatmul.mubr.bf16.gmra.mxu0 %v877
    %v1772 = vpop.f32.mrf.mxu0
    %v1773 = vadd.f32 %v1676, %v1772
    %v1774 = vpop.f32.mrf.mxu0
    %v1775 = vpop.f32.mrf.mxu0
    %v1776 = vadd.f32 %v1679, %v1775
    %v1777 = vpop.f32.mrf.mxu0
    %1778 = vmatprep.mubr.bf16.mxu0 %v887
    %1779 = vmatmul.mubr.bf16.gmra.mxu0 %v886
    %v1780 = vpop.f32.mrf.mxu0
    %v1781 = vadd.f32 %v1684, %v1780
    %v1782 = vpop.f32.mrf.mxu0
    %v1783 = vpop.f32.mrf.mxu0
    %v1784 = vadd.f32 %v1687, %v1783
    %v1785 = vpop.f32.mrf.mxu0
    %1786 = vmatprep.mubr.bf16.mxu0 %v896
    %1787 = vmatmul.mubr.bf16.gmra.mxu0 %v895
    %v1788 = vpop.f32.mrf.mxu0
    %v1789 = vadd.f32 %v1692, %v1788
    %v1790 = vpop.f32.mrf.mxu0
    %v1791 = vpop.f32.mrf.mxu0
    %v1792 = vadd.f32 %v1695, %v1791
    %v1793 = vpop.f32.mrf.mxu0
    %1794 = vmatprep.mubr.bf16.mxu0 %v905
    %1795 = vmatmul.mubr.bf16.gmra.mxu0 %v904
    %v1796 = vpop.f32.mrf.mxu0
    %v1797 = vadd.f32 %v1700, %v1796
    %v1798 = vpop.f32.mrf.mxu0
    %v1799 = vpop.f32.mrf.mxu0
    %v1800 = vadd.f32 %v1703, %v1799
    %v1801 = vpop.f32.mrf.mxu0
    %1802 = vmatprep.mubr.bf16.mxu0 %v914
    %1803 = vmatmul.mubr.bf16.gmra.mxu0 %v913
    %v1804 = vpop.f32.mrf.mxu0
    %v1805 = vadd.f32 %v1708, %v1804
    %v1806 = vpop.f32.mrf.mxu0
    %v1807 = vpop.f32.mrf.mxu0
    %v1808 = vadd.f32 %v1711, %v1807
    %v1809 = vpop.f32.mrf.mxu0
    %1810 = vmatprep.mubr.bf16.mxu0 %v923
    %1811 = vmatmul.mubr.bf16.gmra.mxu0 %v922
    %v1812 = vpop.f32.mrf.mxu0
    %v1813 = vadd.f32 %v1716, %v1812
    %v1814 = vpop.f32.mrf.mxu0
    %v1815 = vpop.f32.mrf.mxu0
    %v1816 = vadd.f32 %v1719, %v1815
    %v1817 = vpop.f32.mrf.mxu0
    %1818 = vmatprep.mubr.bf16.mxu0 %v932
    %1819 = vmatmul.mubr.bf16.gmra.mxu0 %v931
    %v1820 = vpop.f32.mrf.mxu0
    %v1821 = vadd.f32 %v1724, %v1820
    %v1822 = vpop.f32.mrf.mxu0
    %v1823 = vpop.f32.mrf.mxu0
    %v1824 = vadd.f32 %v1727, %v1823
    %v1825 = vpop.f32.mrf.mxu0
    %1826 = vmatprep.mubr.bf16.mxu0 %v941
    %1827 = vmatmul.mubr.bf16.gmra.mxu0 %v940
    %v1828 = vpop.f32.mrf.mxu0
    %v1829 = vadd.f32 %v1732, %v1828
    %v1830 = vpop.f32.mrf.mxu0
    %v1831 = vpop.f32.mrf.mxu0
    %v1832 = vadd.f32 %v1735, %v1831
    %v1833 = vpop.f32.mrf.mxu0
    %1834 = vdwg.mxu0
    %1835 = vmatprep.subr.bf16.mxu0 0
    %1836 = vmatpush1.bf16.msra.mxu0 %v1374
    %1837 = vmatprep.subr.bf16.mxu0 0
    %1838 = vmatpush1.bf16.msra.mxu0 %v1373
    %1839 = vmatprep.subr.bf16.mxu0 0
    %1840 = vmatpush1.bf16.msra.mxu0 %v1372
    %1841 = vmatprep.subr.bf16.mxu0 0
    %1842 = vmatpush1.bf16.msra.mxu0 %v1371
    %1843 = vmatprep.subr.bf16.mxu0 0
    %1844 = vmatpush1.bf16.msra.mxu0 %v1370
    %1845 = vmatprep.subr.bf16.mxu0 0
    %1846 = vmatpush1.bf16.msra.mxu0 %v1369
    %1847 = vmatprep.subr.bf16.mxu0 0
    %1848 = vmatpush1.bf16.msra.mxu0 %v1368
    %1849 = vmatprep.subr.bf16.mxu0 0
    %1850 = vmatpush1.bf16.msra.mxu0 %v1367
    %1851 = vmatprep.subr.bf16.mxu0 0
    %1852 = vmatpush2.bf16.msra.mxu0 0
    %1853 = vmatprep.subr.bf16.mxu0 0
    %1854 = vmatpush2.bf16.msra.mxu0 0
    %1855 = vmatprep.subr.bf16.mxu0 0
    %1856 = vmatpush2.bf16.msra.mxu0 0
    %1857 = vmatprep.subr.bf16.mxu0 0
    %1858 = vmatpush2.bf16.msra.mxu0 0
    %1859 = vmatprep.subr.bf16.mxu0 0
    %1860 = vmatpush2.bf16.msra.mxu0 0
    %1861 = vmatprep.subr.bf16.mxu0 0
    %1862 = vmatpush2.bf16.msra.mxu0 0
    %1863 = vmatprep.subr.bf16.mxu0 0
    %1864 = vmatpush2.bf16.msra.mxu0 0
    %1865 = vmatprep.subr.bf16.mxu0 0
    %1866 = vmatpush2.bf16.msra.mxu0 0
    %1867 = vmatprep.mubr.bf16.mxu0 0
    %1868 = vmatmul.mubr.bf16.gmra.mxu0 %v879
    %v1869 = vpop.f32.mrf.mxu0
    %v1870 = vadd.f32 %v1773, %v1869
    %v1871 = vpop.f32.mrf.mxu0
    %v1872 = vpop.f32.mrf.mxu0
    %v1873 = vadd.f32 %v1776, %v1872
    %v1874 = vpop.f32.mrf.mxu0
    %1875 = vmatprep.mubr.bf16.mxu0 0
    %1876 = vmatmul.mubr.bf16.gmra.mxu0 %v888
    %v1877 = vpop.f32.mrf.mxu0
    %v1878 = vadd.f32 %v1781, %v1877
    %v1879 = vpop.f32.mrf.mxu0
    %v1880 = vpop.f32.mrf.mxu0
    %v1881 = vadd.f32 %v1784, %v1880
    %v1882 = vpop.f32.mrf.mxu0
    %1883 = vmatprep.mubr.bf16.mxu0 0
    %1884 = vmatmul.mubr.bf16.gmra.mxu0 %v897
    %v1885 = vpop.f32.mrf.mxu0
    %v1886 = vadd.f32 %v1789, %v1885
    %v1887 = vpop.f32.mrf.mxu0
    %v1888 = vpop.f32.mrf.mxu0
    %v1889 = vadd.f32 %v1792, %v1888
    %v1890 = vpop.f32.mrf.mxu0
    %1891 = vmatprep.mubr.bf16.mxu0 0
    %1892 = vmatmul.mubr.bf16.gmra.mxu0 %v906
    %v1893 = vpop.f32.mrf.mxu0
    %v1894 = vadd.f32 %v1797, %v1893
    %v1895 = vpop.f32.mrf.mxu0
    %v1896 = vpop.f32.mrf.mxu0
    %v1897 = vadd.f32 %v1800, %v1896
    %v1898 = vpop.f32.mrf.mxu0
    %1899 = vmatprep.mubr.bf16.mxu0 0
    %1900 = vmatmul.mubr.bf16.gmra.mxu0 %v915
    %v1901 = vpop.f32.mrf.mxu0
    %v1902 = vadd.f32 %v1805, %v1901
    %v1903 = vpop.f32.mrf.mxu0
    %v1904 = vpop.f32.mrf.mxu0
    %v1905 = vadd.f32 %v1808, %v1904
    %v1906 = vpop.f32.mrf.mxu0
    %1907 = vmatprep.mubr.bf16.mxu0 0
    %1908 = vmatmul.mubr.bf16.gmra.mxu0 %v924
    %v1909 = vpop.f32.mrf.mxu0
    %v1910 = vadd.f32 %v1813, %v1909
    %v1911 = vpop.f32.mrf.mxu0
    %v1912 = vpop.f32.mrf.mxu0
    %v1913 = vadd.f32 %v1816, %v1912
    %v1914 = vpop.f32.mrf.mxu0
    %1915 = vmatprep.mubr.bf16.mxu0 0
    %1916 = vmatmul.mubr.bf16.gmra.mxu0 %v933
    %v1917 = vpop.f32.mrf.mxu0
    %v1918 = vadd.f32 %v1821, %v1917
    %v1919 = vpop.f32.mrf.mxu0
    %v1920 = vpop.f32.mrf.mxu0
    %v1921 = vadd.f32 %v1824, %v1920
    %v1922 = vpop.f32.mrf.mxu0
    %1923 = vmatprep.mubr.bf16.mxu0 0
    %1924 = vmatmul.mubr.bf16.gmra.mxu0 %v942
    %v1925 = vpop.f32.mrf.mxu0
    %v1926 = vadd.f32 %v1829, %v1925
    %v1927 = vpop.f32.mrf.mxu0
    %v1928 = vpop.f32.mrf.mxu0
    %v1929 = vadd.f32 %v1832, %v1928
    %v1930 = vpop.f32.mrf.mxu0
    %1931 = vdwg.mxu0
    %v1932 = vld [vmem:[%s3] sm:$0x1]
    %v1933 = vld [vmem:[#allocation10] sm:$0x1]
    %v1934 = vadd.f32 %v1870, %v1873
    %v1935 = vadd.f32 %v1934, %v1878
    %v1936 = vadd.f32 %v1935, %v1881
    %v1937 = vadd.f32 %v1936, %v1886
    %v1938 = vadd.f32 %v1937, %v1889
    %v1939 = vadd.f32 %v1938, %v1894
    %v1940 = vadd.f32 %v1939, %v1897
    %v1941 = vadd.f32 %v1940, %v1902
    %v1942 = vadd.f32 %v1941, %v1905
    %v1943 = vadd.f32 %v1942, %v1910
    %v1944 = vadd.f32 %v1943, %v1913
    %v1945 = vadd.f32 %v1944, %v1918
    %v1946 = vadd.f32 %v1945, %v1921
    %v1947 = vadd.f32 %v1946, %v1926
    %v1948 = vadd.f32 %v1947, %v1929
    %v1949 = vrot.slane %v1948, 4
    %v1950 = vadd.f32 %v1948, %v1949
    %v1951 = vrot.slane %v1950, 2
    %v1952 = vadd.f32 %v1950, %v1951
    %v1953 = vrot.slane %v1952, 1
    %v1954 = vadd.f32 %v1952, %v1953
    %1955 = vrot.lane.b32.xlu0 %v1954, 16
    %v1956 = vpop.permute.xlu0 %1955
    %v1957 = vadd.f32 %v1954, %v1956
    %1958 = vrot.lane.b32.xlu0 %v1957, 32
    %v1959 = vpop.permute.xlu0 %1958
    %v1960 = vadd.f32 %v1957, %v1959
    %1961 = vrot.lane.b32.xlu0 %v1960, 64
    %v1962 = vpop.permute.xlu0 %1961
    %v1963 = vadd.f32 %v1960, %v1962
    %v1964 = vmul.f32 %v1963, 0.0009765625
    %v1965 = vlaneseq
    %v1966 = vshrl.u32 %v1965, 7
    %v1967 = vsub.s32 0, %v1966
    %v1968 = vrot.slane %v1964, %v1967
    %v1969 = vsub.f32 %v1870, %v1968
    %v1970 = vsub.f32 %v1873, %v1968
    %v1971 = vsub.f32 %v1878, %v1968
    %v1972 = vsub.f32 %v1881, %v1968
    %v1973 = vsub.f32 %v1886, %v1968
    %v1974 = vsub.f32 %v1889, %v1968
    %v1975 = vsub.f32 %v1894, %v1968
    %v1976 = vsub.f32 %v1897, %v1968
    %v1977 = vsub.f32 %v1902, %v1968
    %v1978 = vsub.f32 %v1905, %v1968
    %v1979 = vsub.f32 %v1910, %v1968
    %v1980 = vsub.f32 %v1913, %v1968
    %v1981 = vsub.f32 %v1918, %v1968
    %v1982 = vsub.f32 %v1921, %v1968
    %v1983 = vsub.f32 %v1926, %v1968
    %v1984 = vsub.f32 %v1929, %v1968
    %v1985 = vmul.f32 %v1969, %v1969
    %v1986 = vmul.f32 %v1970, %v1970
    %v1987 = vmul.f32 %v1971, %v1971
    %v1988 = vmul.f32 %v1972, %v1972
    %v1989 = vmul.f32 %v1973, %v1973
    %v1990 = vmul.f32 %v1974, %v1974
    %v1991 = vmul.f32 %v1975, %v1975
    %v1992 = vmul.f32 %v1976, %v1976
    %v1993 = vmul.f32 %v1977, %v1977
    %v1994 = vmul.f32 %v1978, %v1978
    %v1995 = vmul.f32 %v1979, %v1979
    %v1996 = vmul.f32 %v1980, %v1980
    %v1997 = vmul.f32 %v1981, %v1981
    %v1998 = vmul.f32 %v1982, %v1982
    %v1999 = vmul.f32 %v1983, %v1983
    %v2000 = vmul.f32 %v1984, %v1984
    %v2001 = vadd.f32 %v1985, %v1986
    %v2002 = vadd.f32 %v2001, %v1987
    %v2003 = vadd.f32 %v2002, %v1988
    %v2004 = vadd.f32 %v2003, %v1989
    %v2005 = vadd.f32 %v2004, %v1990
    %v2006 = vadd.f32 %v2005, %v1991
    %v2007 = vadd.f32 %v2006, %v1992
    %v2008 = vadd.f32 %v2007, %v1993
    %v2009 = vadd.f32 %v2008, %v1994
    %v2010 = vadd.f32 %v2009, %v1995
    %v2011 = vadd.f32 %v2010, %v1996
    %v2012 = vadd.f32 %v2011, %v1997
    %v2013 = vadd.f32 %v2012, %v1998
    %v2014 = vadd.f32 %v2013, %v1999
    %v2015 = vadd.f32 %v2014, %v2000
    %v2016 = vrot.slane %v2015, 4
    %v2017 = vadd.f32 %v2015, %v2016
    %v2018 = vrot.slane %v2017, 2
    %v2019 = vadd.f32 %v2017, %v2018
    %v2020 = vrot.slane %v2019, 1
    %v2021 = vadd.f32 %v2019, %v2020
    %2022 = vrot.lane.b32.xlu0 %v2021, 16
    %v2023 = vpop.permute.xlu0 %2022
    %v2024 = vadd.f32 %v2021, %v2023
    %2025 = vrot.lane.b32.xlu0 %v2024, 32
    %v2026 = vpop.permute.xlu0 %2025
    %v2027 = vadd.f32 %v2024, %v2026
    %2028 = vrot.lane.b32.xlu0 %v2027, 64
    %v2029 = vpop.permute.xlu0 %2028
    %v2030 = vadd.f32 %v2027, %v2029
    %v2031 = vmul.f32 %v2030, 0.0009765625
    %v2032 = vadd.f32 %v2031, 1e-05
    %v2033 = vrsqrt.pop %v2032
    %v2034 = vmul.f32 %v1932, %v2033
    %v2036 = vlaneseq
    %v2037 = vshrl.u32 %v2036, 7
    %v2038 = vsub.s32 0, %v2037
    %v2039 = vrot.slane %v2034, %v2038
    %v2041 = vmul.f32 %v1969, %v2039
    %v2042 = vmul.f32 %v1970, %v2039
    %v2043 = vmul.f32 %v1971, %v2039
    %v2044 = vmul.f32 %v1972, %v2039
    %v2045 = vmul.f32 %v1973, %v2039
    %v2046 = vmul.f32 %v1974, %v2039
    %v2047 = vmul.f32 %v1975, %v2039
    %v2048 = vmul.f32 %v1976, %v2039
    %v2049 = vmul.f32 %v1977, %v2039
    %v2050 = vmul.f32 %v1978, %v2039
    %v2051 = vmul.f32 %v1979, %v2039
    %v2052 = vmul.f32 %v1980, %v2039
    %v2053 = vmul.f32 %v1981, %v2039
    %v2054 = vmul.f32 %v1982, %v2039
    %v2055 = vmul.f32 %v1983, %v2039
    %v2056 = vmul.f32 %v1984, %v2039
    %v2058 = vlaneseq
    %v2059 = vshrl.u32 %v2058, 7
    %v2060 = vsub.s32 0, %v2059
    %v2061 = vrot.slane %v1933, %v2060
    %v2063 = vadd.f32 %v2041, %v2061
    %v2064 = vadd.f32 %v2042, %v2061
    %v2065 = vadd.f32 %v2043, %v2061
    %v2066 = vadd.f32 %v2044, %v2061
    %v2067 = vadd.f32 %v2045, %v2061
    %v2068 = vadd.f32 %v2046, %v2061
    %v2069 = vadd.f32 %v2047, %v2061
    %v2070 = vadd.f32 %v2048, %v2061
    %v2071 = vadd.f32 %v2049, %v2061
    %v2072 = vadd.f32 %v2050, %v2061
    %v2073 = vadd.f32 %v2051, %v2061
    %v2074 = vadd.f32 %v2052, %v2061
    %v2075 = vadd.f32 %v2053, %v2061
    %v2076 = vadd.f32 %v2054, %v2061
    %v2077 = vadd.f32 %v2055, %v2061
    %v2078 = vadd.f32 %v2056, %v2061
    %v2079 = vmax.f32 %v2063, 0.0
    %v2080 = vmax.f32 %v2064, 0.0
    %v2081 = vmax.f32 %v2065, 0.0
    %v2082 = vmax.f32 %v2066, 0.0
    %v2083 = vmax.f32 %v2067, 0.0
    %v2084 = vmax.f32 %v2068, 0.0
    %v2085 = vmax.f32 %v2069, 0.0
    %v2086 = vmax.f32 %v2070, 0.0
    %v2087 = vmax.f32 %v2071, 0.0
    %v2088 = vmax.f32 %v2072, 0.0
    %v2089 = vmax.f32 %v2073, 0.0
    %v2090 = vmax.f32 %v2074, 0.0
    %v2091 = vmax.f32 %v2075, 0.0
    %v2092 = vmax.f32 %v2076, 0.0
    %v2093 = vmax.f32 %v2077, 0.0
    %v2094 = vmax.f32 %v2078, 0.0
    %2095 = vst [vmem:[%s97 + $0x1] sm:$0xff] %v2079
    %2096 = vst [vmem:[%s97 + $0x11] sm:$0xff] %v2080
    %2097 = vst [vmem:[%s97 + $0x21] sm:$0xff] %v2081
    %2098 = vst [vmem:[%s97 + $0x31] sm:$0xff] %v2082
    %2099 = vst [vmem:[%s97 + $0x41] sm:$0xff] %v2083
    %2100 = vst [vmem:[%s97 + $0x51] sm:$0xff] %v2084
    %2101 = vst [vmem:[%s97 + $0x61] sm:$0xff] %v2085
    %2102 = vst [vmem:[%s97 + $0x71] sm:$0xff] %v2086
    %2103 = vst [vmem:[%s97 + $0xa1] sm:$0xff] %v2087
    %2104 = vst [vmem:[%s97 + $0xb1] sm:$0xff] %v2088
    %2105 = vst [vmem:[%s97 + $0xc1] sm:$0xff] %v2089
    %2106 = vst [vmem:[%s97 + $0xd1] sm:$0xff] %v2090
    %2107 = vst [vmem:[%s97 + $0xe1] sm:$0xff] %v2091
    %2108 = vst [vmem:[%s97 + $0xf1] sm:$0xff] %v2092
    %2109 = vst [vmem:[%s97 + $0x101] sm:$0xff] %v2093
    %2110 = vst [vmem:[%s97 + $0x111] sm:$0xff] %v2094
    %2111 = vst [vmem:[%s97] sm:$0x1] %v2079
    %2112 = vst [vmem:[%s97 + $0x10] sm:$0x1] %v2080
    %2113 = vst [vmem:[%s97 + $0x20] sm:$0x1] %v2081
    %2114 = vst [vmem:[%s97 + $0x30] sm:$0x1] %v2082
    %2115 = vst [vmem:[%s97 + $0x40] sm:$0x1] %v2083
    %2116 = vst [vmem:[%s97 + $0x50] sm:$0x1] %v2084
    %2117 = vst [vmem:[%s97 + $0x60] sm:$0x1] %v2085
    %2118 = vst [vmem:[%s97 + $0x70] sm:$0x1] %v2086
    %2119 = vst [vmem:[%s97 + $0xa0] sm:$0x1] %v2087
    %2120 = vst [vmem:[%s97 + $0xb0] sm:$0x1] %v2088
    %2121 = vst [vmem:[%s97 + $0xc0] sm:$0x1] %v2089
    %2122 = vst [vmem:[%s97 + $0xd0] sm:$0x1] %v2090
    %2123 = vst [vmem:[%s97 + $0xe0] sm:$0x1] %v2091
    %2124 = vst [vmem:[%s97 + $0xf0] sm:$0x1] %v2092
    %2125 = vst [vmem:[%s97 + $0x100] sm:$0x1] %v2093
    %2126 = vst [vmem:[%s97 + $0x110] sm:$0x1] %v2094
    %2127 = vst [vmem:[%s97 + $0x2] sm:$0x80] %v2079
    %2128 = vst [vmem:[%s97 + $0x12] sm:$0x80] %v2080
    %2129 = vst [vmem:[%s97 + $0x22] sm:$0x80] %v2081
    %2130 = vst [vmem:[%s97 + $0x32] sm:$0x80] %v2082
    %2131 = vst [vmem:[%s97 + $0x42] sm:$0x80] %v2083
    %2132 = vst [vmem:[%s97 + $0x52] sm:$0x80] %v2084
    %2133 = vst [vmem:[%s97 + $0x62] sm:$0x80] %v2085
    %2134 = vst [vmem:[%s97 + $0x72] sm:$0x80] %v2086
    %2135 = vst [vmem:[%s97 + $0xa2] sm:$0x80] %v2087
    %2136 = vst [vmem:[%s97 + $0xb2] sm:$0x80] %v2088
    %2137 = vst [vmem:[%s97 + $0xc2] sm:$0x80] %v2089
    %2138 = vst [vmem:[%s97 + $0xd2] sm:$0x80] %v2090
    %2139 = vst [vmem:[%s97 + $0xe2] sm:$0x80] %v2091
    %2140 = vst [vmem:[%s97 + $0xf2] sm:$0x80] %v2092
    %2141 = vst [vmem:[%s97 + $0x102] sm:$0x80] %v2093
    %2142 = vst [vmem:[%s97 + $0x112] sm:$0x80] %v2094
    %2143 = vst [vmem:[#allocation2 + $0x1] sm:$0xff] %v2079
    %2144 = vst [vmem:[#allocation2 + $0xa1] sm:$0xff] %v2087
    %2145 = vst [vmem:[#allocation2] sm:$0x1] %v2079
    %2146 = vst [vmem:[#allocation2 + $0xa0] sm:$0x1] %v2087
    %2147 = vst [vmem:[#allocation2 + $0x2] sm:$0x80] %v2079
    %2148 = vst [vmem:[#allocation2 + $0xa2] sm:$0x80] %v2087
    %2149 = vst [vmem:[%s152 + $0x1] sm:$0xff] %v2086
    %2150 = vst [vmem:[%s152 + $0xa1] sm:$0xff] %v2094
    %2151 = vst [vmem:[%s152] sm:$0x1] %v2086
    %2152 = vst [vmem:[%s152 + $0xa0] sm:$0x1] %v2094
    %2153 = vst [vmem:[%s152 + $0x2] sm:$0x80] %v2086
    %2154 = vst [vmem:[%s152 + $0xa2] sm:$0x80] %v2094
    %v2155 = vld [vmem:[#allocation2] sm:$0xff]
    %v2156 = vld [vmem:[#allocation2 + $0x10] sm:$0xff]
    %v2157 = vld [vmem:[#allocation2 + $0x20] sm:$0xff]
    %v2158 = vld [vmem:[#allocation2 + $0x30] sm:$0xff]
    %v2159 = vld [vmem:[#allocation2 + $0x40] sm:$0xff]
    %v2160 = vld [vmem:[#allocation2 + $0x50] sm:$0xff]
    %v2161 = vld [vmem:[#allocation2 + $0x60] sm:$0xff]
    %v2162 = vld [vmem:[#allocation2 + $0x70] sm:$0xff]
    %v2163 = vld [vmem:[#allocation2 + $0x80] sm:$0xff]
    %v2164 = vld [vmem:[#allocation2 + $0x90] sm:$0xff]
    %v2165 = vld [vmem:[#allocation2 + $0xa0] sm:$0xff]
    %v2166 = vld [vmem:[#allocation2 + $0xb0] sm:$0xff]
    %v2167 = vld [vmem:[#allocation2 + $0xc0] sm:$0xff]
    %v2168 = vld [vmem:[#allocation2 + $0xd0] sm:$0xff]
    %v2169 = vld [vmem:[#allocation2 + $0xe0] sm:$0xff]
    %v2170 = vld [vmem:[#allocation2 + $0xf0] sm:$0xff]
    %v2171 = vld [vmem:[#allocation2 + $0x100] sm:$0xff]
    %v2172 = vld [vmem:[#allocation2 + $0x110] sm:$0xff]
    %v2173 = vld [vmem:[#allocation2 + $0x120] sm:$0xff]
    %v2174 = vld [vmem:[#allocation2 + $0x130] sm:$0xff]
    %v2175 = vpack.c.bf16 %v2155, %v2155
    %v2176 = vpack.c.bf16 %v2156, %v2156
    %v2177 = vpack.c.bf16 %v2157, %v2157
    %v2178 = vpack.c.bf16 %v2158, %v2158
    %v2179 = vpack.c.bf16 %v2159, %v2159
    %v2180 = vpack.c.bf16 %v2160, %v2160
    %v2181 = vpack.c.bf16 %v2161, %v2161
    %v2182 = vpack.c.bf16 %v2162, %v2162
    %v2183 = vpack.c.bf16 %v2163, %v2163
    %v2184 = vpack.c.bf16 %v2164, %v2164
    %v2185 = vpack.c.bf16 %v2165, %v2165
    %v2186 = vpack.c.bf16 %v2166, %v2166
    %v2187 = vpack.c.bf16 %v2167, %v2167
    %v2188 = vpack.c.bf16 %v2168, %v2168
    %v2189 = vpack.c.bf16 %v2169, %v2169
    %v2190 = vpack.c.bf16 %v2170, %v2170
    %v2191 = vpack.c.bf16 %v2171, %v2171
    %v2192 = vpack.c.bf16 %v2172, %v2172
    %v2193 = vpack.c.bf16 %v2173, %v2173
    %v2194 = vpack.c.bf16 %v2174, %v2174
    %2195 = vst [vmem:[#allocation3] sm:$0xf] %v2175
    %2196 = vst [vmem:[#allocation3 + $0x24] sm:$0xf] %v2176
    %2197 = vst [vmem:[#allocation3 + $0x48] sm:$0xf] %v2177
    %2198 = vst [vmem:[#allocation3 + $0x6c] sm:$0xf] %v2178
    %2199 = vst [vmem:[#allocation3 + $0x90] sm:$0xf] %v2179
    %2200 = vst [vmem:[#allocation3 + $0xb4] sm:$0xf] %v2180
    %2201 = vst [vmem:[#allocation3 + $0xd8] sm:$0xf] %v2181
    %2202 = vst [vmem:[#allocation3 + $0xfc] sm:$0xf] %v2182
    %2203 = vst [vmem:[#allocation3 + $0x120] sm:$0xf] %v2185
    %2204 = vst [vmem:[#allocation3 + $0x144] sm:$0xf] %v2186
    %2205 = vst [vmem:[#allocation3 + $0x168] sm:$0xf] %v2187
    %2206 = vst [vmem:[#allocation3 + $0x18c] sm:$0xf] %v2188
    %2207 = vst [vmem:[#allocation3 + $0x1b0] sm:$0xf] %v2189
    %2208 = vst [vmem:[#allocation3 + $0x1d4] sm:$0xf] %v2190
    %2209 = vst [vmem:[#allocation3 + $0x1f8] sm:$0xf] %v2191
    %2210 = vst [vmem:[#allocation3 + $0x21c] sm:$0xf] %v2192
    %2211 = vst [vmem:[#allocation3 + $0x4] sm:$0xf] %v2176
    %2212 = vst [vmem:[#allocation3 + $0x28] sm:$0xf] %v2177
    %2213 = vst [vmem:[#allocation3 + $0x4c] sm:$0xf] %v2178
    %2214 = vst [vmem:[#allocation3 + $0x70] sm:$0xf] %v2179
    %2215 = vst [vmem:[#allocation3 + $0x94] sm:$0xf] %v2180
    %2216 = vst [vmem:[#allocation3 + $0xb8] sm:$0xf] %v2181
    %2217 = vst [vmem:[#allocation3 + $0xdc] sm:$0xf] %v2182
    %2218 = vst [vmem:[#allocation3 + $0x100] sm:$0xf] %v2183
    %2219 = vst [vmem:[#allocation3 + $0x124] sm:$0xf] %v2186
    %2220 = vst [vmem:[#allocation3 + $0x148] sm:$0xf] %v2187
    %2221 = vst [vmem:[#allocation3 + $0x16c] sm:$0xf] %v2188
    %2222 = vst [vmem:[#allocation3 + $0x190] sm:$0xf] %v2189
    %2223 = vst [vmem:[#allocation3 + $0x1b4] sm:$0xf] %v2190
    %2224 = vst [vmem:[#allocation3 + $0x1d8] sm:$0xf] %v2191
    %2225 = vst [vmem:[#allocation3 + $0x1fc] sm:$0xf] %v2192
    %2226 = vst [vmem:[#allocation3 + $0x220] sm:$0xf] %v2193
    %2227 = vst [vmem:[#allocation3 + $0x8] sm:$0xf] %v2177
    %2228 = vst [vmem:[#allocation3 + $0x2c] sm:$0xf] %v2178
    %2229 = vst [vmem:[#allocation3 + $0x50] sm:$0xf] %v2179
    %2230 = vst [vmem:[#allocation3 + $0x74] sm:$0xf] %v2180
    %2231 = vst [vmem:[#allocation3 + $0x98] sm:$0xf] %v2181
    %2232 = vst [vmem:[#allocation3 + $0xbc] sm:$0xf] %v2182
    %2233 = vst [vmem:[#allocation3 + $0xe0] sm:$0xf] %v2183
    %2234 = vst [vmem:[#allocation3 + $0x104] sm:$0xf] %v2184
    %2235 = vst [vmem:[#allocation3 + $0x128] sm:$0xf] %v2187
    %2236 = vst [vmem:[#allocation3 + $0x14c] sm:$0xf] %v2188
    %2237 = vst [vmem:[#allocation3 + $0x170] sm:$0xf] %v2189
    %2238 = vst [vmem:[#allocation3 + $0x194] sm:$0xf] %v2190
    %2239 = vst [vmem:[#allocation3 + $0x1b8] sm:$0xf] %v2191
    %2240 = vst [vmem:[#allocation3 + $0x1dc] sm:$0xf] %v2192
    %2241 = vst [vmem:[#allocation3 + $0x200] sm:$0xf] %v2193
    %2242 = vst [vmem:[#allocation3 + $0x224] sm:$0xf] %v2194
    %v2243 = vld [vmem:[#allocation2 + $0x1] sm:$0xff]
    %v2244 = vld [vmem:[#allocation2 + $0x11] sm:$0xff]
    %v2245 = vld [vmem:[#allocation2 + $0x21] sm:$0xff]
    %v2246 = vld [vmem:[#allocation2 + $0x31] sm:$0xff]
    %v2247 = vld [vmem:[#allocation2 + $0x41] sm:$0xff]
    %v2248 = vld [vmem:[#allocation2 + $0x51] sm:$0xff]
    %v2249 = vld [vmem:[#allocation2 + $0x61] sm:$0xff]
    %v2250 = vld [vmem:[#allocation2 + $0x71] sm:$0xff]
    %v2251 = vld [vmem:[#allocation2 + $0x81] sm:$0xff]
    %v2252 = vld [vmem:[#allocation2 + $0x91] sm:$0xff]
    %v2253 = vld [vmem:[#allocation2 + $0xa1] sm:$0xff]
    %v2254 = vld [vmem:[#allocation2 + $0xb1] sm:$0xff]
    %v2255 = vld [vmem:[#allocation2 + $0xc1] sm:$0xff]
    %v2256 = vld [vmem:[#allocation2 + $0xd1] sm:$0xff]
    %v2257 = vld [vmem:[#allocation2 + $0xe1] sm:$0xff]
    %v2258 = vld [vmem:[#allocation2 + $0xf1] sm:$0xff]
    %v2259 = vld [vmem:[#allocation2 + $0x101] sm:$0xff]
    %v2260 = vld [vmem:[#allocation2 + $0x111] sm:$0xff]
    %v2261 = vld [vmem:[#allocation2 + $0x121] sm:$0xff]
    %v2262 = vld [vmem:[#allocation2 + $0x131] sm:$0xff]
    %v2263 = vpack.c.bf16 %v2243, %v2243
    %v2264 = vpack.c.bf16 %v2244, %v2244
    %v2265 = vpack.c.bf16 %v2245, %v2245
    %v2266 = vpack.c.bf16 %v2246, %v2246
    %v2267 = vpack.c.bf16 %v2247, %v2247
    %v2268 = vpack.c.bf16 %v2248, %v2248
    %v2269 = vpack.c.bf16 %v2249, %v2249
    %v2270 = vpack.c.bf16 %v2250, %v2250
    %v2271 = vpack.c.bf16 %v2251, %v2251
    %v2272 = vpack.c.bf16 %v2252, %v2252
    %v2273 = vpack.c.bf16 %v2253, %v2253
    %v2274 = vpack.c.bf16 %v2254, %v2254
    %v2275 = vpack.c.bf16 %v2255, %v2255
    %v2276 = vpack.c.bf16 %v2256, %v2256
    %v2277 = vpack.c.bf16 %v2257, %v2257
    %v2278 = vpack.c.bf16 %v2258, %v2258
    %v2279 = vpack.c.bf16 %v2259, %v2259
    %v2280 = vpack.c.bf16 %v2260, %v2260
    %v2281 = vpack.c.bf16 %v2261, %v2261
    %v2282 = vpack.c.bf16 %v2262, %v2262
    %2283 = vst [vmem:[#allocation3 + $0xc] sm:$0xf] %v2263
    %2284 = vst [vmem:[#allocation3 + $0x30] sm:$0xf] %v2264
    %2285 = vst [vmem:[#allocation3 + $0x54] sm:$0xf] %v2265
    %2286 = vst [vmem:[#allocation3 + $0x78] sm:$0xf] %v2266
    %2287 = vst [vmem:[#allocation3 + $0x9c] sm:$0xf] %v2267
    %2288 = vst [vmem:[#allocation3 + $0xc0] sm:$0xf] %v2268
    %2289 = vst [vmem:[#allocation3 + $0xe4] sm:$0xf] %v2269
    %2290 = vst [vmem:[#allocation3 + $0x108] sm:$0xf] %v2270
    %2291 = vst [vmem:[#allocation3 + $0x12c] sm:$0xf] %v2273
    %2292 = vst [vmem:[#allocation3 + $0x150] sm:$0xf] %v2274
    %2293 = vst [vmem:[#allocation3 + $0x174] sm:$0xf] %v2275
    %2294 = vst [vmem:[#allocation3 + $0x198] sm:$0xf] %v2276
    %2295 = vst [vmem:[#allocation3 + $0x1bc] sm:$0xf] %v2277
    %2296 = vst [vmem:[#allocation3 + $0x1e0] sm:$0xf] %v2278
    %2297 = vst [vmem:[#allocation3 + $0x204] sm:$0xf] %v2279
    %2298 = vst [vmem:[#allocation3 + $0x228] sm:$0xf] %v2280
    %2299 = vst [vmem:[#allocation3 + $0x10] sm:$0xf] %v2264
    %2300 = vst [vmem:[#allocation3 + $0x34] sm:$0xf] %v2265
    %2301 = vst [vmem:[#allocation3 + $0x58] sm:$0xf] %v2266
    %2302 = vst [vmem:[#allocation3 + $0x7c] sm:$0xf] %v2267
    %2303 = vst [vmem:[#allocation3 + $0xa0] sm:$0xf] %v2268
    %2304 = vst [vmem:[#allocation3 + $0xc4] sm:$0xf] %v2269
    %2305 = vst [vmem:[#allocation3 + $0xe8] sm:$0xf] %v2270
    %2306 = vst [vmem:[#allocation3 + $0x10c] sm:$0xf] %v2271
    %2307 = vst [vmem:[#allocation3 + $0x130] sm:$0xf] %v2274
    %2308 = vst [vmem:[#allocation3 + $0x154] sm:$0xf] %v2275
    %2309 = vst [vmem:[#allocation3 + $0x178] sm:$0xf] %v2276
    %2310 = vst [vmem:[#allocation3 + $0x19c] sm:$0xf] %v2277
    %2311 = vst [vmem:[#allocation3 + $0x1c0] sm:$0xf] %v2278
    %2312 = vst [vmem:[#allocation3 + $0x1e4] sm:$0xf] %v2279
    %2313 = vst [vmem:[#allocation3 + $0x208] sm:$0xf] %v2280
    %2314 = vst [vmem:[#allocation3 + $0x22c] sm:$0xf] %v2281
    %2315 = vst [vmem:[#allocation3 + $0x14] sm:$0xf] %v2265
    %2316 = vst [vmem:[#allocation3 + $0x38] sm:$0xf] %v2266
    %2317 = vst [vmem:[#allocation3 + $0x5c] sm:$0xf] %v2267
    %2318 = vst [vmem:[#allocation3 + $0x80] sm:$0xf] %v2268
    %2319 = vst [vmem:[#allocation3 + $0xa4] sm:$0xf] %v2269
    %2320 = vst [vmem:[#allocation3 + $0xc8] sm:$0xf] %v2270
    %2321 = vst [vmem:[#allocation3 + $0xec] sm:$0xf] %v2271
    %2322 = vst [vmem:[#allocation3 + $0x110] sm:$0xf] %v2272
    %2323 = vst [vmem:[#allocation3 + $0x134] sm:$0xf] %v2275
    %2324 = vst [vmem:[#allocation3 + $0x158] sm:$0xf] %v2276
    %2325 = vst [vmem:[#allocation3 + $0x17c] sm:$0xf] %v2277
    %2326 = vst [vmem:[#allocation3 + $0x1a0] sm:$0xf] %v2278
    %2327 = vst [vmem:[#allocation3 + $0x1c4] sm:$0xf] %v2279
    %2328 = vst [vmem:[#allocation3 + $0x1e8] sm:$0xf] %v2280
    %2329 = vst [vmem:[#allocation3 + $0x20c] sm:$0xf] %v2281
    %2330 = vst [vmem:[#allocation3 + $0x230] sm:$0xf] %v2282
    %v2331 = vld [vmem:[#allocation2 + $0x2] sm:$0xff]
    %v2332 = vld [vmem:[#allocation2 + $0x12] sm:$0xff]
    %v2333 = vld [vmem:[#allocation2 + $0x22] sm:$0xff]
    %v2334 = vld [vmem:[#allocation2 + $0x32] sm:$0xff]
    %v2335 = vld [vmem:[#allocation2 + $0x42] sm:$0xff]
    %v2336 = vld [vmem:[#allocation2 + $0x52] sm:$0xff]
    %v2337 = vld [vmem:[#allocation2 + $0x62] sm:$0xff]
    %v2338 = vld [vmem:[#allocation2 + $0x72] sm:$0xff]
    %v2339 = vld [vmem:[#allocation2 + $0x82] sm:$0xff]
    %v2340 = vld [vmem:[#allocation2 + $0x92] sm:$0xff]
    %v2341 = vld [vmem:[#allocation2 + $0xa2] sm:$0xff]
    %v2342 = vld [vmem:[#allocation2 + $0xb2] sm:$0xff]
    %v2343 = vld [vmem:[#allocation2 + $0xc2] sm:$0xff]
    %v2344 = vld [vmem:[#allocation2 + $0xd2] sm:$0xff]
    %v2345 = vld [vmem:[#allocation2 + $0xe2] sm:$0xff]
    %v2346 = vld [vmem:[#allocation2 + $0xf2] sm:$0xff]
    %v2347 = vld [vmem:[#allocation2 + $0x102] sm:$0xff]
    %v2348 = vld [vmem:[#allocation2 + $0x112] sm:$0xff]
    %v2349 = vld [vmem:[#allocation2 + $0x122] sm:$0xff]
    %v2350 = vld [vmem:[#allocation2 + $0x132] sm:$0xff]
    %v2351 = vpack.c.bf16 %v2331, %v2331
    %v2352 = vpack.c.bf16 %v2332, %v2332
    %v2353 = vpack.c.bf16 %v2333, %v2333
    %v2354 = vpack.c.bf16 %v2334, %v2334
    %v2355 = vpack.c.bf16 %v2335, %v2335
    %v2356 = vpack.c.bf16 %v2336, %v2336
    %v2357 = vpack.c.bf16 %v2337, %v2337
    %v2358 = vpack.c.bf16 %v2338, %v2338
    %v2359 = vpack.c.bf16 %v2339, %v2339
    %v2360 = vpack.c.bf16 %v2340, %v2340
    %v2361 = vpack.c.bf16 %v2341, %v2341
    %v2362 = vpack.c.bf16 %v2342, %v2342
    %v2363 = vpack.c.bf16 %v2343, %v2343
    %v2364 = vpack.c.bf16 %v2344, %v2344
    %v2365 = vpack.c.bf16 %v2345, %v2345
    %v2366 = vpack.c.bf16 %v2346, %v2346
    %v2367 = vpack.c.bf16 %v2347, %v2347
    %v2368 = vpack.c.bf16 %v2348, %v2348
    %v2369 = vpack.c.bf16 %v2349, %v2349
    %v2370 = vpack.c.bf16 %v2350, %v2350
    %2371 = vst [vmem:[#allocation3 + $0x18] sm:$0xf] %v2351
    %2372 = vst [vmem:[#allocation3 + $0x3c] sm:$0xf] %v2352
    %2373 = vst [vmem:[#allocation3 + $0x60] sm:$0xf] %v2353
    %2374 = vst [vmem:[#allocation3 + $0x84] sm:$0xf] %v2354
    %2375 = vst [vmem:[#allocation3 + $0xa8] sm:$0xf] %v2355
    %2376 = vst [vmem:[#allocation3 + $0xcc] sm:$0xf] %v2356
    %2377 = vst [vmem:[#allocation3 + $0xf0] sm:$0xf] %v2357
    %2378 = vst [vmem:[#allocation3 + $0x114] sm:$0xf] %v2358
    %2379 = vst [vmem:[#allocation3 + $0x138] sm:$0xf] %v2361
    %2380 = vst [vmem:[#allocation3 + $0x15c] sm:$0xf] %v2362
    %2381 = vst [vmem:[#allocation3 + $0x180] sm:$0xf] %v2363
    %2382 = vst [vmem:[#allocation3 + $0x1a4] sm:$0xf] %v2364
    %2383 = vst [vmem:[#allocation3 + $0x1c8] sm:$0xf] %v2365
    %2384 = vst [vmem:[#allocation3 + $0x1ec] sm:$0xf] %v2366
    %2385 = vst [vmem:[#allocation3 + $0x210] sm:$0xf] %v2367
    %2386 = vst [vmem:[#allocation3 + $0x234] sm:$0xf] %v2368
    %2387 = vst [vmem:[#allocation3 + $0x1c] sm:$0xf] %v2352
    %2388 = vst [vmem:[#allocation3 + $0x40] sm:$0xf] %v2353
    %2389 = vst [vmem:[#allocation3 + $0x64] sm:$0xf] %v2354
    %2390 = vst [vmem:[#allocation3 + $0x88] sm:$0xf] %v2355
    %2391 = vst [vmem:[#allocation3 + $0xac] sm:$0xf] %v2356
    %2392 = vst [vmem:[#allocation3 + $0xd0] sm:$0xf] %v2357
    %2393 = vst [vmem:[#allocation3 + $0xf4] sm:$0xf] %v2358
    %2394 = vst [vmem:[#allocation3 + $0x118] sm:$0xf] %v2359
    %2395 = vst [vmem:[#allocation3 + $0x13c] sm:$0xf] %v2362
    %2396 = vst [vmem:[#allocation3 + $0x160] sm:$0xf] %v2363
    %2397 = vst [vmem:[#allocation3 + $0x184] sm:$0xf] %v2364
    %2398 = vst [vmem:[#allocation3 + $0x1a8] sm:$0xf] %v2365
    %2399 = vst [vmem:[#allocation3 + $0x1cc] sm:$0xf] %v2366
    %2400 = vst [vmem:[#allocation3 + $0x1f0] sm:$0xf] %v2367
    %2401 = vst [vmem:[#allocation3 + $0x214] sm:$0xf] %v2368
    %2402 = vst [vmem:[#allocation3 + $0x238] sm:$0xf] %v2369
    %2403 = vst [vmem:[#allocation3 + $0x20] sm:$0xf] %v2353
    %2404 = vst [vmem:[#allocation3 + $0x44] sm:$0xf] %v2354
    %2405 = vst [vmem:[#allocation3 + $0x68] sm:$0xf] %v2355
    %2406 = vst [vmem:[#allocation3 + $0x8c] sm:$0xf] %v2356
    %2407 = vst [vmem:[#allocation3 + $0xb0] sm:$0xf] %v2357
    %2408 = vst [vmem:[#allocation3 + $0xd4] sm:$0xf] %v2358
    %2409 = vst [vmem:[#allocation3 + $0xf8] sm:$0xf] %v2359
    %2410 = vst [vmem:[#allocation3 + $0x11c] sm:$0xf] %v2360
    %2411 = vst [vmem:[#allocation3 + $0x140] sm:$0xf] %v2363
    %2412 = vst [vmem:[#allocation3 + $0x164] sm:$0xf] %v2364
    %2413 = vst [vmem:[#allocation3 + $0x188] sm:$0xf] %v2365
    %2414 = vst [vmem:[#allocation3 + $0x1ac] sm:$0xf] %v2366
    %2415 = vst [vmem:[#allocation3 + $0x1d0] sm:$0xf] %v2367
    %2416 = vst [vmem:[#allocation3 + $0x1f4] sm:$0xf] %v2368
    %2417 = vst [vmem:[#allocation3 + $0x218] sm:$0xf] %v2369
    %2418 = vst [vmem:[#allocation3 + $0x23c] sm:$0xf] %v2370
    %v2419 = vld [vmem:[#allocation3] sm:$0xff]
    %v2420 = vld [vmem:[#allocation3 + $0x8] sm:$0xff]
    %v2421 = vld [vmem:[#allocation3 + $0x10] sm:$0xff]
    %v2422 = vld [vmem:[#allocation3 + $0x18] sm:$0xff]
    %v2423 = vld [vmem:[#allocation3 + $0x20] sm:$0xf]
    %v2424 = vld [vmem:[#allocation3 + $0x24] sm:$0xff]
    %v2425 = vld [vmem:[#allocation3 + $0x2c] sm:$0xff]
    %v2426 = vld [vmem:[#allocation3 + $0x34] sm:$0xff]
    %v2427 = vld [vmem:[#allocation3 + $0x3c] sm:$0xff]
    %v2428 = vld [vmem:[#allocation3 + $0x44] sm:$0xf]
    %v2429 = vld [vmem:[#allocation3 + $0x48] sm:$0xff]
    %v2430 = vld [vmem:[#allocation3 + $0x50] sm:$0xff]
    %v2431 = vld [vmem:[#allocation3 + $0x58] sm:$0xff]
    %v2432 = vld [vmem:[#allocation3 + $0x60] sm:$0xff]
    %v2433 = vld [vmem:[#allocation3 + $0x68] sm:$0xf]
    %v2434 = vld [vmem:[#allocation3 + $0x6c] sm:$0xff]
    %v2435 = vld [vmem:[#allocation3 + $0x74] sm:$0xff]
    %v2436 = vld [vmem:[#allocation3 + $0x7c] sm:$0xff]
    %v2437 = vld [vmem:[#allocation3 + $0x84] sm:$0xff]
    %v2438 = vld [vmem:[#allocation3 + $0x8c] sm:$0xf]
    %v2439 = vld [vmem:[#allocation3 + $0x90] sm:$0xff]
    %v2440 = vld [vmem:[#allocation3 + $0x98] sm:$0xff]
    %v2441 = vld [vmem:[#allocation3 + $0xa0] sm:$0xff]
    %v2442 = vld [vmem:[#allocation3 + $0xa8] sm:$0xff]
    %v2443 = vld [vmem:[#allocation3 + $0xb0] sm:$0xf]
    %v2444 = vld [vmem:[#allocation3 + $0xb4] sm:$0xff]
    %v2445 = vld [vmem:[#allocation3 + $0xbc] sm:$0xff]
    %v2446 = vld [vmem:[#allocation3 + $0xc4] sm:$0xff]
    %v2447 = vld [vmem:[#allocation3 + $0xcc] sm:$0xff]
    %v2448 = vld [vmem:[#allocation3 + $0xd4] sm:$0xf]
    %v2449 = vld [vmem:[#allocation3 + $0xd8] sm:$0xff]
    %v2450 = vld [vmem:[#allocation3 + $0xe0] sm:$0xff]
    %v2451 = vld [vmem:[#allocation3 + $0xe8] sm:$0xff]
    %v2452 = vld [vmem:[#allocation3 + $0xf0] sm:$0xff]
    %v2453 = vld [vmem:[#allocation3 + $0xf8] sm:$0xf]
    %v2454 = vld [vmem:[#allocation3 + $0xfc] sm:$0xff]
    %v2455 = vld [vmem:[#allocation3 + $0x104] sm:$0xff]
    %v2456 = vld [vmem:[#allocation3 + $0x10c] sm:$0xff]
    %v2457 = vld [vmem:[#allocation3 + $0x114] sm:$0xff]
    %v2458 = vld [vmem:[#allocation3 + $0x11c] sm:$0xf]
    %v2459 = vld [vmem:[#allocation3 + $0x120] sm:$0xff]
    %v2460 = vld [vmem:[#allocation3 + $0x128] sm:$0xff]
    %v2461 = vld [vmem:[#allocation3 + $0x130] sm:$0xff]
    %v2462 = vld [vmem:[#allocation3 + $0x138] sm:$0xff]
    %v2463 = vld [vmem:[#allocation3 + $0x140] sm:$0xf]
    %v2464 = vld [vmem:[#allocation3 + $0x144] sm:$0xff]
    %v2465 = vld [vmem:[#allocation3 + $0x14c] sm:$0xff]
    %v2466 = vld [vmem:[#allocation3 + $0x154] sm:$0xff]
    %v2467 = vld [vmem:[#allocation3 + $0x15c] sm:$0xff]
    %v2468 = vld [vmem:[#allocation3 + $0x164] sm:$0xf]
    %v2469 = vld [vmem:[#allocation3 + $0x168] sm:$0xff]
    %v2470 = vld [vmem:[#allocation3 + $0x170] sm:$0xff]
    %v2471 = vld [vmem:[#allocation3 + $0x178] sm:$0xff]
    %v2472 = vld [vmem:[#allocation3 + $0x180] sm:$0xff]
    %v2473 = vld [vmem:[#allocation3 + $0x188] sm:$0xf]
    %v2474 = vld [vmem:[#allocation3 + $0x18c] sm:$0xff]
    %v2475 = vld [vmem:[#allocation3 + $0x194] sm:$0xff]
    %v2476 = vld [vmem:[#allocation3 + $0x19c] sm:$0xff]
    %v2477 = vld [vmem:[#allocation3 + $0x1a4] sm:$0xff]
    %v2478 = vld [vmem:[#allocation3 + $0x1ac] sm:$0xf]
    %v2479 = vld [vmem:[#allocation3 + $0x1b0] sm:$0xff]
    %v2480 = vld [vmem:[#allocation3 + $0x1b8] sm:$0xff]
    %v2481 = vld [vmem:[#allocation3 + $0x1c0] sm:$0xff]
    %v2482 = vld [vmem:[#allocation3 + $0x1c8] sm:$0xff]
    %v2483 = vld [vmem:[#allocation3 + $0x1d0] sm:$0xf]
    %v2484 = vld [vmem:[#allocation3 + $0x1d4] sm:$0xff]
    %v2485 = vld [vmem:[#allocation3 + $0x1dc] sm:$0xff]
    %v2486 = vld [vmem:[#allocation3 + $0x1e4] sm:$0xff]
    %v2487 = vld [vmem:[#allocation3 + $0x1ec] sm:$0xff]
    %v2488 = vld [vmem:[#allocation3 + $0x1f4] sm:$0xf]
    %v2489 = vld [vmem:[#allocation3 + $0x1f8] sm:$0xff]
    %v2490 = vld [vmem:[#allocation3 + $0x200] sm:$0xff]
    %v2491 = vld [vmem:[#allocation3 + $0x208] sm:$0xff]
    %v2492 = vld [vmem:[#allocation3 + $0x210] sm:$0xff]
    %v2493 = vld [vmem:[#allocation3 + $0x218] sm:$0xf]
    %v2494 = vld [vmem:[#allocation3 + $0x21c] sm:$0xff]
    %v2495 = vld [vmem:[#allocation3 + $0x224] sm:$0xff]
    %v2496 = vld [vmem:[#allocation3 + $0x22c] sm:$0xff]
    %v2497 = vld [vmem:[#allocation3 + $0x234] sm:$0xff]
    %v2498 = vld [vmem:[#allocation3 + $0x23c] sm:$0xf]
    %v2499 = vld [vmem:[#allocation9] sm:$0xf]
    %v2500 = vld [vmem:[#allocation9 + $0x4] sm:$0xf]
    %v2501 = vld [vmem:[#allocation9 + $0x8] sm:$0xf]
    %v2502 = vld [vmem:[#allocation9 + $0xc] sm:$0xf]
    %v2503 = vld [vmem:[#allocation9 + $0x10] sm:$0xf]
    %v2504 = vld [vmem:[#allocation9 + $0x14] sm:$0xf]
    %v2505 = vld [vmem:[#allocation9 + $0x18] sm:$0xf]
    %v2506 = vld [vmem:[#allocation9 + $0x1c] sm:$0xf]
    %v2507 = vld [vmem:[#allocation9 + $0x20] sm:$0xf]
    %v2508 = vld [vmem:[#allocation9 + $0x24] sm:$0xf]
    %v2509 = vld [vmem:[#allocation9 + $0x28] sm:$0xf]
    %v2510 = vld [vmem:[#allocation9 + $0x2c] sm:$0xf]
    %v2511 = vld [vmem:[#allocation9 + $0x30] sm:$0xf]
    %v2512 = vld [vmem:[#allocation9 + $0x34] sm:$0xf]
    %v2513 = vld [vmem:[#allocation9 + $0x38] sm:$0xf]
    %v2514 = vld [vmem:[#allocation9 + $0x3c] sm:$0xf]
    %v2515 = vld [vmem:[#allocation9 + $0x40] sm:$0xf]
    %v2516 = vld [vmem:[#allocation9 + $0x44] sm:$0xf]
    %v2517 = vld [vmem:[#allocation9 + $0x48] sm:$0xf]
    %v2518 = vld [vmem:[#allocation9 + $0x4c] sm:$0xf]
    %v2519 = vld [vmem:[#allocation9 + $0x50] sm:$0xf]
    %v2520 = vld [vmem:[#allocation9 + $0x54] sm:$0xf]
    %v2521 = vld [vmem:[#allocation9 + $0x58] sm:$0xf]
    %v2522 = vld [vmem:[#allocation9 + $0x5c] sm:$0xf]
    %v2523 = vld [vmem:[#allocation9 + $0x60] sm:$0xf]
    %v2524 = vld [vmem:[#allocation9 + $0x64] sm:$0xf]
    %v2525 = vld [vmem:[#allocation9 + $0x68] sm:$0xf]
    %v2526 = vld [vmem:[#allocation9 + $0x6c] sm:$0xf]
    %v2527 = vld [vmem:[#allocation9 + $0x70] sm:$0xf]
    %v2528 = vld [vmem:[#allocation9 + $0x74] sm:$0xf]
    %v2529 = vld [vmem:[#allocation9 + $0x78] sm:$0xf]
    %v2530 = vld [vmem:[#allocation9 + $0x7c] sm:$0xf]
    %v2531 = vld [vmem:[#allocation9 + $0x80] sm:$0xf]
    %v2532 = vld [vmem:[#allocation9 + $0x84] sm:$0xf]
    %v2533 = vld [vmem:[#allocation9 + $0x88] sm:$0xf]
    %v2534 = vld [vmem:[#allocation9 + $0x8c] sm:$0xf]
    %v2535 = vld [vmem:[#allocation9 + $0x90] sm:$0xf]
    %v2536 = vld [vmem:[#allocation9 + $0x94] sm:$0xf]
    %v2537 = vld [vmem:[#allocation9 + $0x98] sm:$0xf]
    %v2538 = vld [vmem:[#allocation9 + $0x9c] sm:$0xf]
    %v2539 = vld [vmem:[#allocation9 + $0xa0] sm:$0xf]
    %v2540 = vld [vmem:[#allocation9 + $0xa4] sm:$0xf]
    %v2541 = vld [vmem:[#allocation9 + $0xa8] sm:$0xf]
    %v2542 = vld [vmem:[#allocation9 + $0xac] sm:$0xf]
    %v2543 = vld [vmem:[#allocation9 + $0xb0] sm:$0xf]
    %v2544 = vld [vmem:[#allocation9 + $0xb4] sm:$0xf]
    %v2545 = vld [vmem:[#allocation9 + $0xb8] sm:$0xf]
    %v2546 = vld [vmem:[#allocation9 + $0xbc] sm:$0xf]
    %v2547 = vld [vmem:[#allocation9 + $0xc0] sm:$0xf]
    %v2548 = vld [vmem:[#allocation9 + $0xc4] sm:$0xf]
    %v2549 = vld [vmem:[#allocation9 + $0xc8] sm:$0xf]
    %v2550 = vld [vmem:[#allocation9 + $0xcc] sm:$0xf]
    %v2551 = vld [vmem:[#allocation9 + $0xd0] sm:$0xf]
    %v2552 = vld [vmem:[#allocation9 + $0xd4] sm:$0xf]
    %v2553 = vld [vmem:[#allocation9 + $0xd8] sm:$0xf]
    %v2554 = vld [vmem:[#allocation9 + $0xdc] sm:$0xf]
    %v2555 = vld [vmem:[#allocation9 + $0xe0] sm:$0xf]
    %v2556 = vld [vmem:[#allocation9 + $0xe4] sm:$0xf]
    %v2557 = vld [vmem:[#allocation9 + $0xe8] sm:$0xf]
    %v2558 = vld [vmem:[#allocation9 + $0xec] sm:$0xf]
    %v2559 = vld [vmem:[#allocation9 + $0xf0] sm:$0xf]
    %v2560 = vld [vmem:[#allocation9 + $0xf4] sm:$0xf]
    %v2561 = vld [vmem:[#allocation9 + $0xf8] sm:$0xf]
    %v2562 = vld [vmem:[#allocation9 + $0xfc] sm:$0xf]
    %v2563 = vld [vmem:[#allocation9 + $0x100] sm:$0xf]
    %v2564 = vld [vmem:[#allocation9 + $0x104] sm:$0xf]
    %v2565 = vld [vmem:[#allocation9 + $0x108] sm:$0xf]
    %v2566 = vld [vmem:[#allocation9 + $0x10c] sm:$0xf]
    %v2567 = vld [vmem:[#allocation9 + $0x110] sm:$0xf]
    %v2568 = vld [vmem:[#allocation9 + $0x114] sm:$0xf]
    %v2569 = vld [vmem:[#allocation9 + $0x118] sm:$0xf]
    %v2570 = vld [vmem:[#allocation9 + $0x11c] sm:$0xf]
    %v2571 = vld [vmem:[#allocation9 + $0x120] sm:$0xf]
    %v2572 = vld [vmem:[#allocation9 + $0x124] sm:$0xf]
    %v2573 = vld [vmem:[#allocation9 + $0x128] sm:$0xf]
    %v2574 = vld [vmem:[#allocation9 + $0x12c] sm:$0xf]
    %v2575 = vld [vmem:[#allocation9 + $0x130] sm:$0xf]
    %v2576 = vld [vmem:[#allocation9 + $0x134] sm:$0xf]
    %v2577 = vld [vmem:[#allocation9 + $0x138] sm:$0xf]
    %v2578 = vld [vmem:[#allocation9 + $0x13c] sm:$0xf]
    %v2579 = vld [vmem:[#allocation9 + $0x140] sm:$0xf]
    %v2580 = vld [vmem:[#allocation9 + $0x144] sm:$0xf]
    %v2581 = vld [vmem:[#allocation9 + $0x148] sm:$0xf]
    %v2582 = vld [vmem:[#allocation9 + $0x14c] sm:$0xf]
    %v2583 = vld [vmem:[#allocation9 + $0x150] sm:$0xf]
    %v2584 = vld [vmem:[#allocation9 + $0x154] sm:$0xf]
    %v2585 = vld [vmem:[#allocation9 + $0x158] sm:$0xf]
    %v2586 = vld [vmem:[#allocation9 + $0x15c] sm:$0xf]
    %v2587 = vld [vmem:[#allocation9 + $0x160] sm:$0xf]
    %v2588 = vld [vmem:[#allocation9 + $0x164] sm:$0xf]
    %v2589 = vld [vmem:[#allocation9 + $0x168] sm:$0xf]
    %v2590 = vld [vmem:[#allocation9 + $0x16c] sm:$0xf]
    %v2591 = vld [vmem:[#allocation9 + $0x170] sm:$0xf]
    %v2592 = vld [vmem:[#allocation9 + $0x174] sm:$0xf]
    %v2593 = vld [vmem:[#allocation9 + $0x178] sm:$0xf]
    %v2594 = vld [vmem:[#allocation9 + $0x17c] sm:$0xf]
    %v2595 = vld [vmem:[#allocation9 + $0x180] sm:$0xf]
    %v2596 = vld [vmem:[#allocation9 + $0x184] sm:$0xf]
    %v2597 = vld [vmem:[#allocation9 + $0x188] sm:$0xf]
    %v2598 = vld [vmem:[#allocation9 + $0x18c] sm:$0xf]
    %v2599 = vld [vmem:[#allocation9 + $0x190] sm:$0xf]
    %v2600 = vld [vmem:[#allocation9 + $0x194] sm:$0xf]
    %v2601 = vld [vmem:[#allocation9 + $0x198] sm:$0xf]
    %v2602 = vld [vmem:[#allocation9 + $0x19c] sm:$0xf]
    %v2603 = vld [vmem:[#allocation9 + $0x1a0] sm:$0xf]
    %v2604 = vld [vmem:[#allocation9 + $0x1a4] sm:$0xf]
    %v2605 = vld [vmem:[#allocation9 + $0x1a8] sm:$0xf]
    %v2606 = vld [vmem:[#allocation9 + $0x1ac] sm:$0xf]
    %v2607 = vld [vmem:[#allocation9 + $0x1b0] sm:$0xf]
    %v2608 = vld [vmem:[#allocation9 + $0x1b4] sm:$0xf]
    %v2609 = vld [vmem:[#allocation9 + $0x1b8] sm:$0xf]
    %v2610 = vld [vmem:[#allocation9 + $0x1bc] sm:$0xf]
    %v2611 = vld [vmem:[#allocation9 + $0x1c0] sm:$0xf]
    %v2612 = vld [vmem:[#allocation9 + $0x1c4] sm:$0xf]
    %v2613 = vld [vmem:[#allocation9 + $0x1c8] sm:$0xf]
    %v2614 = vld [vmem:[#allocation9 + $0x1cc] sm:$0xf]
    %v2615 = vld [vmem:[#allocation9 + $0x1d0] sm:$0xf]
    %v2616 = vld [vmem:[#allocation9 + $0x1d4] sm:$0xf]
    %v2617 = vld [vmem:[#allocation9 + $0x1d8] sm:$0xf]
    %v2618 = vld [vmem:[#allocation9 + $0x1dc] sm:$0xf]
    %v2619 = vld [vmem:[#allocation9 + $0x1e0] sm:$0xf]
    %v2620 = vld [vmem:[#allocation9 + $0x1e4] sm:$0xf]
    %v2621 = vld [vmem:[#allocation9 + $0x1e8] sm:$0xf]
    %v2622 = vld [vmem:[#allocation9 + $0x1ec] sm:$0xf]
    %v2623 = vld [vmem:[#allocation9 + $0x1f0] sm:$0xf]
    %v2624 = vld [vmem:[#allocation9 + $0x1f4] sm:$0xf]
    %v2625 = vld [vmem:[#allocation9 + $0x1f8] sm:$0xf]
    %v2626 = vld [vmem:[#allocation9 + $0x1fc] sm:$0xf]
    %v2627 = vld [vmem:[#allocation9 + $0x200] sm:$0xf]
    %v2628 = vld [vmem:[#allocation9 + $0x204] sm:$0xf]
    %v2629 = vld [vmem:[#allocation9 + $0x208] sm:$0xf]
    %v2630 = vld [vmem:[#allocation9 + $0x20c] sm:$0xf]
    %v2631 = vld [vmem:[#allocation9 + $0x210] sm:$0xf]
    %v2632 = vld [vmem:[#allocation9 + $0x214] sm:$0xf]
    %v2633 = vld [vmem:[#allocation9 + $0x218] sm:$0xf]
    %v2634 = vld [vmem:[#allocation9 + $0x21c] sm:$0xf]
    %v2635 = vld [vmem:[#allocation9 + $0x220] sm:$0xf]
    %v2636 = vld [vmem:[#allocation9 + $0x224] sm:$0xf]
    %v2637 = vld [vmem:[#allocation9 + $0x228] sm:$0xf]
    %v2638 = vld [vmem:[#allocation9 + $0x22c] sm:$0xf]
    %v2639 = vld [vmem:[#allocation9 + $0x230] sm:$0xf]
    %v2640 = vld [vmem:[#allocation9 + $0x234] sm:$0xf]
    %v2641 = vld [vmem:[#allocation9 + $0x238] sm:$0xf]
    %v2642 = vld [vmem:[#allocation9 + $0x23c] sm:$0xf]
    %v2723 = vunpack.c.l.b16 %v2419
    %v2724 = vunpack.c.h.b16 %v2419
    %v2725 = vunpack.c.l.b16 %v2420
    %v2726 = vunpack.c.h.b16 %v2420
    %v2727 = vunpack.c.l.b16 %v2421
    %v2728 = vunpack.c.h.b16 %v2421
    %v2729 = vunpack.c.l.b16 %v2422
    %v2730 = vunpack.c.h.b16 %v2422
    %v2731 = vunpack.c.l.b16 %v2423
    %v2732 = vunpack.c.l.b16 %v2424
    %v2733 = vunpack.c.h.b16 %v2424
    %v2734 = vunpack.c.l.b16 %v2425
    %v2735 = vunpack.c.h.b16 %v2425
    %v2736 = vunpack.c.l.b16 %v2426
    %v2737 = vunpack.c.h.b16 %v2426
    %v2738 = vunpack.c.l.b16 %v2427
    %v2739 = vunpack.c.h.b16 %v2427
    %v2740 = vunpack.c.l.b16 %v2428
    %v2741 = vunpack.c.l.b16 %v2429
    %v2742 = vunpack.c.h.b16 %v2429
    %v2743 = vunpack.c.l.b16 %v2430
    %v2744 = vunpack.c.h.b16 %v2430
    %v2745 = vunpack.c.l.b16 %v2431
    %v2746 = vunpack.c.h.b16 %v2431
    %v2747 = vunpack.c.l.b16 %v2432
    %v2748 = vunpack.c.h.b16 %v2432
    %v2749 = vunpack.c.l.b16 %v2433
    %v2750 = vunpack.c.l.b16 %v2434
    %v2751 = vunpack.c.h.b16 %v2434
    %v2752 = vunpack.c.l.b16 %v2435
    %v2753 = vunpack.c.h.b16 %v2435
    %v2754 = vunpack.c.l.b16 %v2436
    %v2755 = vunpack.c.h.b16 %v2436
    %v2756 = vunpack.c.l.b16 %v2437
    %v2757 = vunpack.c.h.b16 %v2437
    %v2758 = vunpack.c.l.b16 %v2438
    %v2759 = vunpack.c.l.b16 %v2439
    %v2760 = vunpack.c.h.b16 %v2439
    %v2761 = vunpack.c.l.b16 %v2440
    %v2762 = vunpack.c.h.b16 %v2440
    %v2763 = vunpack.c.l.b16 %v2441
    %v2764 = vunpack.c.h.b16 %v2441
    %v2765 = vunpack.c.l.b16 %v2442
    %v2766 = vunpack.c.h.b16 %v2442
    %v2767 = vunpack.c.l.b16 %v2443
    %v2768 = vunpack.c.l.b16 %v2444
    %v2769 = vunpack.c.h.b16 %v2444
    %v2770 = vunpack.c.l.b16 %v2445
    %v2771 = vunpack.c.h.b16 %v2445
    %v2772 = vunpack.c.l.b16 %v2446
    %v2773 = vunpack.c.h.b16 %v2446
    %v2774 = vunpack.c.l.b16 %v2447
    %v2775 = vunpack.c.h.b16 %v2447
    %v2776 = vunpack.c.l.b16 %v2448
    %v2777 = vunpack.c.l.b16 %v2449
    %v2778 = vunpack.c.h.b16 %v2449
    %v2779 = vunpack.c.l.b16 %v2450
    %v2780 = vunpack.c.h.b16 %v2450
    %v2781 = vunpack.c.l.b16 %v2451
    %v2782 = vunpack.c.h.b16 %v2451
    %v2783 = vunpack.c.l.b16 %v2452
    %v2784 = vunpack.c.h.b16 %v2452
    %v2785 = vunpack.c.l.b16 %v2453
    %v2786 = vunpack.c.l.b16 %v2454
    %v2787 = vunpack.c.h.b16 %v2454
    %v2788 = vunpack.c.l.b16 %v2455
    %v2789 = vunpack.c.h.b16 %v2455
    %v2790 = vunpack.c.l.b16 %v2456
    %v2791 = vunpack.c.h.b16 %v2456
    %v2792 = vunpack.c.l.b16 %v2457
    %v2793 = vunpack.c.h.b16 %v2457
    %v2794 = vunpack.c.l.b16 %v2458
    %v2795 = vunpack.c.l.b16 %v2459
    %v2796 = vunpack.c.h.b16 %v2459
    %v2797 = vunpack.c.l.b16 %v2460
    %v2798 = vunpack.c.h.b16 %v2460
    %v2799 = vunpack.c.l.b16 %v2461
    %v2800 = vunpack.c.h.b16 %v2461
    %v2801 = vunpack.c.l.b16 %v2462
    %v2802 = vunpack.c.h.b16 %v2462
    %v2803 = vunpack.c.l.b16 %v2463
    %v2804 = vunpack.c.l.b16 %v2464
    %v2805 = vunpack.c.h.b16 %v2464
    %v2806 = vunpack.c.l.b16 %v2465
    %v2807 = vunpack.c.h.b16 %v2465
    %v2808 = vunpack.c.l.b16 %v2466
    %v2809 = vunpack.c.h.b16 %v2466
    %v2810 = vunpack.c.l.b16 %v2467
    %v2811 = vunpack.c.h.b16 %v2467
    %v2812 = vunpack.c.l.b16 %v2468
    %v2813 = vunpack.c.l.b16 %v2469
    %v2814 = vunpack.c.h.b16 %v2469
    %v2815 = vunpack.c.l.b16 %v2470
    %v2816 = vunpack.c.h.b16 %v2470
    %v2817 = vunpack.c.l.b16 %v2471
    %v2818 = vunpack.c.h.b16 %v2471
    %v2819 = vunpack.c.l.b16 %v2472
    %v2820 = vunpack.c.h.b16 %v2472
    %v2821 = vunpack.c.l.b16 %v2473
    %v2822 = vunpack.c.l.b16 %v2474
    %v2823 = vunpack.c.h.b16 %v2474
    %v2824 = vunpack.c.l.b16 %v2475
    %v2825 = vunpack.c.h.b16 %v2475
    %v2826 = vunpack.c.l.b16 %v2476
    %v2827 = vunpack.c.h.b16 %v2476
    %v2828 = vunpack.c.l.b16 %v2477
    %v2829 = vunpack.c.h.b16 %v2477
    %v2830 = vunpack.c.l.b16 %v2478
    %v2831 = vunpack.c.l.b16 %v2479
    %v2832 = vunpack.c.h.b16 %v2479
    %v2833 = vunpack.c.l.b16 %v2480
    %v2834 = vunpack.c.h.b16 %v2480
    %v2835 = vunpack.c.l.b16 %v2481
    %v2836 = vunpack.c.h.b16 %v2481
    %v2837 = vunpack.c.l.b16 %v2482
    %v2838 = vunpack.c.h.b16 %v2482
    %v2839 = vunpack.c.l.b16 %v2483
    %v2840 = vunpack.c.l.b16 %v2484
    %v2841 = vunpack.c.h.b16 %v2484
    %v2842 = vunpack.c.l.b16 %v2485
    %v2843 = vunpack.c.h.b16 %v2485
    %v2844 = vunpack.c.l.b16 %v2486
    %v2845 = vunpack.c.h.b16 %v2486
    %v2846 = vunpack.c.l.b16 %v2487
    %v2847 = vunpack.c.h.b16 %v2487
    %v2848 = vunpack.c.l.b16 %v2488
    %v2849 = vunpack.c.l.b16 %v2489
    %v2850 = vunpack.c.h.b16 %v2489
    %v2851 = vunpack.c.l.b16 %v2490
    %v2852 = vunpack.c.h.b16 %v2490
    %v2853 = vunpack.c.l.b16 %v2491
    %v2854 = vunpack.c.h.b16 %v2491
    %v2855 = vunpack.c.l.b16 %v2492
    %v2856 = vunpack.c.h.b16 %v2492
    %v2857 = vunpack.c.l.b16 %v2493
    %v2858 = vunpack.c.l.b16 %v2494
    %v2859 = vunpack.c.h.b16 %v2494
    %v2860 = vunpack.c.l.b16 %v2495
    %v2861 = vunpack.c.h.b16 %v2495
    %v2862 = vunpack.c.l.b16 %v2496
    %v2863 = vunpack.c.h.b16 %v2496
    %v2864 = vunpack.c.l.b16 %v2497
    %v2865 = vunpack.c.h.b16 %v2497
    %v2866 = vunpack.c.l.b16 %v2498
    %v2867 = vpack.c.b16 %v2732, %v2723
    %v2868 = vpack.c.b16 %v2733, %v2724
    %v2869 = vpack.c.b16 %v2734, %v2725
    %v2870 = vpack.c.b16 %v2735, %v2726
    %v2871 = vpack.c.b16 %v2736, %v2727
    %v2872 = vpack.c.b16 %v2737, %v2728
    %v2873 = vpack.c.b16 %v2738, %v2729
    %v2874 = vpack.c.b16 %v2739, %v2730
    %v2875 = vpack.c.b16 %v2740, %v2731
    %v2876 = vpack.c.b16 %v2750, %v2741
    %v2877 = vpack.c.b16 %v2751, %v2742
    %v2878 = vpack.c.b16 %v2752, %v2743
    %v2879 = vpack.c.b16 %v2753, %v2744
    %v2880 = vpack.c.b16 %v2754, %v2745
    %v2881 = vpack.c.b16 %v2755, %v2746
    %v2882 = vpack.c.b16 %v2756, %v2747
    %v2883 = vpack.c.b16 %v2757, %v2748
    %v2884 = vpack.c.b16 %v2758, %v2749
    %v2885 = vpack.c.b16 %v2768, %v2759
    %v2886 = vpack.c.b16 %v2769, %v2760
    %v2887 = vpack.c.b16 %v2770, %v2761
    %v2888 = vpack.c.b16 %v2771, %v2762
    %v2889 = vpack.c.b16 %v2772, %v2763
    %v2890 = vpack.c.b16 %v2773, %v2764
    %v2891 = vpack.c.b16 %v2774, %v2765
    %v2892 = vpack.c.b16 %v2775, %v2766
    %v2893 = vpack.c.b16 %v2776, %v2767
    %v2894 = vpack.c.b16 %v2786, %v2777
    %v2895 = vpack.c.b16 %v2787, %v2778
    %v2896 = vpack.c.b16 %v2788, %v2779
    %v2897 = vpack.c.b16 %v2789, %v2780
    %v2898 = vpack.c.b16 %v2790, %v2781
    %v2899 = vpack.c.b16 %v2791, %v2782
    %v2900 = vpack.c.b16 %v2792, %v2783
    %v2901 = vpack.c.b16 %v2793, %v2784
    %v2902 = vpack.c.b16 %v2794, %v2785
    %v2903 = vpack.c.b16 %v2804, %v2795
    %v2904 = vpack.c.b16 %v2805, %v2796
    %v2905 = vpack.c.b16 %v2806, %v2797
    %v2906 = vpack.c.b16 %v2807, %v2798
    %v2907 = vpack.c.b16 %v2808, %v2799
    %v2908 = vpack.c.b16 %v2809, %v2800
    %v2909 = vpack.c.b16 %v2810, %v2801
    %v2910 = vpack.c.b16 %v2811, %v2802
    %v2911 = vpack.c.b16 %v2812, %v2803
    %v2912 = vpack.c.b16 %v2822, %v2813
    %v2913 = vpack.c.b16 %v2823, %v2814
    %v2914 = vpack.c.b16 %v2824, %v2815
    %v2915 = vpack.c.b16 %v2825, %v2816
    %v2916 = vpack.c.b16 %v2826, %v2817
    %v2917 = vpack.c.b16 %v2827, %v2818
    %v2918 = vpack.c.b16 %v2828, %v2819
    %v2919 = vpack.c.b16 %v2829, %v2820
    %v2920 = vpack.c.b16 %v2830, %v2821
    %v2921 = vpack.c.b16 %v2840, %v2831
    %v2922 = vpack.c.b16 %v2841, %v2832
    %v2923 = vpack.c.b16 %v2842, %v2833
    %v2924 = vpack.c.b16 %v2843, %v2834
    %v2925 = vpack.c.b16 %v2844, %v2835
    %v2926 = vpack.c.b16 %v2845, %v2836
    %v2927 = vpack.c.b16 %v2846, %v2837
    %v2928 = vpack.c.b16 %v2847, %v2838
    %v2929 = vpack.c.b16 %v2848, %v2839
    %v2930 = vpack.c.b16 %v2858, %v2849
    %v2931 = vpack.c.b16 %v2859, %v2850
    %v2932 = vpack.c.b16 %v2860, %v2851
    %v2933 = vpack.c.b16 %v2861, %v2852
    %v2934 = vpack.c.b16 %v2862, %v2853
    %v2935 = vpack.c.b16 %v2863, %v2854
    %v2936 = vpack.c.b16 %v2864, %v2855
    %v2937 = vpack.c.b16 %v2865, %v2856
    %v2938 = vpack.c.b16 %v2866, %v2857
    %v3155 = vunpack.c.l.b16 %v2499
    %v3156 = vunpack.c.l.b16 %v2500
    %v3157 = vunpack.c.l.b16 %v2501
    %v3158 = vunpack.c.l.b16 %v2502
    %v3159 = vunpack.c.l.b16 %v2503
    %v3160 = vunpack.c.l.b16 %v2504
    %v3161 = vunpack.c.l.b16 %v2505
    %v3162 = vunpack.c.l.b16 %v2506
    %v3163 = vunpack.c.l.b16 %v2507
    %v3164 = vunpack.c.l.b16 %v2508
    %v3165 = vunpack.c.l.b16 %v2509
    %v3166 = vunpack.c.l.b16 %v2510
    %v3167 = vunpack.c.l.b16 %v2511
    %v3168 = vunpack.c.l.b16 %v2512
    %v3169 = vunpack.c.l.b16 %v2513
    %v3170 = vunpack.c.l.b16 %v2514
    %v3171 = vunpack.c.l.b16 %v2515
    %v3172 = vunpack.c.l.b16 %v2516
    %v3173 = vunpack.c.l.b16 %v2517
    %v3174 = vunpack.c.l.b16 %v2518
    %v3175 = vunpack.c.l.b16 %v2519
    %v3176 = vunpack.c.l.b16 %v2520
    %v3177 = vunpack.c.l.b16 %v2521
    %v3178 = vunpack.c.l.b16 %v2522
    %v3179 = vunpack.c.l.b16 %v2523
    %v3180 = vunpack.c.l.b16 %v2524
    %v3181 = vunpack.c.l.b16 %v2525
    %v3182 = vunpack.c.l.b16 %v2526
    %v3183 = vunpack.c.l.b16 %v2527
    %v3184 = vunpack.c.l.b16 %v2528
    %v3185 = vunpack.c.l.b16 %v2529
    %v3186 = vunpack.c.l.b16 %v2530
    %v3187 = vunpack.c.l.b16 %v2531
    %v3188 = vunpack.c.l.b16 %v2532
    %v3189 = vunpack.c.l.b16 %v2533
    %v3190 = vunpack.c.l.b16 %v2534
    %v3191 = vunpack.c.l.b16 %v2535
    %v3192 = vunpack.c.l.b16 %v2536
    %v3193 = vunpack.c.l.b16 %v2537
    %v3194 = vunpack.c.l.b16 %v2538
    %v3195 = vunpack.c.l.b16 %v2539
    %v3196 = vunpack.c.l.b16 %v2540
    %v3197 = vunpack.c.l.b16 %v2541
    %v3198 = vunpack.c.l.b16 %v2542
    %v3199 = vunpack.c.l.b16 %v2543
    %v3200 = vunpack.c.l.b16 %v2544
    %v3201 = vunpack.c.l.b16 %v2545
    %v3202 = vunpack.c.l.b16 %v2546
    %v3203 = vunpack.c.l.b16 %v2547
    %v3204 = vunpack.c.l.b16 %v2548
    %v3205 = vunpack.c.l.b16 %v2549
    %v3206 = vunpack.c.l.b16 %v2550
    %v3207 = vunpack.c.l.b16 %v2551
    %v3208 = vunpack.c.l.b16 %v2552
    %v3209 = vunpack.c.l.b16 %v2553
    %v3210 = vunpack.c.l.b16 %v2554
    %v3211 = vunpack.c.l.b16 %v2555
    %v3212 = vunpack.c.l.b16 %v2556
    %v3213 = vunpack.c.l.b16 %v2557
    %v3214 = vunpack.c.l.b16 %v2558
    %v3215 = vunpack.c.l.b16 %v2559
    %v3216 = vunpack.c.l.b16 %v2560
    %v3217 = vunpack.c.l.b16 %v2561
    %v3218 = vunpack.c.l.b16 %v2562
    %v3219 = vunpack.c.l.b16 %v2563
    %v3220 = vunpack.c.l.b16 %v2564
    %v3221 = vunpack.c.l.b16 %v2565
    %v3222 = vunpack.c.l.b16 %v2566
    %v3223 = vunpack.c.l.b16 %v2567
    %v3224 = vunpack.c.l.b16 %v2568
    %v3225 = vunpack.c.l.b16 %v2569
    %v3226 = vunpack.c.l.b16 %v2570
    %v3227 = vunpack.c.l.b16 %v2571
    %v3228 = vunpack.c.l.b16 %v2572
    %v3229 = vunpack.c.l.b16 %v2573
    %v3230 = vunpack.c.l.b16 %v2574
    %v3231 = vunpack.c.l.b16 %v2575
    %v3232 = vunpack.c.l.b16 %v2576
    %v3233 = vunpack.c.l.b16 %v2577
    %v3234 = vunpack.c.l.b16 %v2578
    %v3235 = vunpack.c.l.b16 %v2579
    %v3236 = vunpack.c.l.b16 %v2580
    %v3237 = vunpack.c.l.b16 %v2581
    %v3238 = vunpack.c.l.b16 %v2582
    %v3239 = vunpack.c.l.b16 %v2583
    %v3240 = vunpack.c.l.b16 %v2584
    %v3241 = vunpack.c.l.b16 %v2585
    %v3242 = vunpack.c.l.b16 %v2586
    %v3243 = vunpack.c.l.b16 %v2587
    %v3244 = vunpack.c.l.b16 %v2588
    %v3245 = vunpack.c.l.b16 %v2589
    %v3246 = vunpack.c.l.b16 %v2590
    %v3247 = vunpack.c.l.b16 %v2591
    %v3248 = vunpack.c.l.b16 %v2592
    %v3249 = vunpack.c.l.b16 %v2593
    %v3250 = vunpack.c.l.b16 %v2594
    %v3251 = vunpack.c.l.b16 %v2595
    %v3252 = vunpack.c.l.b16 %v2596
    %v3253 = vunpack.c.l.b16 %v2597
    %v3254 = vunpack.c.l.b16 %v2598
    %v3255 = vunpack.c.l.b16 %v2599
    %v3256 = vunpack.c.l.b16 %v2600
    %v3257 = vunpack.c.l.b16 %v2601
    %v3258 = vunpack.c.l.b16 %v2602
    %v3259 = vunpack.c.l.b16 %v2603
    %v3260 = vunpack.c.l.b16 %v2604
    %v3261 = vunpack.c.l.b16 %v2605
    %v3262 = vunpack.c.l.b16 %v2606
    %v3263 = vunpack.c.l.b16 %v2607
    %v3264 = vunpack.c.l.b16 %v2608
    %v3265 = vunpack.c.l.b16 %v2609
    %v3266 = vunpack.c.l.b16 %v2610
    %v3267 = vunpack.c.l.b16 %v2611
    %v3268 = vunpack.c.l.b16 %v2612
    %v3269 = vunpack.c.l.b16 %v2613
    %v3270 = vunpack.c.l.b16 %v2614
    %v3271 = vunpack.c.l.b16 %v2615
    %v3272 = vunpack.c.l.b16 %v2616
    %v3273 = vunpack.c.l.b16 %v2617
    %v3274 = vunpack.c.l.b16 %v2618
    %v3275 = vunpack.c.l.b16 %v2619
    %v3276 = vunpack.c.l.b16 %v2620
    %v3277 = vunpack.c.l.b16 %v2621
    %v3278 = vunpack.c.l.b16 %v2622
    %v3279 = vunpack.c.l.b16 %v2623
    %v3280 = vunpack.c.l.b16 %v2624
    %v3281 = vunpack.c.l.b16 %v2625
    %v3282 = vunpack.c.l.b16 %v2626
    %v3283 = vunpack.c.l.b16 %v2627
    %v3284 = vunpack.c.l.b16 %v2628
    %v3285 = vunpack.c.l.b16 %v2629
    %v3286 = vunpack.c.l.b16 %v2630
    %v3287 = vunpack.c.l.b16 %v2631
    %v3288 = vunpack.c.l.b16 %v2632
    %v3289 = vunpack.c.l.b16 %v2633
    %v3290 = vunpack.c.l.b16 %v2634
    %v3291 = vunpack.c.l.b16 %v2635
    %v3292 = vunpack.c.l.b16 %v2636
    %v3293 = vunpack.c.l.b16 %v2637
    %v3294 = vunpack.c.l.b16 %v2638
    %v3295 = vunpack.c.l.b16 %v2639
    %v3296 = vunpack.c.l.b16 %v2640
    %v3297 = vunpack.c.l.b16 %v2641
    %v3298 = vunpack.c.l.b16 %v2642
    %v3299 = vpack.c.b16 %v3156, %v3155
    %v3300 = vpack.c.b16 %v3158, %v3157
    %v3301 = vpack.c.b16 %v3160, %v3159
    %v3302 = vpack.c.b16 %v3162, %v3161
    %v3303 = vpack.c.b16 %v3164, %v3163
    %v3304 = vpack.c.b16 %v3166, %v3165
    %v3305 = vpack.c.b16 %v3168, %v3167
    %v3306 = vpack.c.b16 %v3170, %v3169
    %v3307 = vpack.c.b16 %v3172, %v3171
    %v3308 = vpack.c.b16 %v3174, %v3173
    %v3309 = vpack.c.b16 %v3176, %v3175
    %v3310 = vpack.c.b16 %v3178, %v3177
    %v3311 = vpack.c.b16 %v3180, %v3179
    %v3312 = vpack.c.b16 %v3182, %v3181
    %v3313 = vpack.c.b16 %v3184, %v3183
    %v3314 = vpack.c.b16 %v3186, %v3185
    %v3315 = vpack.c.b16 %v3188, %v3187
    %v3316 = vpack.c.b16 %v3190, %v3189
    %v3317 = vpack.c.b16 %v3192, %v3191
    %v3318 = vpack.c.b16 %v3194, %v3193
    %v3319 = vpack.c.b16 %v3196, %v3195
    %v3320 = vpack.c.b16 %v3198, %v3197
    %v3321 = vpack.c.b16 %v3200, %v3199
    %v3322 = vpack.c.b16 %v3202, %v3201
    %v3323 = vpack.c.b16 %v3204, %v3203
    %v3324 = vpack.c.b16 %v3206, %v3205
    %v3325 = vpack.c.b16 %v3208, %v3207
    %v3326 = vpack.c.b16 %v3210, %v3209
    %v3327 = vpack.c.b16 %v3212, %v3211
    %v3328 = vpack.c.b16 %v3214, %v3213
    %v3329 = vpack.c.b16 %v3216, %v3215
    %v3330 = vpack.c.b16 %v3218, %v3217
    %v3331 = vpack.c.b16 %v3220, %v3219
    %v3332 = vpack.c.b16 %v3222, %v3221
    %v3333 = vpack.c.b16 %v3224, %v3223
    %v3334 = vpack.c.b16 %v3226, %v3225
    %v3335 = vpack.c.b16 %v3228, %v3227
    %v3336 = vpack.c.b16 %v3230, %v3229
    %v3337 = vpack.c.b16 %v3232, %v3231
    %v3338 = vpack.c.b16 %v3234, %v3233
    %v3339 = vpack.c.b16 %v3236, %v3235
    %v3340 = vpack.c.b16 %v3238, %v3237
    %v3341 = vpack.c.b16 %v3240, %v3239
    %v3342 = vpack.c.b16 %v3242, %v3241
    %v3343 = vpack.c.b16 %v3244, %v3243
    %v3344 = vpack.c.b16 %v3246, %v3245
    %v3345 = vpack.c.b16 %v3248, %v3247
    %v3346 = vpack.c.b16 %v3250, %v3249
    %v3347 = vpack.c.b16 %v3252, %v3251
    %v3348 = vpack.c.b16 %v3254, %v3253
    %v3349 = vpack.c.b16 %v3256, %v3255
    %v3350 = vpack.c.b16 %v3258, %v3257
    %v3351 = vpack.c.b16 %v3260, %v3259
    %v3352 = vpack.c.b16 %v3262, %v3261
    %v3353 = vpack.c.b16 %v3264, %v3263
    %v3354 = vpack.c.b16 %v3266, %v3265
    %v3355 = vpack.c.b16 %v3268, %v3267
    %v3356 = vpack.c.b16 %v3270, %v3269
    %v3357 = vpack.c.b16 %v3272, %v3271
    %v3358 = vpack.c.b16 %v3274, %v3273
    %v3359 = vpack.c.b16 %v3276, %v3275
    %v3360 = vpack.c.b16 %v3278, %v3277
    %v3361 = vpack.c.b16 %v3280, %v3279
    %v3362 = vpack.c.b16 %v3282, %v3281
    %v3363 = vpack.c.b16 %v3284, %v3283
    %v3364 = vpack.c.b16 %v3286, %v3285
    %v3365 = vpack.c.b16 %v3288, %v3287
    %v3366 = vpack.c.b16 %v3290, %v3289
    %v3367 = vpack.c.b16 %v3292, %v3291
    %v3368 = vpack.c.b16 %v3294, %v3293
    %v3369 = vpack.c.b16 %v3296, %v3295
    %v3370 = vpack.c.b16 %v3298, %v3297
    %3443 = vmatprep.subr.bf16.mxu0 0
    %3444 = vmatpush1.bf16.msra.mxu0 %v3306
    %3445 = vmatprep.subr.bf16.mxu0 0
    %3446 = vmatpush1.bf16.msra.mxu0 %v3305
    %3447 = vmatprep.subr.bf16.mxu0 0
    %3448 = vmatpush1.bf16.msra.mxu0 %v3304
    %3449 = vmatprep.subr.bf16.mxu0 0
    %3450 = vmatpush1.bf16.msra.mxu0 %v3303
    %3451 = vmatprep.subr.bf16.mxu0 0
    %3452 = vmatpush1.bf16.msra.mxu0 %v3302
    %3453 = vmatprep.subr.bf16.mxu0 0
    %3454 = vmatpush1.bf16.msra.mxu0 %v3301
    %3455 = vmatprep.subr.bf16.mxu0 0
    %3456 = vmatpush1.bf16.msra.mxu0 %v3300
    %3457 = vmatprep.subr.bf16.mxu0 0
    %3458 = vmatpush1.bf16.msra.mxu0 %v3299
    %3459 = vmatprep.subr.bf16.mxu0 0
    %3460 = vmatpush2.bf16.msra.mxu0 %v3314
    %3461 = vmatprep.subr.bf16.mxu0 0
    %3462 = vmatpush2.bf16.msra.mxu0 %v3313
    %3463 = vmatprep.subr.bf16.mxu0 0
    %3464 = vmatpush2.bf16.msra.mxu0 %v3312
    %3465 = vmatprep.subr.bf16.mxu0 0
    %3466 = vmatpush2.bf16.msra.mxu0 %v3311
    %3467 = vmatprep.subr.bf16.mxu0 0
    %3468 = vmatpush2.bf16.msra.mxu0 %v3310
    %3469 = vmatprep.subr.bf16.mxu0 0
    %3470 = vmatpush2.bf16.msra.mxu0 %v3309
    %3471 = vmatprep.subr.bf16.mxu0 0
    %3472 = vmatpush2.bf16.msra.mxu0 %v3308
    %3473 = vmatprep.subr.bf16.mxu0 0
    %3474 = vmatpush2.bf16.msra.mxu0 %v3307
    %3475 = vmatprep.mubr.bf16.mxu0 %v2868
    %3476 = vmatmul.mubr.bf16.gmra.mxu0 %v2867
    %v3477 = vpop.f32.mrf.mxu0
    %v3478 = vadd.f32 0.0, %v3477
    %v3479 = vpop.f32.mrf.mxu0
    %v3480 = vpop.f32.mrf.mxu0
    %v3481 = vadd.f32 0.0, %v3480
    %v3482 = vpop.f32.mrf.mxu0
    %3483 = vmatprep.mubr.bf16.mxu0 %v2877
    %3484 = vmatmul.mubr.bf16.gmra.mxu0 %v2876
    %v3485 = vpop.f32.mrf.mxu0
    %v3486 = vadd.f32 0.0, %v3485
    %v3487 = vpop.f32.mrf.mxu0
    %v3488 = vpop.f32.mrf.mxu0
    %v3489 = vadd.f32 0.0, %v3488
    %v3490 = vpop.f32.mrf.mxu0
    %3491 = vmatprep.mubr.bf16.mxu0 %v2886
    %3492 = vmatmul.mubr.bf16.gmra.mxu0 %v2885
    %v3493 = vpop.f32.mrf.mxu0
    %v3494 = vadd.f32 0.0, %v3493
    %v3495 = vpop.f32.mrf.mxu0
    %v3496 = vpop.f32.mrf.mxu0
    %v3497 = vadd.f32 0.0, %v3496
    %v3498 = vpop.f32.mrf.mxu0
    %3499 = vmatprep.mubr.bf16.mxu0 %v2895
    %3500 = vmatmul.mubr.bf16.gmra.mxu0 %v2894
    %v3501 = vpop.f32.mrf.mxu0
    %v3502 = vadd.f32 0.0, %v3501
    %v3503 = vpop.f32.mrf.mxu0
    %v3504 = vpop.f32.mrf.mxu0
    %v3505 = vadd.f32 0.0, %v3504
    %v3506 = vpop.f32.mrf.mxu0
    %3507 = vmatprep.mubr.bf16.mxu0 %v2904
    %3508 = vmatmul.mubr.bf16.gmra.mxu0 %v2903
    %v3509 = vpop.f32.mrf.mxu0
    %v3510 = vadd.f32 0.0, %v3509
    %v3511 = vpop.f32.mrf.mxu0
    %v3512 = vpop.f32.mrf.mxu0
    %v3513 = vadd.f32 0.0, %v3512
    %v3514 = vpop.f32.mrf.mxu0
    %3515 = vmatprep.mubr.bf16.mxu0 %v2913
    %3516 = vmatmul.mubr.bf16.gmra.mxu0 %v2912
    %v3517 = vpop.f32.mrf.mxu0
    %v3518 = vadd.f32 0.0, %v3517
    %v3519 = vpop.f32.mrf.mxu0
    %v3520 = vpop.f32.mrf.mxu0
    %v3521 = vadd.f32 0.0, %v3520
    %v3522 = vpop.f32.mrf.mxu0
    %3523 = vmatprep.mubr.bf16.mxu0 %v2922
    %3524 = vmatmul.mubr.bf16.gmra.mxu0 %v2921
    %v3525 = vpop.f32.mrf.mxu0
    %v3526 = vadd.f32 0.0, %v3525
    %v3527 = vpop.f32.mrf.mxu0
    %v3528 = vpop.f32.mrf.mxu0
    %v3529 = vadd.f32 0.0, %v3528
    %v3530 = vpop.f32.mrf.mxu0
    %3531 = vmatprep.mubr.bf16.mxu0 %v2931
    %3532 = vmatmul.mubr.bf16.gmra.mxu0 %v2930
    %v3533 = vpop.f32.mrf.mxu0
    %v3534 = vadd.f32 0.0, %v3533
    %v3535 = vpop.f32.mrf.mxu0
    %v3536 = vpop.f32.mrf.mxu0
    %v3537 = vadd.f32 0.0, %v3536
    %v3538 = vpop.f32.mrf.mxu0
    %3539 = vdwg.mxu0
    %3540 = vmatprep.subr.bf16.mxu0 0
    %3541 = vmatpush1.bf16.msra.mxu0 %v3322
    %3542 = vmatprep.subr.bf16.mxu0 0
    %3543 = vmatpush1.bf16.msra.mxu0 %v3321
    %3544 = vmatprep.subr.bf16.mxu0 0
    %3545 = vmatpush1.bf16.msra.mxu0 %v3320
    %3546 = vmatprep.subr.bf16.mxu0 0
    %3547 = vmatpush1.bf16.msra.mxu0 %v3319
    %3548 = vmatprep.subr.bf16.mxu0 0
    %3549 = vmatpush1.bf16.msra.mxu0 %v3318
    %3550 = vmatprep.subr.bf16.mxu0 0
    %3551 = vmatpush1.bf16.msra.mxu0 %v3317
    %3552 = vmatprep.subr.bf16.mxu0 0
    %3553 = vmatpush1.bf16.msra.mxu0 %v3316
    %3554 = vmatprep.subr.bf16.mxu0 0
    %3555 = vmatpush1.bf16.msra.mxu0 %v3315
    %3556 = vmatprep.subr.bf16.mxu0 0
    %3557 = vmatpush2.bf16.msra.mxu0 %v3330
    %3558 = vmatprep.subr.bf16.mxu0 0
    %3559 = vmatpush2.bf16.msra.mxu0 %v3329
    %3560 = vmatprep.subr.bf16.mxu0 0
    %3561 = vmatpush2.bf16.msra.mxu0 %v3328
    %3562 = vmatprep.subr.bf16.mxu0 0
    %3563 = vmatpush2.bf16.msra.mxu0 %v3327
    %3564 = vmatprep.subr.bf16.mxu0 0
    %3565 = vmatpush2.bf16.msra.mxu0 %v3326
    %3566 = vmatprep.subr.bf16.mxu0 0
    %3567 = vmatpush2.bf16.msra.mxu0 %v3325
    %3568 = vmatprep.subr.bf16.mxu0 0
    %3569 = vmatpush2.bf16.msra.mxu0 %v3324
    %3570 = vmatprep.subr.bf16.mxu0 0
    %3571 = vmatpush2.bf16.msra.mxu0 %v3323
    %3572 = vmatprep.mubr.bf16.mxu0 %v2870
    %3573 = vmatmul.mubr.bf16.gmra.mxu0 %v2869
    %v3574 = vpop.f32.mrf.mxu0
    %v3575 = vadd.f32 %v3478, %v3574
    %v3576 = vpop.f32.mrf.mxu0
    %v3577 = vpop.f32.mrf.mxu0
    %v3578 = vadd.f32 %v3481, %v3577
    %v3579 = vpop.f32.mrf.mxu0
    %3580 = vmatprep.mubr.bf16.mxu0 %v2879
    %3581 = vmatmul.mubr.bf16.gmra.mxu0 %v2878
    %v3582 = vpop.f32.mrf.mxu0
    %v3583 = vadd.f32 %v3486, %v3582
    %v3584 = vpop.f32.mrf.mxu0
    %v3585 = vpop.f32.mrf.mxu0
    %v3586 = vadd.f32 %v3489, %v3585
    %v3587 = vpop.f32.mrf.mxu0
    %3588 = vmatprep.mubr.bf16.mxu0 %v2888
    %3589 = vmatmul.mubr.bf16.gmra.mxu0 %v2887
    %v3590 = vpop.f32.mrf.mxu0
    %v3591 = vadd.f32 %v3494, %v3590
    %v3592 = vpop.f32.mrf.mxu0
    %v3593 = vpop.f32.mrf.mxu0
    %v3594 = vadd.f32 %v3497, %v3593
    %v3595 = vpop.f32.mrf.mxu0
    %3596 = vmatprep.mubr.bf16.mxu0 %v2897
    %3597 = vmatmul.mubr.bf16.gmra.mxu0 %v2896
    %v3598 = vpop.f32.mrf.mxu0
    %v3599 = vadd.f32 %v3502, %v3598
    %v3600 = vpop.f32.mrf.mxu0
    %v3601 = vpop.f32.mrf.mxu0
    %v3602 = vadd.f32 %v3505, %v3601
    %v3603 = vpop.f32.mrf.mxu0
    %3604 = vmatprep.mubr.bf16.mxu0 %v2906
    %3605 = vmatmul.mubr.bf16.gmra.mxu0 %v2905
    %v3606 = vpop.f32.mrf.mxu0
    %v3607 = vadd.f32 %v3510, %v3606
    %v3608 = vpop.f32.mrf.mxu0
    %v3609 = vpop.f32.mrf.mxu0
    %v3610 = vadd.f32 %v3513, %v3609
    %v3611 = vpop.f32.mrf.mxu0
    %3612 = vmatprep.mubr.bf16.mxu0 %v2915
    %3613 = vmatmul.mubr.bf16.gmra.mxu0 %v2914
    %v3614 = vpop.f32.mrf.mxu0
    %v3615 = vadd.f32 %v3518, %v3614
    %v3616 = vpop.f32.mrf.mxu0
    %v3617 = vpop.f32.mrf.mxu0
    %v3618 = vadd.f32 %v3521, %v3617
    %v3619 = vpop.f32.mrf.mxu0
    %3620 = vmatprep.mubr.bf16.mxu0 %v2924
    %3621 = vmatmul.mubr.bf16.gmra.mxu0 %v2923
    %v3622 = vpop.f32.mrf.mxu0
    %v3623 = vadd.f32 %v3526, %v3622
    %v3624 = vpop.f32.mrf.mxu0
    %v3625 = vpop.f32.mrf.mxu0
    %v3626 = vadd.f32 %v3529, %v3625
    %v3627 = vpop.f32.mrf.mxu0
    %3628 = vmatprep.mubr.bf16.mxu0 %v2933
    %3629 = vmatmul.mubr.bf16.gmra.mxu0 %v2932
    %v3630 = vpop.f32.mrf.mxu0
    %v3631 = vadd.f32 %v3534, %v3630
    %v3632 = vpop.f32.mrf.mxu0
    %v3633 = vpop.f32.mrf.mxu0
    %v3634 = vadd.f32 %v3537, %v3633
    %v3635 = vpop.f32.mrf.mxu0
    %3636 = vdwg.mxu0
    %3637 = vmatprep.subr.bf16.mxu0 0
    %3638 = vmatpush1.bf16.msra.mxu0 %v3338
    %3639 = vmatprep.subr.bf16.mxu0 0
    %3640 = vmatpush1.bf16.msra.mxu0 %v3337
    %3641 = vmatprep.subr.bf16.mxu0 0
    %3642 = vmatpush1.bf16.msra.mxu0 %v3336
    %3643 = vmatprep.subr.bf16.mxu0 0
    %3644 = vmatpush1.bf16.msra.mxu0 %v3335
    %3645 = vmatprep.subr.bf16.mxu0 0
    %3646 = vmatpush1.bf16.msra.mxu0 %v3334
    %3647 = vmatprep.subr.bf16.mxu0 0
    %3648 = vmatpush1.bf16.msra.mxu0 %v3333
    %3649 = vmatprep.subr.bf16.mxu0 0
    %3650 = vmatpush1.bf16.msra.mxu0 %v3332
    %3651 = vmatprep.subr.bf16.mxu0 0
    %3652 = vmatpush1.bf16.msra.mxu0 %v3331
    %3653 = vmatprep.subr.bf16.mxu0 0
    %3654 = vmatpush2.bf16.msra.mxu0 %v3346
    %3655 = vmatprep.subr.bf16.mxu0 0
    %3656 = vmatpush2.bf16.msra.mxu0 %v3345
    %3657 = vmatprep.subr.bf16.mxu0 0
    %3658 = vmatpush2.bf16.msra.mxu0 %v3344
    %3659 = vmatprep.subr.bf16.mxu0 0
    %3660 = vmatpush2.bf16.msra.mxu0 %v3343
    %3661 = vmatprep.subr.bf16.mxu0 0
    %3662 = vmatpush2.bf16.msra.mxu0 %v3342
    %3663 = vmatprep.subr.bf16.mxu0 0
    %3664 = vmatpush2.bf16.msra.mxu0 %v3341
    %3665 = vmatprep.subr.bf16.mxu0 0
    %3666 = vmatpush2.bf16.msra.mxu0 %v3340
    %3667 = vmatprep.subr.bf16.mxu0 0
    %3668 = vmatpush2.bf16.msra.mxu0 %v3339
    %3669 = vmatprep.mubr.bf16.mxu0 %v2872
    %3670 = vmatmul.mubr.bf16.gmra.mxu0 %v2871
    %v3671 = vpop.f32.mrf.mxu0
    %v3672 = vadd.f32 %v3575, %v3671
    %v3673 = vpop.f32.mrf.mxu0
    %v3674 = vpop.f32.mrf.mxu0
    %v3675 = vadd.f32 %v3578, %v3674
    %v3676 = vpop.f32.mrf.mxu0
    %3677 = vmatprep.mubr.bf16.mxu0 %v2881
    %3678 = vmatmul.mubr.bf16.gmra.mxu0 %v2880
    %v3679 = vpop.f32.mrf.mxu0
    %v3680 = vadd.f32 %v3583, %v3679
    %v3681 = vpop.f32.mrf.mxu0
    %v3682 = vpop.f32.mrf.mxu0
    %v3683 = vadd.f32 %v3586, %v3682
    %v3684 = vpop.f32.mrf.mxu0
    %3685 = vmatprep.mubr.bf16.mxu0 %v2890
    %3686 = vmatmul.mubr.bf16.gmra.mxu0 %v2889
    %v3687 = vpop.f32.mrf.mxu0
    %v3688 = vadd.f32 %v3591, %v3687
    %v3689 = vpop.f32.mrf.mxu0
    %v3690 = vpop.f32.mrf.mxu0
    %v3691 = vadd.f32 %v3594, %v3690
    %v3692 = vpop.f32.mrf.mxu0
    %3693 = vmatprep.mubr.bf16.mxu0 %v2899
    %3694 = vmatmul.mubr.bf16.gmra.mxu0 %v2898
    %v3695 = vpop.f32.mrf.mxu0
    %v3696 = vadd.f32 %v3599, %v3695
    %v3697 = vpop.f32.mrf.mxu0
    %v3698 = vpop.f32.mrf.mxu0
    %v3699 = vadd.f32 %v3602, %v3698
    %v3700 = vpop.f32.mrf.mxu0
    %3701 = vmatprep.mubr.bf16.mxu0 %v2908
    %3702 = vmatmul.mubr.bf16.gmra.mxu0 %v2907
    %v3703 = vpop.f32.mrf.mxu0
    %v3704 = vadd.f32 %v3607, %v3703
    %v3705 = vpop.f32.mrf.mxu0
    %v3706 = vpop.f32.mrf.mxu0
    %v3707 = vadd.f32 %v3610, %v3706
    %v3708 = vpop.f32.mrf.mxu0
    %3709 = vmatprep.mubr.bf16.mxu0 %v2917
    %3710 = vmatmul.mubr.bf16.gmra.mxu0 %v2916
    %v3711 = vpop.f32.mrf.mxu0
    %v3712 = vadd.f32 %v3615, %v3711
    %v3713 = vpop.f32.mrf.mxu0
    %v3714 = vpop.f32.mrf.mxu0
    %v3715 = vadd.f32 %v3618, %v3714
    %v3716 = vpop.f32.mrf.mxu0
    %3717 = vmatprep.mubr.bf16.mxu0 %v2926
    %3718 = vmatmul.mubr.bf16.gmra.mxu0 %v2925
    %v3719 = vpop.f32.mrf.mxu0
    %v3720 = vadd.f32 %v3623, %v3719
    %v3721 = vpop.f32.mrf.mxu0
    %v3722 = vpop.f32.mrf.mxu0
    %v3723 = vadd.f32 %v3626, %v3722
    %v3724 = vpop.f32.mrf.mxu0
    %3725 = vmatprep.mubr.bf16.mxu0 %v2935
    %3726 = vmatmul.mubr.bf16.gmra.mxu0 %v2934
    %v3727 = vpop.f32.mrf.mxu0
    %v3728 = vadd.f32 %v3631, %v3727
    %v3729 = vpop.f32.mrf.mxu0
    %v3730 = vpop.f32.mrf.mxu0
    %v3731 = vadd.f32 %v3634, %v3730
    %v3732 = vpop.f32.mrf.mxu0
    %3733 = vdwg.mxu0
    %3734 = vmatprep.subr.bf16.mxu0 0
    %3735 = vmatpush1.bf16.msra.mxu0 %v3354
    %3736 = vmatprep.subr.bf16.mxu0 0
    %3737 = vmatpush1.bf16.msra.mxu0 %v3353
    %3738 = vmatprep.subr.bf16.mxu0 0
    %3739 = vmatpush1.bf16.msra.mxu0 %v3352
    %3740 = vmatprep.subr.bf16.mxu0 0
    %3741 = vmatpush1.bf16.msra.mxu0 %v3351
    %3742 = vmatprep.subr.bf16.mxu0 0
    %3743 = vmatpush1.bf16.msra.mxu0 %v3350
    %3744 = vmatprep.subr.bf16.mxu0 0
    %3745 = vmatpush1.bf16.msra.mxu0 %v3349
    %3746 = vmatprep.subr.bf16.mxu0 0
    %3747 = vmatpush1.bf16.msra.mxu0 %v3348
    %3748 = vmatprep.subr.bf16.mxu0 0
    %3749 = vmatpush1.bf16.msra.mxu0 %v3347
    %3750 = vmatprep.subr.bf16.mxu0 0
    %3751 = vmatpush2.bf16.msra.mxu0 %v3362
    %3752 = vmatprep.subr.bf16.mxu0 0
    %3753 = vmatpush2.bf16.msra.mxu0 %v3361
    %3754 = vmatprep.subr.bf16.mxu0 0
    %3755 = vmatpush2.bf16.msra.mxu0 %v3360
    %3756 = vmatprep.subr.bf16.mxu0 0
    %3757 = vmatpush2.bf16.msra.mxu0 %v3359
    %3758 = vmatprep.subr.bf16.mxu0 0
    %3759 = vmatpush2.bf16.msra.mxu0 %v3358
    %3760 = vmatprep.subr.bf16.mxu0 0
    %3761 = vmatpush2.bf16.msra.mxu0 %v3357
    %3762 = vmatprep.subr.bf16.mxu0 0
    %3763 = vmatpush2.bf16.msra.mxu0 %v3356
    %3764 = vmatprep.subr.bf16.mxu0 0
    %3765 = vmatpush2.bf16.msra.mxu0 %v3355
    %3766 = vmatprep.mubr.bf16.mxu0 %v2874
    %3767 = vmatmul.mubr.bf16.gmra.mxu0 %v2873
    %v3768 = vpop.f32.mrf.mxu0
    %v3769 = vadd.f32 %v3672, %v3768
    %v3770 = vpop.f32.mrf.mxu0
    %v3771 = vpop.f32.mrf.mxu0
    %v3772 = vadd.f32 %v3675, %v3771
    %v3773 = vpop.f32.mrf.mxu0
    %3774 = vmatprep.mubr.bf16.mxu0 %v2883
    %3775 = vmatmul.mubr.bf16.gmra.mxu0 %v2882
    %v3776 = vpop.f32.mrf.mxu0
    %v3777 = vadd.f32 %v3680, %v3776
    %v3778 = vpop.f32.mrf.mxu0
    %v3779 = vpop.f32.mrf.mxu0
    %v3780 = vadd.f32 %v3683, %v3779
    %v3781 = vpop.f32.mrf.mxu0
    %3782 = vmatprep.mubr.bf16.mxu0 %v2892
    %3783 = vmatmul.mubr.bf16.gmra.mxu0 %v2891
    %v3784 = vpop.f32.mrf.mxu0
    %v3785 = vadd.f32 %v3688, %v3784
    %v3786 = vpop.f32.mrf.mxu0
    %v3787 = vpop.f32.mrf.mxu0
    %v3788 = vadd.f32 %v3691, %v3787
    %v3789 = vpop.f32.mrf.mxu0
    %3790 = vmatprep.mubr.bf16.mxu0 %v2901
    %3791 = vmatmul.mubr.bf16.gmra.mxu0 %v2900
    %v3792 = vpop.f32.mrf.mxu0
    %v3793 = vadd.f32 %v3696, %v3792
    %v3794 = vpop.f32.mrf.mxu0
    %v3795 = vpop.f32.mrf.mxu0
    %v3796 = vadd.f32 %v3699, %v3795
    %v3797 = vpop.f32.mrf.mxu0
    %3798 = vmatprep.mubr.bf16.mxu0 %v2910
    %3799 = vmatmul.mubr.bf16.gmra.mxu0 %v2909
    %v3800 = vpop.f32.mrf.mxu0
    %v3801 = vadd.f32 %v3704, %v3800
    %v3802 = vpop.f32.mrf.mxu0
    %v3803 = vpop.f32.mrf.mxu0
    %v3804 = vadd.f32 %v3707, %v3803
    %v3805 = vpop.f32.mrf.mxu0
    %3806 = vmatprep.mubr.bf16.mxu0 %v2919
    %3807 = vmatmul.mubr.bf16.gmra.mxu0 %v2918
    %v3808 = vpop.f32.mrf.mxu0
    %v3809 = vadd.f32 %v3712, %v3808
    %v3810 = vpop.f32.mrf.mxu0
    %v3811 = vpop.f32.mrf.mxu0
    %v3812 = vadd.f32 %v3715, %v3811
    %v3813 = vpop.f32.mrf.mxu0
    %3814 = vmatprep.mubr.bf16.mxu0 %v2928
    %3815 = vmatmul.mubr.bf16.gmra.mxu0 %v2927
    %v3816 = vpop.f32.mrf.mxu0
    %v3817 = vadd.f32 %v3720, %v3816
    %v3818 = vpop.f32.mrf.mxu0
    %v3819 = vpop.f32.mrf.mxu0
    %v3820 = vadd.f32 %v3723, %v3819
    %v3821 = vpop.f32.mrf.mxu0
    %3822 = vmatprep.mubr.bf16.mxu0 %v2937
    %3823 = vmatmul.mubr.bf16.gmra.mxu0 %v2936
    %v3824 = vpop.f32.mrf.mxu0
    %v3825 = vadd.f32 %v3728, %v3824
    %v3826 = vpop.f32.mrf.mxu0
    %v3827 = vpop.f32.mrf.mxu0
    %v3828 = vadd.f32 %v3731, %v3827
    %v3829 = vpop.f32.mrf.mxu0
    %3830 = vdwg.mxu0
    %3831 = vmatprep.subr.bf16.mxu0 0
    %3832 = vmatpush1.bf16.msra.mxu0 %v3370
    %3833 = vmatprep.subr.bf16.mxu0 0
    %3834 = vmatpush1.bf16.msra.mxu0 %v3369
    %3835 = vmatprep.subr.bf16.mxu0 0
    %3836 = vmatpush1.bf16.msra.mxu0 %v3368
    %3837 = vmatprep.subr.bf16.mxu0 0
    %3838 = vmatpush1.bf16.msra.mxu0 %v3367
    %3839 = vmatprep.subr.bf16.mxu0 0
    %3840 = vmatpush1.bf16.msra.mxu0 %v3366
    %3841 = vmatprep.subr.bf16.mxu0 0
    %3842 = vmatpush1.bf16.msra.mxu0 %v3365
    %3843 = vmatprep.subr.bf16.mxu0 0
    %3844 = vmatpush1.bf16.msra.mxu0 %v3364
    %3845 = vmatprep.subr.bf16.mxu0 0
    %3846 = vmatpush1.bf16.msra.mxu0 %v3363
    %3847 = vmatprep.subr.bf16.mxu0 0
    %3848 = vmatpush2.bf16.msra.mxu0 0
    %3849 = vmatprep.subr.bf16.mxu0 0
    %3850 = vmatpush2.bf16.msra.mxu0 0
    %3851 = vmatprep.subr.bf16.mxu0 0
    %3852 = vmatpush2.bf16.msra.mxu0 0
    %3853 = vmatprep.subr.bf16.mxu0 0
    %3854 = vmatpush2.bf16.msra.mxu0 0
    %3855 = vmatprep.subr.bf16.mxu0 0
    %3856 = vmatpush2.bf16.msra.mxu0 0
    %3857 = vmatprep.subr.bf16.mxu0 0
    %3858 = vmatpush2.bf16.msra.mxu0 0
    %3859 = vmatprep.subr.bf16.mxu0 0
    %3860 = vmatpush2.bf16.msra.mxu0 0
    %3861 = vmatprep.subr.bf16.mxu0 0
    %3862 = vmatpush2.bf16.msra.mxu0 0
    %3863 = vmatprep.mubr.bf16.mxu0 0
    %3864 = vmatmul.mubr.bf16.gmra.mxu0 %v2875
    %v3865 = vpop.f32.mrf.mxu0
    %v3866 = vadd.f32 %v3769, %v3865
    %v3867 = vpop.f32.mrf.mxu0
    %v3868 = vpop.f32.mrf.mxu0
    %v3869 = vadd.f32 %v3772, %v3868
    %v3870 = vpop.f32.mrf.mxu0
    %3871 = vmatprep.mubr.bf16.mxu0 0
    %3872 = vmatmul.mubr.bf16.gmra.mxu0 %v2884
    %v3873 = vpop.f32.mrf.mxu0
    %v3874 = vadd.f32 %v3777, %v3873
    %v3875 = vpop.f32.mrf.mxu0
    %v3876 = vpop.f32.mrf.mxu0
    %v3877 = vadd.f32 %v3780, %v3876
    %v3878 = vpop.f32.mrf.mxu0
    %3879 = vmatprep.mubr.bf16.mxu0 0
    %3880 = vmatmul.mubr.bf16.gmra.mxu0 %v2893
    %v3881 = vpop.f32.mrf.mxu0
    %v3882 = vadd.f32 %v3785, %v3881
    %v3883 = vpop.f32.mrf.mxu0
    %v3884 = vpop.f32.mrf.mxu0
    %v3885 = vadd.f32 %v3788, %v3884
    %v3886 = vpop.f32.mrf.mxu0
    %3887 = vmatprep.mubr.bf16.mxu0 0
    %3888 = vmatmul.mubr.bf16.gmra.mxu0 %v2902
    %v3889 = vpop.f32.mrf.mxu0
    %v3890 = vadd.f32 %v3793, %v3889
    %v3891 = vpop.f32.mrf.mxu0
    %v3892 = vpop.f32.mrf.mxu0
    %v3893 = vadd.f32 %v3796, %v3892
    %v3894 = vpop.f32.mrf.mxu0
    %3895 = vmatprep.mubr.bf16.mxu0 0
    %3896 = vmatmul.mubr.bf16.gmra.mxu0 %v2911
    %v3897 = vpop.f32.mrf.mxu0
    %v3898 = vadd.f32 %v3801, %v3897
    %v3899 = vpop.f32.mrf.mxu0
    %v3900 = vpop.f32.mrf.mxu0
    %v3901 = vadd.f32 %v3804, %v3900
    %v3902 = vpop.f32.mrf.mxu0
    %3903 = vmatprep.mubr.bf16.mxu0 0
    %3904 = vmatmul.mubr.bf16.gmra.mxu0 %v2920
    %v3905 = vpop.f32.mrf.mxu0
    %v3906 = vadd.f32 %v3809, %v3905
    %v3907 = vpop.f32.mrf.mxu0
    %v3908 = vpop.f32.mrf.mxu0
    %v3909 = vadd.f32 %v3812, %v3908
    %v3910 = vpop.f32.mrf.mxu0
    %3911 = vmatprep.mubr.bf16.mxu0 0
    %3912 = vmatmul.mubr.bf16.gmra.mxu0 %v2929
    %v3913 = vpop.f32.mrf.mxu0
    %v3914 = vadd.f32 %v3817, %v3913
    %v3915 = vpop.f32.mrf.mxu0
    %v3916 = vpop.f32.mrf.mxu0
    %v3917 = vadd.f32 %v3820, %v3916
    %v3918 = vpop.f32.mrf.mxu0
    %3919 = vmatprep.mubr.bf16.mxu0 0
    %3920 = vmatmul.mubr.bf16.gmra.mxu0 %v2938
    %v3921 = vpop.f32.mrf.mxu0
    %v3922 = vadd.f32 %v3825, %v3921
    %v3923 = vpop.f32.mrf.mxu0
    %v3924 = vpop.f32.mrf.mxu0
    %v3925 = vadd.f32 %v3828, %v3924
    %v3926 = vpop.f32.mrf.mxu0
    %3927 = vdwg.mxu0
    %v3928 = vld [vmem:[%s5] sm:$0x1]
    %v3929 = vld [vmem:[%s6] sm:$0x1]
    %v3930 = vadd.f32 %v3866, %v3869
    %v3931 = vadd.f32 %v3930, %v3874
    %v3932 = vadd.f32 %v3931, %v3877
    %v3933 = vadd.f32 %v3932, %v3882
    %v3934 = vadd.f32 %v3933, %v3885
    %v3935 = vadd.f32 %v3934, %v3890
    %v3936 = vadd.f32 %v3935, %v3893
    %v3937 = vadd.f32 %v3936, %v3898
    %v3938 = vadd.f32 %v3937, %v3901
    %v3939 = vadd.f32 %v3938, %v3906
    %v3940 = vadd.f32 %v3939, %v3909
    %v3941 = vadd.f32 %v3940, %v3914
    %v3942 = vadd.f32 %v3941, %v3917
    %v3943 = vadd.f32 %v3942, %v3922
    %v3944 = vadd.f32 %v3943, %v3925
    %v3945 = vrot.slane %v3944, 4
    %v3946 = vadd.f32 %v3944, %v3945
    %v3947 = vrot.slane %v3946, 2
    %v3948 = vadd.f32 %v3946, %v3947
    %v3949 = vrot.slane %v3948, 1
    %v3950 = vadd.f32 %v3948, %v3949
    %3951 = vrot.lane.b32.xlu0 %v3950, 16
    %v3952 = vpop.permute.xlu0 %3951
    %v3953 = vadd.f32 %v3950, %v3952
    %3954 = vrot.lane.b32.xlu0 %v3953, 32
    %v3955 = vpop.permute.xlu0 %3954
    %v3956 = vadd.f32 %v3953, %v3955
    %3957 = vrot.lane.b32.xlu0 %v3956, 64
    %v3958 = vpop.permute.xlu0 %3957
    %v3959 = vadd.f32 %v3956, %v3958
    %v3960 = vmul.f32 %v3959, 0.0009765625
    %v3961 = vlaneseq
    %v3962 = vshrl.u32 %v3961, 7
    %v3963 = vsub.s32 0, %v3962
    %v3964 = vrot.slane %v3960, %v3963
    %v3965 = vsub.f32 %v3866, %v3964
    %v3966 = vsub.f32 %v3869, %v3964
    %v3967 = vsub.f32 %v3874, %v3964
    %v3968 = vsub.f32 %v3877, %v3964
    %v3969 = vsub.f32 %v3882, %v3964
    %v3970 = vsub.f32 %v3885, %v3964
    %v3971 = vsub.f32 %v3890, %v3964
    %v3972 = vsub.f32 %v3893, %v3964
    %v3973 = vsub.f32 %v3898, %v3964
    %v3974 = vsub.f32 %v3901, %v3964
    %v3975 = vsub.f32 %v3906, %v3964
    %v3976 = vsub.f32 %v3909, %v3964
    %v3977 = vsub.f32 %v3914, %v3964
    %v3978 = vsub.f32 %v3917, %v3964
    %v3979 = vsub.f32 %v3922, %v3964
    %v3980 = vsub.f32 %v3925, %v3964
    %v3981 = vmul.f32 %v3965, %v3965
    %v3982 = vmul.f32 %v3966, %v3966
    %v3983 = vmul.f32 %v3967, %v3967
    %v3984 = vmul.f32 %v3968, %v3968
    %v3985 = vmul.f32 %v3969, %v3969
    %v3986 = vmul.f32 %v3970, %v3970
    %v3987 = vmul.f32 %v3971, %v3971
    %v3988 = vmul.f32 %v3972, %v3972
    %v3989 = vmul.f32 %v3973, %v3973
    %v3990 = vmul.f32 %v3974, %v3974
    %v3991 = vmul.f32 %v3975, %v3975
    %v3992 = vmul.f32 %v3976, %v3976
    %v3993 = vmul.f32 %v3977, %v3977
    %v3994 = vmul.f32 %v3978, %v3978
    %v3995 = vmul.f32 %v3979, %v3979
    %v3996 = vmul.f32 %v3980, %v3980
    %v3997 = vadd.f32 %v3981, %v3982
    %v3998 = vadd.f32 %v3997, %v3983
    %v3999 = vadd.f32 %v3998, %v3984
    %v4000 = vadd.f32 %v3999, %v3985
    %v4001 = vadd.f32 %v4000, %v3986
    %v4002 = vadd.f32 %v4001, %v3987
    %v4003 = vadd.f32 %v4002, %v3988
    %v4004 = vadd.f32 %v4003, %v3989
    %v4005 = vadd.f32 %v4004, %v3990
    %v4006 = vadd.f32 %v4005, %v3991
    %v4007 = vadd.f32 %v4006, %v3992
    %v4008 = vadd.f32 %v4007, %v3993
    %v4009 = vadd.f32 %v4008, %v3994
    %v4010 = vadd.f32 %v4009, %v3995
    %v4011 = vadd.f32 %v4010, %v3996
    %v4012 = vrot.slane %v4011, 4
    %v4013 = vadd.f32 %v4011, %v4012
    %v4014 = vrot.slane %v4013, 2
    %v4015 = vadd.f32 %v4013, %v4014
    %v4016 = vrot.slane %v4015, 1
    %v4017 = vadd.f32 %v4015, %v4016
    %4018 = vrot.lane.b32.xlu0 %v4017, 16
    %v4019 = vpop.permute.xlu0 %4018
    %v4020 = vadd.f32 %v4017, %v4019
    %4021 = vrot.lane.b32.xlu0 %v4020, 32
    %v4022 = vpop.permute.xlu0 %4021
    %v4023 = vadd.f32 %v4020, %v4022
    %4024 = vrot.lane.b32.xlu0 %v4023, 64
    %v4025 = vpop.permute.xlu0 %4024
    %v4026 = vadd.f32 %v4023, %v4025
    %v4027 = vmul.f32 %v4026, 0.0009765625
    %v4028 = vadd.f32 %v4027, 1e-05
    %v4029 = vrsqrt.pop %v4028
    %v4030 = vmul.f32 %v3928, %v4029
    %v4032 = vlaneseq
    %v4033 = vshrl.u32 %v4032, 7
    %v4034 = vsub.s32 0, %v4033
    %v4035 = vrot.slane %v4030, %v4034
    %v4037 = vmul.f32 %v3965, %v4035
    %v4038 = vmul.f32 %v3966, %v4035
    %v4039 = vmul.f32 %v3967, %v4035
    %v4040 = vmul.f32 %v3968, %v4035
    %v4041 = vmul.f32 %v3969, %v4035
    %v4042 = vmul.f32 %v3970, %v4035
    %v4043 = vmul.f32 %v3971, %v4035
    %v4044 = vmul.f32 %v3972, %v4035
    %v4045 = vmul.f32 %v3973, %v4035
    %v4046 = vmul.f32 %v3974, %v4035
    %v4047 = vmul.f32 %v3975, %v4035
    %v4048 = vmul.f32 %v3976, %v4035
    %v4049 = vmul.f32 %v3977, %v4035
    %v4050 = vmul.f32 %v3978, %v4035
    %v4051 = vmul.f32 %v3979, %v4035
    %v4052 = vmul.f32 %v3980, %v4035
    %v4054 = vlaneseq
    %v4055 = vshrl.u32 %v4054, 7
    %v4056 = vsub.s32 0, %v4055
    %v4057 = vrot.slane %v3929, %v4056
    %v4059 = vadd.f32 %v4037, %v4057
    %v4060 = vadd.f32 %v4038, %v4057
    %v4061 = vadd.f32 %v4039, %v4057
    %v4062 = vadd.f32 %v4040, %v4057
    %v4063 = vadd.f32 %v4041, %v4057
    %v4064 = vadd.f32 %v4042, %v4057
    %v4065 = vadd.f32 %v4043, %v4057
    %v4066 = vadd.f32 %v4044, %v4057
    %v4067 = vadd.f32 %v4045, %v4057
    %v4068 = vadd.f32 %v4046, %v4057
    %v4069 = vadd.f32 %v4047, %v4057
    %v4070 = vadd.f32 %v4048, %v4057
    %v4071 = vadd.f32 %v4049, %v4057
    %v4072 = vadd.f32 %v4050, %v4057
    %v4073 = vadd.f32 %v4051, %v4057
    %v4074 = vadd.f32 %v4052, %v4057
    %v4075 = vadd.f32 %v81, %v4059
    %v4076 = vadd.f32 %v82, %v4060
    %v4077 = vadd.f32 %v83, %v4061
    %v4078 = vadd.f32 %v84, %v4062
    %v4079 = vadd.f32 %v85, %v4063
    %v4080 = vadd.f32 %v86, %v4064
    %v4081 = vadd.f32 %v87, %v4065
    %v4082 = vadd.f32 %v88, %v4066
    %v4083 = vadd.f32 %v89, %v4067
    %v4084 = vadd.f32 %v90, %v4068
    %v4085 = vadd.f32 %v91, %v4069
    %v4086 = vadd.f32 %v92, %v4070
    %v4087 = vadd.f32 %v93, %v4071
    %v4088 = vadd.f32 %v94, %v4072
    %v4089 = vadd.f32 %v95, %v4073
    %v4090 = vadd.f32 %v96, %v4074
    %4091 = vst [vmem:[#allocation12] sm:$0xff] %v4075
    %4092 = vst [vmem:[#allocation12 + $0x8] sm:$0xff] %v4076
    %4093 = vst [vmem:[#allocation12 + $0x10] sm:$0xff] %v4077
    %4094 = vst [vmem:[#allocation12 + $0x18] sm:$0xff] %v4078
    %4095 = vst [vmem:[#allocation12 + $0x20] sm:$0xff] %v4079
    %4096 = vst [vmem:[#allocation12 + $0x28] sm:$0xff] %v4080
    %4097 = vst [vmem:[#allocation12 + $0x30] sm:$0xff] %v4081
    %4098 = vst [vmem:[#allocation12 + $0x38] sm:$0xff] %v4082
    %4099 = vst [vmem:[#allocation12 + $0x40] sm:$0xff] %v4083
    %4100 = vst [vmem:[#allocation12 + $0x48] sm:$0xff] %v4084
    %4101 = vst [vmem:[#allocation12 + $0x50] sm:$0xff] %v4085
    %4102 = vst [vmem:[#allocation12 + $0x58] sm:$0xff] %v4086
    %4103 = vst [vmem:[#allocation12 + $0x60] sm:$0xff] %v4087
    %4104 = vst [vmem:[#allocation12 + $0x68] sm:$0xff] %v4088
    %4105 = vst [vmem:[#allocation12 + $0x70] sm:$0xff] %v4089
    %4106 = vst [vmem:[#allocation12 + $0x78] sm:$0xff] %v4090
    // Predicated region
    $region46: #{res3d_block_folded.1} parent=1 // pred_check
      _
    $region47: #{res3d_block_folded.1} parent=1 // pred_check_branch
      %4108 = sbr.rel (0) target = $region49
    $region48: #{res3d_block_folded.1} parent=1 // pred_region
      %s4110 = ssub.s32 2048, 2048
      %4111 = vsyncadd [#allocation6], %s4110
      %s4112 = sshll.u32 [#allocation12], 4
      %s4113 = int_to_ptr.vmem [resolvable:$true] %s4112
      %4118 = dma.vmem_to_hbm [thread:$0]  %s4113, 2048, %s7, [#allocation6], 128, 128, 8
    $region49: #{res3d_block_folded.1} parent=1 // pred_fallthru
      _
    // Predicated region
    $region50: #{res3d_block_folded.1} parent=1 // pred_check
      _
    $region51: #{res3d_block_folded.1} parent=1 // pred_check_branch
      %4120 = sbr.rel (0) target = $region53
    $region52: #{res3d_block_folded.1} parent=1 // pred_region
      %4121 = dma.done [#allocation6], 2048
    $region53: #{res3d_block_folded.1} parent=1 // pred_fallthru
      _
    %4122 = vsyncpa [#allocation5], 1
    %4123 = vsyncpa [#allocation8], 1
    %4124 = vsyncpa [#allocation11], 1
    %4125 = vsyncpa [#allocation6], 1

</llo_original>
